<compile_context>
chip_gen: v6e
topology: v6e:2x2x1
jax: 0.10.0
libtpu: 0.0.40
codegen_flags: <defaults>
</compile_context>

<pallas_src>
import jax
import jax.numpy as jnp
from jax.experimental import pallas as pl
from jax.experimental.pallas import tpu as pltpu

INPUT_DIM = 48
HIDDEN_DIM = 24
LATENT_DIM = 12


def _round_up(n, m):
    return ((n + m - 1) // m) * m


def _tensorcores_per_chip():
    """2 for v7x-class chips (megacore grid sharding pays off), else 1."""
    try:
        kind = jax.devices()[0].device_kind.lower()
    except Exception:
        return 1
    return 2 if ("v7" in kind or "7x" in kind) else 1


def autoencoder_kernel(x_ref,
                       w1_ref, b1_ref,
                       w23_ref, b23_ref,
                       w4_ref, b4_ref,
                       out_ref):
    """Fused forward pass for one batch tile.

    x_ref:   (TB, 48)   in the caller's HBM dtype (f32 or bf16)
    w1:  (48, 24) same dtype as x (native MXU pass)   b1:  (1, 24) f32
    w23: (24, 24) f32 (folded 24->12->24)             b23: (1, 24) f32
    w4:  (24, 48) f32                                 b4:  (1, 48) f32
    out_ref: (TB, 48)
    """
    # Dominant matmul consumes x in its native dtype: for bf16 I/O the MXU eats
    # bf16 operands directly with f32 accumulation (no full-tile VPU upcast).
    h1 = jnp.dot(x_ref[...], w1_ref[...],
                 preferred_element_type=jnp.float32) + b1_ref[...]
    h1 = jnp.maximum(h1, 0.0)

    h2 = jnp.dot(h1, w23_ref[...],
                 preferred_element_type=jnp.float32) + b23_ref[...]
    h2 = jnp.maximum(h2, 0.0)

    y = jnp.dot(h2, w4_ref[...],
                preferred_element_type=jnp.float32) + b4_ref[...]

    out_ref[...] = y.astype(out_ref.dtype)


def autoencoder_forward(x, params, *, tile_b=None, out_dtype=None,
                        vmem_budget_bytes=26 * 1024 * 1024):
    """x: (B, INPUT_DIM) in f32 or bf16. params: (in,out) weights, (1,out) biases.

    The input is consumed in its own dtype (no wrapper-side astype/pad HBM
    passes); pass bf16 x only if the caller already holds bf16 in HBM.
    out_dtype defaults to x.dtype.
    """
    B, D = x.shape
    assert D == INPUT_DIM
    io_dtype = jnp.dtype(x.dtype)
    out_dtype = io_dtype if out_dtype is None else jnp.dtype(out_dtype)

    # --- fold the two middle linears (no ReLU between them), all in f32 --------
    w1 = params["w1"].astype(jnp.float32)
    w2 = params["w2"].astype(jnp.float32)
    w3 = params["w3"].astype(jnp.float32)
    w4 = params["w4"].astype(jnp.float32)
    b1 = params["b1"].astype(jnp.float32)
    b2 = params["b2"].astype(jnp.float32)
    b3 = params["b3"].astype(jnp.float32)
    b4 = params["b4"].astype(jnp.float32)
    w23 = w2 @ w3                      # (24, 24)
    b23 = b2 @ w3 + b3                 # (1, 24)
    w1c = w1.astype(io_dtype)          # tiny; matches x for a native MXU pass

    # --- tile selection ---------------------------------------------------------
    pack = 16 if io_dtype == jnp.bfloat16 else 8         # sublane packing
    if tile_b is None:
        tile_b = 8192 if io_dtype == jnp.bfloat16 else 4096

    # VMEM budget per row: 48/24-wide buffers pad to 128 lanes; in/out are
    # double-buffered; budget 3 f32 temporaries (h1, h2, y) conservatively.
    bytes_per_row = 128 * (2 * io_dtype.itemsize + 2 * out_dtype.itemsize + 3 * 4)
    max_rows = max(pack, (int(vmem_budget_bytes) // bytes_per_row) // pack * pack)
    tile_b = max(pack, (min(int(tile_b), max_rows) // pack) * pack)

    # Only on 2-TC chips: make sure both TensorCores get work.
    if _tensorcores_per_chip() >= 2 and B > pack:
        tile_b = min(tile_b, _round_up((B + 1) // 2, pack))

    if tile_b >= B:
        tile_b = B                      # single full-array block (always legal)
    grid = (pl.cdiv(B, tile_b),)        # ragged tail: Pallas clips the partial block

    def const_spec(arr):
        shape = arr.shape
        return pl.BlockSpec(shape, lambda i: (0,) * len(shape))

    cost = pl.CostEstimate(
        flops=2 * B * (48 * 24 + 24 * 24 + 24 * 48),
        transcendentals=0,
        bytes_accessed=B * INPUT_DIM * (io_dtype.itemsize + out_dtype.itemsize)
        + w1c.size * io_dtype.itemsize
        + (w23.size + w4.size + b1.size + b23.size + b4.size) * 4,
    )

    return pl.pallas_call(
        autoencoder_kernel,
        out_shape=jax.ShapeDtypeStruct((B, INPUT_DIM), out_dtype),
        grid_spec=pltpu.PrefetchScalarGridSpec(
            num_scalar_prefetch=0,
            grid=grid,
            in_specs=[
                pl.BlockSpec((tile_b, INPUT_DIM), lambda i: (i, 0)),   # x tile
                const_spec(w1c), const_spec(b1),
                const_spec(w23), const_spec(b23),
                const_spec(w4), const_spec(b4),
            ],
            out_specs=pl.BlockSpec((tile_b, INPUT_DIM), lambda i: (i, 0)),
        ),
        compiler_params=pltpu.CompilerParams(
            dimension_semantics=("parallel",),
            vmem_limit_bytes=32 * 1024 * 1024,   # safe on v5e/v6e (128 MiB) and v7x (64 MiB)
        ),
        cost_estimate=cost,
    )(x, w1c, b1, w23, b23, w4, b4)


def init_params(key):
    """Deterministic synthetic parameters (PyTorch Linear shapes, stored transposed)."""
    keys = jax.random.split(key, 8)

    def linear(kw, kb, fan_in, fan_out):
        bound = 1.0 / jnp.sqrt(float(fan_in))
        w = jax.random.uniform(kw, (fan_in, fan_out), jnp.float32, -bound, bound)
        b = jax.random.uniform(kb, (1, fan_out), jnp.float32, -bound, bound)
        return w, b

    w1, b1 = linear(keys[0], keys[1], INPUT_DIM, HIDDEN_DIM)
    w2, b2 = linear(keys[2], keys[3], HIDDEN_DIM, LATENT_DIM)
    w3, b3 = linear(keys[4], keys[5], LATENT_DIM, HIDDEN_DIM)
    w4, b4 = linear(keys[6], keys[7], HIDDEN_DIM, INPUT_DIM)
    return dict(w1=w1, b1=b1, w2=w2, b2=b2, w3=w3, b3=b3, w4=w4, b4=b4)


def reference_forward(x, p):
    """Pure-JAX reference (unfused, matches the PyTorch module exactly)."""
    h = jnp.maximum(x @ p["w1"] + p["b1"], 0.0)
    z = h @ p["w2"] + p["b2"]
    h2 = jnp.maximum(z @ p["w3"] + p["b3"], 0.0)
    return h2 @ p["w4"] + p["b4"]


if __name__ == "__main__":
    key = jax.random.PRNGKey(0)
    k_params, k_x = jax.random.split(key)
    params = init_params(k_params)

    # f32 path, batch small enough that the whole thing is one tile on 1-TC chips.
    B = 1024
    x = jax.random.normal(k_x, (B, INPUT_DIM), jnp.float32)
    out = jax.block_until_ready(autoencoder_forward(x, params))
    ref = reference_forward(x, params)
    assert out.shape == (B, INPUT_DIM) and out.dtype == jnp.float32
    assert jnp.allclose(out, ref, atol=1e-5, rtol=1e-5)

    # Ragged batch with a forced small tile: exercises the cdiv / partial-block
    # path (no wrapper-side pad or slice HBM passes).
    out_ragged = jax.block_until_ready(autoencoder_forward(x[:40], params, tile_b=32))
    assert out_ragged.shape == (40, INPUT_DIM)
    assert jnp.allclose(out_ragged, ref[:40], atol=1e-5, rtol=1e-5)

    # bf16 I/O path: the caller already holds bf16 in HBM; the kernel feeds bf16
    # straight to the MXU with f32 accumulation (no in-kernel upcast pass).
    x_bf16 = x.astype(jnp.bfloat16)
    out_bf16 = jax.block_until_ready(autoencoder_forward(x_bf16, params))
    assert out_bf16.dtype == jnp.bfloat16
    assert jnp.allclose(out_bf16.astype(jnp.float32), ref, atol=5e-2, rtol=5e-2)

    print("KERNEL_OK")
</pallas_src>

<mosaic_0001>
module attributes {stable_mosaic.version = 11 : i64} {
  func.func @autoencoder_kernel(%arg0: i32, %arg1: memref<1024x48xf32, #tpu.memory_space<vmem>>, %arg2: memref<48x24xf32, #tpu.memory_space<vmem>>, %arg3: memref<1x24xf32, #tpu.memory_space<vmem>>, %arg4: memref<24x24xf32, #tpu.memory_space<vmem>>, %arg5: memref<1x24xf32, #tpu.memory_space<vmem>>, %arg6: memref<24x48xf32, #tpu.memory_space<vmem>>, %arg7: memref<1x48xf32, #tpu.memory_space<vmem>>, %arg8: memref<1024x48xf32, #tpu.memory_space<vmem>>) attributes {dimension_semantics = [#tpu.dimension_semantics<parallel>], iteration_bounds = array<i64: 1>, scalar_prefetch = 0 : i64, scratch_operands = 0 : i64, tpu.core_type = #tpu.core_type<tc>, window_params = [{transform_indices = @transform_0, window_bounds = array<i64: 1024, 48>}, {pipeline_mode = #tpu.pipeline_mode<synchronous>, transform_indices = @transform_1, window_bounds = array<i64: 48, 24>}, {pipeline_mode = #tpu.pipeline_mode<synchronous>, transform_indices = @transform_2, window_bounds = array<i64: 1, 24>}, {pipeline_mode = #tpu.pipeline_mode<synchronous>, transform_indices = @transform_3, window_bounds = array<i64: 24, 24>}, {pipeline_mode = #tpu.pipeline_mode<synchronous>, transform_indices = @transform_4, window_bounds = array<i64: 1, 24>}, {pipeline_mode = #tpu.pipeline_mode<synchronous>, transform_indices = @transform_5, window_bounds = array<i64: 24, 48>}, {pipeline_mode = #tpu.pipeline_mode<synchronous>, transform_indices = @transform_6, window_bounds = array<i64: 1, 48>}, {transform_indices = @transform_7, window_bounds = array<i64: 1024, 48>}]} {
    %c0 = arith.constant 0 : index
    %c0_0 = arith.constant 0 : index
    %0 = vector.load %arg1[%c0, %c0_0] : memref<1024x48xf32, #tpu.memory_space<vmem>>, vector<1024x48xf32>
    %c0_1 = arith.constant 0 : index
    %c0_2 = arith.constant 0 : index
    %1 = vector.load %arg2[%c0_1, %c0_2] : memref<48x24xf32, #tpu.memory_space<vmem>>, vector<48x24xf32>
    %cst = arith.constant dense<0.000000e+00> : vector<1024x24xf32>
    %2 = tpu.matmul %0, %1, %cst {dimension_numbers = #tpu.dot_dimension_numbers<[1], [0], [0], [1], [0, 0, 1, 1], [], []>} : vector<1024x48xf32>, vector<48x24xf32>, vector<1024x24xf32> -> vector<1024x24xf32>
    %c0_3 = arith.constant 0 : index
    %c0_4 = arith.constant 0 : index
    %3 = vector.load %arg3[%c0_3, %c0_4] : memref<1x24xf32, #tpu.memory_space<vmem>>, vector<1x24xf32>
    %4 = vector.broadcast %3 : vector<1x24xf32> to vector<1024x24xf32>
    %5 = arith.addf %2, %4 : vector<1024x24xf32>
    %cst_5 = arith.constant 0.000000e+00 : f32
    %6 = vector.broadcast %cst_5 : f32 to vector<1024x24xf32>
    %7 = arith.maximumf %5, %6 : vector<1024x24xf32>
    %c0_6 = arith.constant 0 : index
    %c0_7 = arith.constant 0 : index
    %8 = vector.load %arg4[%c0_6, %c0_7] : memref<24x24xf32, #tpu.memory_space<vmem>>, vector<24x24xf32>
    %cst_8 = arith.constant dense<0.000000e+00> : vector<1024x24xf32>
    %9 = tpu.matmul %7, %8, %cst_8 {dimension_numbers = #tpu.dot_dimension_numbers<[1], [0], [0], [1], [0, 0, 1, 1], [], []>} : vector<1024x24xf32>, vector<24x24xf32>, vector<1024x24xf32> -> vector<1024x24xf32>
    %c0_9 = arith.constant 0 : index
    %c0_10 = arith.constant 0 : index
    %10 = vector.load %arg5[%c0_9, %c0_10] : memref<1x24xf32, #tpu.memory_space<vmem>>, vector<1x24xf32>
    %11 = vector.broadcast %10 : vector<1x24xf32> to vector<1024x24xf32>
    %12 = arith.addf %9, %11 : vector<1024x24xf32>
    %cst_11 = arith.constant 0.000000e+00 : f32
    %13 = vector.broadcast %cst_11 : f32 to vector<1024x24xf32>
    %14 = arith.maximumf %12, %13 : vector<1024x24xf32>
    %c0_12 = arith.constant 0 : index
    %c0_13 = arith.constant 0 : index
    %15 = vector.load %arg6[%c0_12, %c0_13] : memref<24x48xf32, #tpu.memory_space<vmem>>, vector<24x48xf32>
    %cst_14 = arith.constant dense<0.000000e+00> : vector<1024x48xf32>
    %16 = tpu.matmul %14, %15, %cst_14 {dimension_numbers = #tpu.dot_dimension_numbers<[1], [0], [0], [1], [0, 0, 1, 1], [], []>} : vector<1024x24xf32>, vector<24x48xf32>, vector<1024x48xf32> -> vector<1024x48xf32>
    %c0_15 = arith.constant 0 : index
    %c0_16 = arith.constant 0 : index
    %17 = vector.load %arg7[%c0_15, %c0_16] : memref<1x48xf32, #tpu.memory_space<vmem>>, vector<1x48xf32>
    %18 = vector.broadcast %17 : vector<1x48xf32> to vector<1024x48xf32>
    %19 = arith.addf %16, %18 : vector<1024x48xf32>
    %c0_17 = arith.constant 0 : index
    %c0_18 = arith.constant 0 : index
    %20 = vector.load %arg8[%c0_17, %c0_18] : memref<1024x48xf32, #tpu.memory_space<vmem>>, vector<1024x48xf32>
    tpu.vector_store %arg8[%c0_17, %c0_18], %19 {strides = array<i32>} : memref<1024x48xf32, #tpu.memory_space<vmem>>, vector<1024x48xf32>,
    return
  }
  func.func @transform_0(%arg0: i32) -> (i32, i32) {
    %c0_i32 = arith.constant 0 : i32
    %c0_i32_0 = arith.constant 0 : i32
    return %arg0, %c0_i32 : i32, i32
  }
  func.func @transform_1(%arg0: i32) -> (i32, i32) {
    %c0_i32 = arith.constant 0 : i32
    %c0_i32_0 = arith.constant 0 : i32
    %c0_i32_1 = arith.constant 0 : i32
    return %c0_i32, %c0_i32_0 : i32, i32
  }
  func.func @transform_2(%arg0: i32) -> (i32, i32) {
    %c0_i32 = arith.constant 0 : i32
    %c0_i32_0 = arith.constant 0 : i32
    %c0_i32_1 = arith.constant 0 : i32
    return %c0_i32, %c0_i32_0 : i32, i32
  }
  func.func @transform_3(%arg0: i32) -> (i32, i32) {
    %c0_i32 = arith.constant 0 : i32
    %c0_i32_0 = arith.constant 0 : i32
    %c0_i32_1 = arith.constant 0 : i32
    return %c0_i32, %c0_i32_0 : i32, i32
  }
  func.func @transform_4(%arg0: i32) -> (i32, i32) {
    %c0_i32 = arith.constant 0 : i32
    %c0_i32_0 = arith.constant 0 : i32
    %c0_i32_1 = arith.constant 0 : i32
    return %c0_i32, %c0_i32_0 : i32, i32
  }
  func.func @transform_5(%arg0: i32) -> (i32, i32) {
    %c0_i32 = arith.constant 0 : i32
    %c0_i32_0 = arith.constant 0 : i32
    %c0_i32_1 = arith.constant 0 : i32
    return %c0_i32, %c0_i32_0 : i32, i32
  }
  func.func @transform_6(%arg0: i32) -> (i32, i32) {
    %c0_i32 = arith.constant 0 : i32
    %c0_i32_0 = arith.constant 0 : i32
    %c0_i32_1 = arith.constant 0 : i32
    return %c0_i32, %c0_i32_0 : i32, i32
  }
  func.func @transform_7(%arg0: i32) -> (i32, i32) {
    %c0_i32 = arith.constant 0 : i32
    %c0_i32_0 = arith.constant 0 : i32
    return %arg0, %c0_i32 : i32, i32
  }
}

</mosaic_0001>

<llo_original>
// kernel: tpu_custom_call.1
$region0: #{tpu_custom_call.1}
  #allocation0 [shape = 'u32[]', space=smem, size = 0x4, offset = 0x4, fixed_abs, tag = 'smem constant byte address 0x4 - core index']
  #allocation1 [shape = 'u32[144,128]{1,0:T(1,128)}', space=vmem, size = 0x12000, scoped, tag = 'internal scratch']
  %s0 = inlined_call_operand.vmem [shape: f32[1024,48], index: 0, kind: input, shape index: {}]
  %s1 = inlined_call_operand.vmem [shape: f32[48,24], index: 1, kind: input, shape index: {}]
  %s2 = inlined_call_operand.vmem [shape: f32[1,24], index: 2, kind: input, shape index: {}]
  %s3 = inlined_call_operand.vmem [shape: f32[24,24], index: 3, kind: input, shape index: {}]
  %s4 = inlined_call_operand.vmem [shape: f32[1,24], index: 4, kind: input, shape index: {}]
  %s5 = inlined_call_operand.vmem [shape: f32[24,48], index: 5, kind: input, shape index: {}]
  %s6 = inlined_call_operand.vmem [shape: f32[1,48], index: 6, kind: input, shape index: {}]
  %s7 = inlined_call_operand.vmem [shape: f32[1024,48], index: 7, kind: output, shape index: {}]
  %s8 = sld [smem:[#allocation0]]
  $region38: #{tpu_custom_call.1} parent=0
    _
  %s10 = ssub.s32 1, %s8
  %s11 = scalar_select 0, %s10, %s8
  // Predicated region
  $region2: #{tpu_custom_call.1} parent=0 // pred_check
    _
  $region3: #{tpu_custom_call.1} parent=0 // pred_check_branch
    %13 = sbr.rel (0) target = $region5
  $region4: #{tpu_custom_call.1} parent=0 // pred_region
    _
  $region5: #{tpu_custom_call.1} parent=0 // pred_fallthru
    _
  // Predicated region
  $region6: #{tpu_custom_call.1} parent=0 // pred_check
    _
  $region7: #{tpu_custom_call.1} parent=0 // pred_check_branch
    %15 = sbr.rel (0) target = $region9
  $region8: #{tpu_custom_call.1} parent=0 // pred_region
    _
  $region9: #{tpu_custom_call.1} parent=0 // pred_fallthru
    _
  // Predicated region
  $region10: #{tpu_custom_call.1} parent=0 // pred_check
    _
  $region11: #{tpu_custom_call.1} parent=0 // pred_check_branch
    %17 = sbr.rel (0) target = $region13
  $region12: #{tpu_custom_call.1} parent=0 // pred_region
    _
  $region13: #{tpu_custom_call.1} parent=0 // pred_fallthru
    _
  // Predicated region
  $region14: #{tpu_custom_call.1} parent=0 // pred_check
    _
  $region15: #{tpu_custom_call.1} parent=0 // pred_check_branch
    %19 = sbr.rel (0) target = $region17
  $region16: #{tpu_custom_call.1} parent=0 // pred_region
    _
  $region17: #{tpu_custom_call.1} parent=0 // pred_fallthru
    _
  // Predicated region
  $region18: #{tpu_custom_call.1} parent=0 // pred_check
    _
  $region19: #{tpu_custom_call.1} parent=0 // pred_check_branch
    %21 = sbr.rel (0) target = $region21
  $region20: #{tpu_custom_call.1} parent=0 // pred_region
    _
  $region21: #{tpu_custom_call.1} parent=0 // pred_fallthru
    _
  // Predicated region
  $region22: #{tpu_custom_call.1} parent=0 // pred_check
    _
  $region23: #{tpu_custom_call.1} parent=0 // pred_check_branch
    %23 = sbr.rel (0) target = $region25
  $region24: #{tpu_custom_call.1} parent=0 // pred_region
    _
  $region25: #{tpu_custom_call.1} parent=0 // pred_fallthru
    _
  // Predicated region
  $region26: #{tpu_custom_call.1} parent=0 // pred_check
    _
  $region27: #{tpu_custom_call.1} parent=0 // pred_check_branch
    %25 = sbr.rel (0) target = $region29
  $region28: #{tpu_custom_call.1} parent=0 // pred_region
    _
  $region29: #{tpu_custom_call.1} parent=0 // pred_fallthru
    _
  %v26 = vld [vmem:[%s0] sm:$0xff]
  %v27 = vld [vmem:[%s0 + $0x8] sm:$0xff]
  %v28 = vld [vmem:[%s0 + $0x10] sm:$0xff]
  %v29 = vld [vmem:[%s0 + $0x18] sm:$0xff]
  %v30 = vld [vmem:[%s0 + $0x20] sm:$0xff]
  %v31 = vld [vmem:[%s0 + $0x28] sm:$0xff]
  %v32 = vld [vmem:[%s0 + $0x30] sm:$0xff]
  %v33 = vld [vmem:[%s0 + $0x38] sm:$0xff]
  %v34 = vld [vmem:[%s0 + $0x40] sm:$0xff]
  %v35 = vld [vmem:[%s0 + $0x48] sm:$0xff]
  %v36 = vld [vmem:[%s0 + $0x50] sm:$0xff]
  %v37 = vld [vmem:[%s0 + $0x58] sm:$0xff]
  %v38 = vld [vmem:[%s0 + $0x60] sm:$0xff]
  %v39 = vld [vmem:[%s0 + $0x68] sm:$0xff]
  %v40 = vld [vmem:[%s0 + $0x70] sm:$0xff]
  %v41 = vld [vmem:[%s0 + $0x78] sm:$0xff]
  %v42 = vld [vmem:[%s0 + $0x80] sm:$0xff]
  %v43 = vld [vmem:[%s0 + $0x88] sm:$0xff]
  %v44 = vld [vmem:[%s0 + $0x90] sm:$0xff]
  %v45 = vld [vmem:[%s0 + $0x98] sm:$0xff]
  %v46 = vld [vmem:[%s0 + $0xa0] sm:$0xff]
  %v47 = vld [vmem:[%s0 + $0xa8] sm:$0xff]
  %v48 = vld [vmem:[%s0 + $0xb0] sm:$0xff]
  %v49 = vld [vmem:[%s0 + $0xb8] sm:$0xff]
  %v50 = vld [vmem:[%s0 + $0xc0] sm:$0xff]
  %v51 = vld [vmem:[%s0 + $0xc8] sm:$0xff]
  %v52 = vld [vmem:[%s0 + $0xd0] sm:$0xff]
  %v53 = vld [vmem:[%s0 + $0xd8] sm:$0xff]
  %v54 = vld [vmem:[%s0 + $0xe0] sm:$0xff]
  %v55 = vld [vmem:[%s0 + $0xe8] sm:$0xff]
  %v56 = vld [vmem:[%s0 + $0xf0] sm:$0xff]
  %v57 = vld [vmem:[%s0 + $0xf8] sm:$0xff]
  %v58 = vld [vmem:[%s0 + $0x100] sm:$0xff]
  %v59 = vld [vmem:[%s0 + $0x108] sm:$0xff]
  %v60 = vld [vmem:[%s0 + $0x110] sm:$0xff]
  %v61 = vld [vmem:[%s0 + $0x118] sm:$0xff]
  %v62 = vld [vmem:[%s0 + $0x120] sm:$0xff]
  %v63 = vld [vmem:[%s0 + $0x128] sm:$0xff]
  %v64 = vld [vmem:[%s0 + $0x130] sm:$0xff]
  %v65 = vld [vmem:[%s0 + $0x138] sm:$0xff]
  %v66 = vld [vmem:[%s0 + $0x140] sm:$0xff]
  %v67 = vld [vmem:[%s0 + $0x148] sm:$0xff]
  %v68 = vld [vmem:[%s0 + $0x150] sm:$0xff]
  %v69 = vld [vmem:[%s0 + $0x158] sm:$0xff]
  %v70 = vld [vmem:[%s0 + $0x160] sm:$0xff]
  %v71 = vld [vmem:[%s0 + $0x168] sm:$0xff]
  %v72 = vld [vmem:[%s0 + $0x170] sm:$0xff]
  %v73 = vld [vmem:[%s0 + $0x178] sm:$0xff]
  %v74 = vld [vmem:[%s0 + $0x180] sm:$0xff]
  %v75 = vld [vmem:[%s0 + $0x188] sm:$0xff]
  %v76 = vld [vmem:[%s0 + $0x190] sm:$0xff]
  %v77 = vld [vmem:[%s0 + $0x198] sm:$0xff]
  %v78 = vld [vmem:[%s0 + $0x1a0] sm:$0xff]
  %v79 = vld [vmem:[%s0 + $0x1a8] sm:$0xff]
  %v80 = vld [vmem:[%s0 + $0x1b0] sm:$0xff]
  %v81 = vld [vmem:[%s0 + $0x1b8] sm:$0xff]
  %v82 = vld [vmem:[%s0 + $0x1c0] sm:$0xff]
  %v83 = vld [vmem:[%s0 + $0x1c8] sm:$0xff]
  %v84 = vld [vmem:[%s0 + $0x1d0] sm:$0xff]
  %v85 = vld [vmem:[%s0 + $0x1d8] sm:$0xff]
  %v86 = vld [vmem:[%s0 + $0x1e0] sm:$0xff]
  %v87 = vld [vmem:[%s0 + $0x1e8] sm:$0xff]
  %v88 = vld [vmem:[%s0 + $0x1f0] sm:$0xff]
  %v89 = vld [vmem:[%s0 + $0x1f8] sm:$0xff]
  %v90 = vld [vmem:[%s0 + $0x200] sm:$0xff]
  %v91 = vld [vmem:[%s0 + $0x208] sm:$0xff]
  %v92 = vld [vmem:[%s0 + $0x210] sm:$0xff]
  %v93 = vld [vmem:[%s0 + $0x218] sm:$0xff]
  %v94 = vld [vmem:[%s0 + $0x220] sm:$0xff]
  %v95 = vld [vmem:[%s0 + $0x228] sm:$0xff]
  %v96 = vld [vmem:[%s0 + $0x230] sm:$0xff]
  %v97 = vld [vmem:[%s0 + $0x238] sm:$0xff]
  %v98 = vld [vmem:[%s0 + $0x240] sm:$0xff]
  %v99 = vld [vmem:[%s0 + $0x248] sm:$0xff]
  %v100 = vld [vmem:[%s0 + $0x250] sm:$0xff]
  %v101 = vld [vmem:[%s0 + $0x258] sm:$0xff]
  %v102 = vld [vmem:[%s0 + $0x260] sm:$0xff]
  %v103 = vld [vmem:[%s0 + $0x268] sm:$0xff]
  %v104 = vld [vmem:[%s0 + $0x270] sm:$0xff]
  %v105 = vld [vmem:[%s0 + $0x278] sm:$0xff]
  %v106 = vld [vmem:[%s0 + $0x280] sm:$0xff]
  %v107 = vld [vmem:[%s0 + $0x288] sm:$0xff]
  %v108 = vld [vmem:[%s0 + $0x290] sm:$0xff]
  %v109 = vld [vmem:[%s0 + $0x298] sm:$0xff]
  %v110 = vld [vmem:[%s0 + $0x2a0] sm:$0xff]
  %v111 = vld [vmem:[%s0 + $0x2a8] sm:$0xff]
  %v112 = vld [vmem:[%s0 + $0x2b0] sm:$0xff]
  %v113 = vld [vmem:[%s0 + $0x2b8] sm:$0xff]
  %v114 = vld [vmem:[%s0 + $0x2c0] sm:$0xff]
  %v115 = vld [vmem:[%s0 + $0x2c8] sm:$0xff]
  %v116 = vld [vmem:[%s0 + $0x2d0] sm:$0xff]
  %v117 = vld [vmem:[%s0 + $0x2d8] sm:$0xff]
  %v118 = vld [vmem:[%s0 + $0x2e0] sm:$0xff]
  %v119 = vld [vmem:[%s0 + $0x2e8] sm:$0xff]
  %v120 = vld [vmem:[%s0 + $0x2f0] sm:$0xff]
  %v121 = vld [vmem:[%s0 + $0x2f8] sm:$0xff]
  %v122 = vld [vmem:[%s0 + $0x300] sm:$0xff]
  %v123 = vld [vmem:[%s0 + $0x308] sm:$0xff]
  %v124 = vld [vmem:[%s0 + $0x310] sm:$0xff]
  %v125 = vld [vmem:[%s0 + $0x318] sm:$0xff]
  %v126 = vld [vmem:[%s0 + $0x320] sm:$0xff]
  %v127 = vld [vmem:[%s0 + $0x328] sm:$0xff]
  %v128 = vld [vmem:[%s0 + $0x330] sm:$0xff]
  %v129 = vld [vmem:[%s0 + $0x338] sm:$0xff]
  %v130 = vld [vmem:[%s0 + $0x340] sm:$0xff]
  %v131 = vld [vmem:[%s0 + $0x348] sm:$0xff]
  %v132 = vld [vmem:[%s0 + $0x350] sm:$0xff]
  %v133 = vld [vmem:[%s0 + $0x358] sm:$0xff]
  %v134 = vld [vmem:[%s0 + $0x360] sm:$0xff]
  %v135 = vld [vmem:[%s0 + $0x368] sm:$0xff]
  %v136 = vld [vmem:[%s0 + $0x370] sm:$0xff]
  %v137 = vld [vmem:[%s0 + $0x378] sm:$0xff]
  %v138 = vld [vmem:[%s0 + $0x380] sm:$0xff]
  %v139 = vld [vmem:[%s0 + $0x388] sm:$0xff]
  %v140 = vld [vmem:[%s0 + $0x390] sm:$0xff]
  %v141 = vld [vmem:[%s0 + $0x398] sm:$0xff]
  %v142 = vld [vmem:[%s0 + $0x3a0] sm:$0xff]
  %v143 = vld [vmem:[%s0 + $0x3a8] sm:$0xff]
  %v144 = vld [vmem:[%s0 + $0x3b0] sm:$0xff]
  %v145 = vld [vmem:[%s0 + $0x3b8] sm:$0xff]
  %v146 = vld [vmem:[%s0 + $0x3c0] sm:$0xff]
  %v147 = vld [vmem:[%s0 + $0x3c8] sm:$0xff]
  %v148 = vld [vmem:[%s0 + $0x3d0] sm:$0xff]
  %v149 = vld [vmem:[%s0 + $0x3d8] sm:$0xff]
  %v150 = vld [vmem:[%s0 + $0x3e0] sm:$0xff]
  %v151 = vld [vmem:[%s0 + $0x3e8] sm:$0xff]
  %v152 = vld [vmem:[%s0 + $0x3f0] sm:$0xff]
  %v153 = vld [vmem:[%s0 + $0x3f8] sm:$0xff]
  %v154 = vld [vmem:[%s1] sm:$0xff]
  %v155 = vld [vmem:[%s1 + $0x8] sm:$0xff]
  %v156 = vld [vmem:[%s1 + $0x10] sm:$0xff]
  %v157 = vld [vmem:[%s1 + $0x18] sm:$0xff]
  %v158 = vld [vmem:[%s1 + $0x20] sm:$0xff]
  %v159 = vld [vmem:[%s1 + $0x28] sm:$0xff]
  %v160 = vld [vmem:[%s2] sm:$0x1]
  %v162 = vlaneseq
  %v163 = vshrl.u32 %v162, 7
  %v164 = vsub.s32 0, %v163
  %v165 = vrot.slane %v160, %v164
  %vm167 = vcmask 392192
  %v169 = vsel %vm167, %v26, 0
  %v172 = vsel %vm167, %v27, 0
  %v175 = vsel %vm167, %v28, 0
  %v178 = vsel %vm167, %v29, 0
  %v181 = vsel %vm167, %v30, 0
  %v184 = vsel %vm167, %v31, 0
  %v187 = vsel %vm167, %v32, 0
  %v190 = vsel %vm167, %v33, 0
  %v193 = vsel %vm167, %v34, 0
  %v196 = vsel %vm167, %v35, 0
  %v199 = vsel %vm167, %v36, 0
  %v202 = vsel %vm167, %v37, 0
  %v205 = vsel %vm167, %v38, 0
  %v208 = vsel %vm167, %v39, 0
  %v211 = vsel %vm167, %v40, 0
  %v214 = vsel %vm167, %v41, 0
  %v217 = vsel %vm167, %v42, 0
  %v220 = vsel %vm167, %v43, 0
  %v223 = vsel %vm167, %v44, 0
  %v226 = vsel %vm167, %v45, 0
  %v229 = vsel %vm167, %v46, 0
  %v232 = vsel %vm167, %v47, 0
  %v235 = vsel %vm167, %v48, 0
  %v238 = vsel %vm167, %v49, 0
  %v241 = vsel %vm167, %v50, 0
  %v244 = vsel %vm167, %v51, 0
  %v247 = vsel %vm167, %v52, 0
  %v250 = vsel %vm167, %v53, 0
  %v253 = vsel %vm167, %v54, 0
  %v256 = vsel %vm167, %v55, 0
  %v259 = vsel %vm167, %v56, 0
  %v262 = vsel %vm167, %v57, 0
  %v265 = vsel %vm167, %v58, 0
  %v268 = vsel %vm167, %v59, 0
  %v271 = vsel %vm167, %v60, 0
  %v274 = vsel %vm167, %v61, 0
  %v277 = vsel %vm167, %v62, 0
  %v280 = vsel %vm167, %v63, 0
  %v283 = vsel %vm167, %v64, 0
  %v286 = vsel %vm167, %v65, 0
  %v289 = vsel %vm167, %v66, 0
  %v292 = vsel %vm167, %v67, 0
  %v295 = vsel %vm167, %v68, 0
  %v298 = vsel %vm167, %v69, 0
  %v301 = vsel %vm167, %v70, 0
  %v304 = vsel %vm167, %v71, 0
  %v307 = vsel %vm167, %v72, 0
  %v310 = vsel %vm167, %v73, 0
  %v313 = vsel %vm167, %v74, 0
  %v316 = vsel %vm167, %v75, 0
  %v319 = vsel %vm167, %v76, 0
  %v322 = vsel %vm167, %v77, 0
  %v325 = vsel %vm167, %v78, 0
  %v328 = vsel %vm167, %v79, 0
  %v331 = vsel %vm167, %v80, 0
  %v334 = vsel %vm167, %v81, 0
  %v337 = vsel %vm167, %v82, 0
  %v340 = vsel %vm167, %v83, 0
  %v343 = vsel %vm167, %v84, 0
  %v346 = vsel %vm167, %v85, 0
  %v349 = vsel %vm167, %v86, 0
  %v352 = vsel %vm167, %v87, 0
  %v355 = vsel %vm167, %v88, 0
  %v358 = vsel %vm167, %v89, 0
  %v361 = vsel %vm167, %v90, 0
  %v364 = vsel %vm167, %v91, 0
  %v367 = vsel %vm167, %v92, 0
  %v370 = vsel %vm167, %v93, 0
  %v373 = vsel %vm167, %v94, 0
  %v376 = vsel %vm167, %v95, 0
  %v379 = vsel %vm167, %v96, 0
  %v382 = vsel %vm167, %v97, 0
  %v385 = vsel %vm167, %v98, 0
  %v388 = vsel %vm167, %v99, 0
  %v391 = vsel %vm167, %v100, 0
  %v394 = vsel %vm167, %v101, 0
  %v397 = vsel %vm167, %v102, 0
  %v400 = vsel %vm167, %v103, 0
  %v403 = vsel %vm167, %v104, 0
  %v406 = vsel %vm167, %v105, 0
  %v409 = vsel %vm167, %v106, 0
  %v412 = vsel %vm167, %v107, 0
  %v415 = vsel %vm167, %v108, 0
  %v418 = vsel %vm167, %v109, 0
  %v421 = vsel %vm167, %v110, 0
  %v424 = vsel %vm167, %v111, 0
  %v427 = vsel %vm167, %v112, 0
  %v430 = vsel %vm167, %v113, 0
  %v433 = vsel %vm167, %v114, 0
  %v436 = vsel %vm167, %v115, 0
  %v439 = vsel %vm167, %v116, 0
  %v442 = vsel %vm167, %v117, 0
  %v445 = vsel %vm167, %v118, 0
  %v448 = vsel %vm167, %v119, 0
  %v451 = vsel %vm167, %v120, 0
  %v454 = vsel %vm167, %v121, 0
  %v457 = vsel %vm167, %v122, 0
  %v460 = vsel %vm167, %v123, 0
  %v463 = vsel %vm167, %v124, 0
  %v466 = vsel %vm167, %v125, 0
  %v469 = vsel %vm167, %v126, 0
  %v472 = vsel %vm167, %v127, 0
  %v475 = vsel %vm167, %v128, 0
  %v478 = vsel %vm167, %v129, 0
  %v481 = vsel %vm167, %v130, 0
  %v484 = vsel %vm167, %v131, 0
  %v487 = vsel %vm167, %v132, 0
  %v490 = vsel %vm167, %v133, 0
  %v493 = vsel %vm167, %v134, 0
  %v496 = vsel %vm167, %v135, 0
  %v499 = vsel %vm167, %v136, 0
  %v502 = vsel %vm167, %v137, 0
  %v505 = vsel %vm167, %v138, 0
  %v508 = vsel %vm167, %v139, 0
  %v511 = vsel %vm167, %v140, 0
  %v514 = vsel %vm167, %v141, 0
  %v517 = vsel %vm167, %v142, 0
  %v520 = vsel %vm167, %v143, 0
  %v523 = vsel %vm167, %v144, 0
  %v526 = vsel %vm167, %v145, 0
  %v529 = vsel %vm167, %v146, 0
  %v532 = vsel %vm167, %v147, 0
  %v535 = vsel %vm167, %v148, 0
  %v538 = vsel %vm167, %v149, 0
  %v541 = vsel %vm167, %v150, 0
  %v544 = vsel %vm167, %v151, 0
  %v547 = vsel %vm167, %v152, 0
  %v550 = vsel %vm167, %v153, 0
  %552 = vmatprep.subr.mxu0 0.0
  %553 = vmatpush1.msra.mxu0 0.0
  %554 = vmatprep.subr.mxu0 0.0
  %555 = vmatpush1.msra.mxu0 0.0
  %556 = vmatprep.subr.mxu0 0.0
  %557 = vmatpush1.msra.mxu0 0.0
  %558 = vmatprep.subr.mxu0 0.0
  %559 = vmatpush1.msra.mxu0 0.0
  %560 = vmatprep.subr.mxu0 0.0
  %561 = vmatpush1.msra.mxu0 0.0
  %562 = vmatprep.subr.mxu0 0.0
  %563 = vmatpush1.msra.mxu0 0.0
  %564 = vmatprep.subr.mxu0 0.0
  %565 = vmatpush1.msra.mxu0 0.0
  %566 = vmatprep.subr.mxu0 0.0
  %567 = vmatpush1.msra.mxu0 0.0
  %568 = vmatprep.subr.mxu0 0.0
  %569 = vmatpush1.msra.mxu0 0.0
  %570 = vmatprep.subr.mxu0 0.0
  %571 = vmatpush1.msra.mxu0 0.0
  %572 = vmatprep.subr.mxu0 0.0
  %573 = vmatpush1.msra.mxu0 %v159
  %574 = vmatprep.subr.mxu0 0.0
  %575 = vmatpush1.msra.mxu0 %v158
  %576 = vmatprep.subr.mxu0 0.0
  %577 = vmatpush1.msra.mxu0 %v157
  %578 = vmatprep.subr.mxu0 0.0
  %579 = vmatpush1.msra.mxu0 %v156
  %580 = vmatprep.subr.mxu0 0.0
  %581 = vmatpush1.msra.mxu0 %v155
  %582 = vmatprep.subr.mxu0 0.0
  %583 = vmatpush1.msra.mxu0 %v154
  %584 = vmatprep.subr.mxu0 0.0
  %585 = vmatpush2.msra.mxu0 0.0
  %586 = vmatprep.subr.mxu0 0.0
  %587 = vmatpush2.msra.mxu0 0.0
  %588 = vmatprep.subr.mxu0 0.0
  %589 = vmatpush2.msra.mxu0 0.0
  %590 = vmatprep.subr.mxu0 0.0
  %591 = vmatpush2.msra.mxu0 0.0
  %592 = vmatprep.subr.mxu0 0.0
  %593 = vmatpush2.msra.mxu0 0.0
  %594 = vmatprep.subr.mxu0 0.0
  %595 = vmatpush2.msra.mxu0 0.0
  %596 = vmatprep.subr.mxu0 0.0
  %597 = vmatpush2.msra.mxu0 0.0
  %598 = vmatprep.subr.mxu0 0.0
  %599 = vmatpush2.msra.mxu0 0.0
  %600 = vmatprep.subr.mxu0 0.0
  %601 = vmatpush2.msra.mxu0 0.0
  %602 = vmatprep.subr.mxu0 0.0
  %603 = vmatpush2.msra.mxu0 0.0
  %604 = vmatprep.subr.mxu0 0.0
  %605 = vmatpush2.msra.mxu0 0.0
  %606 = vmatprep.subr.mxu0 0.0
  %607 = vmatpush2.msra.mxu0 0.0
  %608 = vmatprep.subr.mxu0 0.0
  %609 = vmatpush2.msra.mxu0 0.0
  %610 = vmatprep.subr.mxu0 0.0
  %611 = vmatpush2.msra.mxu0 0.0
  %612 = vmatprep.subr.mxu0 0.0
  %613 = vmatpush2.msra.mxu0 0.0
  %614 = vmatprep.subr.mxu0 0.0
  %615 = vmatpush2.msra.mxu0 0.0
  %616 = vmatprep.mubr.f32.mxu0 0.0
  %617 = vmatmul.mubr.f32.gmra.mxu0 %v169
  %v618 = vpop.f32.mrf.mxu0
  %v619 = vadd.f32 %v165, %v618
  %v620 = vpop.f32.mrf.mxu0
  %621 = vmatprep.mubr.f32.mxu0 0.0
  %622 = vmatmul.mubr.f32.gmra.mxu0 %v172
  %v623 = vpop.f32.mrf.mxu0
  %v624 = vadd.f32 %v165, %v623
  %v625 = vpop.f32.mrf.mxu0
  %626 = vmatprep.mubr.f32.mxu0 0.0
  %627 = vmatmul.mubr.f32.gmra.mxu0 %v175
  %v628 = vpop.f32.mrf.mxu0
  %v629 = vadd.f32 %v165, %v628
  %v630 = vpop.f32.mrf.mxu0
  %631 = vmatprep.mubr.f32.mxu0 0.0
  %632 = vmatmul.mubr.f32.gmra.mxu0 %v178
  %v633 = vpop.f32.mrf.mxu0
  %v634 = vadd.f32 %v165, %v633
  %v635 = vpop.f32.mrf.mxu0
  %636 = vmatprep.mubr.f32.mxu0 0.0
  %637 = vmatmul.mubr.f32.gmra.mxu0 %v181
  %v638 = vpop.f32.mrf.mxu0
  %v639 = vadd.f32 %v165, %v638
  %v640 = vpop.f32.mrf.mxu0
  %641 = vmatprep.mubr.f32.mxu0 0.0
  %642 = vmatmul.mubr.f32.gmra.mxu0 %v184
  %v643 = vpop.f32.mrf.mxu0
  %v644 = vadd.f32 %v165, %v643
  %v645 = vpop.f32.mrf.mxu0
  %646 = vmatprep.mubr.f32.mxu0 0.0
  %647 = vmatmul.mubr.f32.gmra.mxu0 %v187
  %v648 = vpop.f32.mrf.mxu0
  %v649 = vadd.f32 %v165, %v648
  %v650 = vpop.f32.mrf.mxu0
  %651 = vmatprep.mubr.f32.mxu0 0.0
  %652 = vmatmul.mubr.f32.gmra.mxu0 %v190
  %v653 = vpop.f32.mrf.mxu0
  %v654 = vadd.f32 %v165, %v653
  %v655 = vpop.f32.mrf.mxu0
  %656 = vmatprep.mubr.f32.mxu0 0.0
  %657 = vmatmul.mubr.f32.gmra.mxu0 %v193
  %v658 = vpop.f32.mrf.mxu0
  %v659 = vadd.f32 %v165, %v658
  %v660 = vpop.f32.mrf.mxu0
  %661 = vmatprep.mubr.f32.mxu0 0.0
  %662 = vmatmul.mubr.f32.gmra.mxu0 %v196
  %v663 = vpop.f32.mrf.mxu0
  %v664 = vadd.f32 %v165, %v663
  %v665 = vpop.f32.mrf.mxu0
  %666 = vmatprep.mubr.f32.mxu0 0.0
  %667 = vmatmul.mubr.f32.gmra.mxu0 %v199
  %v668 = vpop.f32.mrf.mxu0
  %v669 = vadd.f32 %v165, %v668
  %v670 = vpop.f32.mrf.mxu0
  %671 = vmatprep.mubr.f32.mxu0 0.0
  %672 = vmatmul.mubr.f32.gmra.mxu0 %v202
  %v673 = vpop.f32.mrf.mxu0
  %v674 = vadd.f32 %v165, %v673
  %v675 = vpop.f32.mrf.mxu0
  %676 = vmatprep.mubr.f32.mxu0 0.0
  %677 = vmatmul.mubr.f32.gmra.mxu0 %v205
  %v678 = vpop.f32.mrf.mxu0
  %v679 = vadd.f32 %v165, %v678
  %v680 = vpop.f32.mrf.mxu0
  %681 = vmatprep.mubr.f32.mxu0 0.0
  %682 = vmatmul.mubr.f32.gmra.mxu0 %v208
  %v683 = vpop.f32.mrf.mxu0
  %v684 = vadd.f32 %v165, %v683
  %v685 = vpop.f32.mrf.mxu0
  %686 = vmatprep.mubr.f32.mxu0 0.0
  %687 = vmatmul.mubr.f32.gmra.mxu0 %v211
  %v688 = vpop.f32.mrf.mxu0
  %v689 = vadd.f32 %v165, %v688
  %v690 = vpop.f32.mrf.mxu0
  %691 = vmatprep.mubr.f32.mxu0 0.0
  %692 = vmatmul.mubr.f32.gmra.mxu0 %v214
  %v693 = vpop.f32.mrf.mxu0
  %v694 = vadd.f32 %v165, %v693
  %v695 = vpop.f32.mrf.mxu0
  %696 = vmatprep.mubr.f32.mxu0 0.0
  %697 = vmatmul.mubr.f32.gmra.mxu0 %v217
  %v698 = vpop.f32.mrf.mxu0
  %v699 = vadd.f32 %v165, %v698
  %v700 = vpop.f32.mrf.mxu0
  %701 = vmatprep.mubr.f32.mxu0 0.0
  %702 = vmatmul.mubr.f32.gmra.mxu0 %v220
  %v703 = vpop.f32.mrf.mxu0
  %v704 = vadd.f32 %v165, %v703
  %v705 = vpop.f32.mrf.mxu0
  %706 = vmatprep.mubr.f32.mxu0 0.0
  %707 = vmatmul.mubr.f32.gmra.mxu0 %v223
  %v708 = vpop.f32.mrf.mxu0
  %v709 = vadd.f32 %v165, %v708
  %v710 = vpop.f32.mrf.mxu0
  %711 = vmatprep.mubr.f32.mxu0 0.0
  %712 = vmatmul.mubr.f32.gmra.mxu0 %v226
  %v713 = vpop.f32.mrf.mxu0
  %v714 = vadd.f32 %v165, %v713
  %v715 = vpop.f32.mrf.mxu0
  %716 = vmatprep.mubr.f32.mxu0 0.0
  %717 = vmatmul.mubr.f32.gmra.mxu0 %v229
  %v718 = vpop.f32.mrf.mxu0
  %v719 = vadd.f32 %v165, %v718
  %v720 = vpop.f32.mrf.mxu0
  %721 = vmatprep.mubr.f32.mxu0 0.0
  %722 = vmatmul.mubr.f32.gmra.mxu0 %v232
  %v723 = vpop.f32.mrf.mxu0
  %v724 = vadd.f32 %v165, %v723
  %v725 = vpop.f32.mrf.mxu0
  %726 = vmatprep.mubr.f32.mxu0 0.0
  %727 = vmatmul.mubr.f32.gmra.mxu0 %v235
  %v728 = vpop.f32.mrf.mxu0
  %v729 = vadd.f32 %v165, %v728
  %v730 = vpop.f32.mrf.mxu0
  %731 = vmatprep.mubr.f32.mxu0 0.0
  %732 = vmatmul.mubr.f32.gmra.mxu0 %v238
  %v733 = vpop.f32.mrf.mxu0
  %v734 = vadd.f32 %v165, %v733
  %v735 = vpop.f32.mrf.mxu0
  %736 = vmatprep.mubr.f32.mxu0 0.0
  %737 = vmatmul.mubr.f32.gmra.mxu0 %v241
  %v738 = vpop.f32.mrf.mxu0
  %v739 = vadd.f32 %v165, %v738
  %v740 = vpop.f32.mrf.mxu0
  %741 = vmatprep.mubr.f32.mxu0 0.0
  %742 = vmatmul.mubr.f32.gmra.mxu0 %v244
  %v743 = vpop.f32.mrf.mxu0
  %v744 = vadd.f32 %v165, %v743
  %v745 = vpop.f32.mrf.mxu0
  %746 = vmatprep.mubr.f32.mxu0 0.0
  %747 = vmatmul.mubr.f32.gmra.mxu0 %v247
  %v748 = vpop.f32.mrf.mxu0
  %v749 = vadd.f32 %v165, %v748
  %v750 = vpop.f32.mrf.mxu0
  %751 = vmatprep.mubr.f32.mxu0 0.0
  %752 = vmatmul.mubr.f32.gmra.mxu0 %v250
  %v753 = vpop.f32.mrf.mxu0
  %v754 = vadd.f32 %v165, %v753
  %v755 = vpop.f32.mrf.mxu0
  %756 = vmatprep.mubr.f32.mxu0 0.0
  %757 = vmatmul.mubr.f32.gmra.mxu0 %v253
  %v758 = vpop.f32.mrf.mxu0
  %v759 = vadd.f32 %v165, %v758
  %v760 = vpop.f32.mrf.mxu0
  %761 = vmatprep.mubr.f32.mxu0 0.0
  %762 = vmatmul.mubr.f32.gmra.mxu0 %v256
  %v763 = vpop.f32.mrf.mxu0
  %v764 = vadd.f32 %v165, %v763
  %v765 = vpop.f32.mrf.mxu0
  %766 = vmatprep.mubr.f32.mxu0 0.0
  %767 = vmatmul.mubr.f32.gmra.mxu0 %v259
  %v768 = vpop.f32.mrf.mxu0
  %v769 = vadd.f32 %v165, %v768
  %v770 = vpop.f32.mrf.mxu0
  %771 = vmatprep.mubr.f32.mxu0 0.0
  %772 = vmatmul.mubr.f32.gmra.mxu0 %v262
  %v773 = vpop.f32.mrf.mxu0
  %v774 = vadd.f32 %v165, %v773
  %v775 = vpop.f32.mrf.mxu0
  %776 = vmatprep.mubr.f32.mxu0 0.0
  %777 = vmatmul.mubr.f32.gmra.mxu0 %v265
  %v778 = vpop.f32.mrf.mxu0
  %v779 = vadd.f32 %v165, %v778
  %v780 = vpop.f32.mrf.mxu0
  %781 = vmatprep.mubr.f32.mxu0 0.0
  %782 = vmatmul.mubr.f32.gmra.mxu0 %v268
  %v783 = vpop.f32.mrf.mxu0
  %v784 = vadd.f32 %v165, %v783
  %v785 = vpop.f32.mrf.mxu0
  %786 = vmatprep.mubr.f32.mxu0 0.0
  %787 = vmatmul.mubr.f32.gmra.mxu0 %v271
  %v788 = vpop.f32.mrf.mxu0
  %v789 = vadd.f32 %v165, %v788
  %v790 = vpop.f32.mrf.mxu0
  %791 = vmatprep.mubr.f32.mxu0 0.0
  %792 = vmatmul.mubr.f32.gmra.mxu0 %v274
  %v793 = vpop.f32.mrf.mxu0
  %v794 = vadd.f32 %v165, %v793
  %v795 = vpop.f32.mrf.mxu0
  %796 = vmatprep.mubr.f32.mxu0 0.0
  %797 = vmatmul.mubr.f32.gmra.mxu0 %v277
  %v798 = vpop.f32.mrf.mxu0
  %v799 = vadd.f32 %v165, %v798
  %v800 = vpop.f32.mrf.mxu0
  %801 = vmatprep.mubr.f32.mxu0 0.0
  %802 = vmatmul.mubr.f32.gmra.mxu0 %v280
  %v803 = vpop.f32.mrf.mxu0
  %v804 = vadd.f32 %v165, %v803
  %v805 = vpop.f32.mrf.mxu0
  %806 = vmatprep.mubr.f32.mxu0 0.0
  %807 = vmatmul.mubr.f32.gmra.mxu0 %v283
  %v808 = vpop.f32.mrf.mxu0
  %v809 = vadd.f32 %v165, %v808
  %v810 = vpop.f32.mrf.mxu0
  %811 = vmatprep.mubr.f32.mxu0 0.0
  %812 = vmatmul.mubr.f32.gmra.mxu0 %v286
  %v813 = vpop.f32.mrf.mxu0
  %v814 = vadd.f32 %v165, %v813
  %v815 = vpop.f32.mrf.mxu0
  %816 = vmatprep.mubr.f32.mxu0 0.0
  %817 = vmatmul.mubr.f32.gmra.mxu0 %v289
  %v818 = vpop.f32.mrf.mxu0
  %v819 = vadd.f32 %v165, %v818
  %v820 = vpop.f32.mrf.mxu0
  %821 = vmatprep.mubr.f32.mxu0 0.0
  %822 = vmatmul.mubr.f32.gmra.mxu0 %v292
  %v823 = vpop.f32.mrf.mxu0
  %v824 = vadd.f32 %v165, %v823
  %v825 = vpop.f32.mrf.mxu0
  %826 = vmatprep.mubr.f32.mxu0 0.0
  %827 = vmatmul.mubr.f32.gmra.mxu0 %v295
  %v828 = vpop.f32.mrf.mxu0
  %v829 = vadd.f32 %v165, %v828
  %v830 = vpop.f32.mrf.mxu0
  %831 = vmatprep.mubr.f32.mxu0 0.0
  %832 = vmatmul.mubr.f32.gmra.mxu0 %v298
  %v833 = vpop.f32.mrf.mxu0
  %v834 = vadd.f32 %v165, %v833
  %v835 = vpop.f32.mrf.mxu0
  %836 = vmatprep.mubr.f32.mxu0 0.0
  %837 = vmatmul.mubr.f32.gmra.mxu0 %v301
  %v838 = vpop.f32.mrf.mxu0
  %v839 = vadd.f32 %v165, %v838
  %v840 = vpop.f32.mrf.mxu0
  %841 = vmatprep.mubr.f32.mxu0 0.0
  %842 = vmatmul.mubr.f32.gmra.mxu0 %v304
  %v843 = vpop.f32.mrf.mxu0
  %v844 = vadd.f32 %v165, %v843
  %v845 = vpop.f32.mrf.mxu0
  %846 = vmatprep.mubr.f32.mxu0 0.0
  %847 = vmatmul.mubr.f32.gmra.mxu0 %v307
  %v848 = vpop.f32.mrf.mxu0
  %v849 = vadd.f32 %v165, %v848
  %v850 = vpop.f32.mrf.mxu0
  %851 = vmatprep.mubr.f32.mxu0 0.0
  %852 = vmatmul.mubr.f32.gmra.mxu0 %v310
  %v853 = vpop.f32.mrf.mxu0
  %v854 = vadd.f32 %v165, %v853
  %v855 = vpop.f32.mrf.mxu0
  %856 = vmatprep.mubr.f32.mxu0 0.0
  %857 = vmatmul.mubr.f32.gmra.mxu0 %v313
  %v858 = vpop.f32.mrf.mxu0
  %v859 = vadd.f32 %v165, %v858
  %v860 = vpop.f32.mrf.mxu0
  %861 = vmatprep.mubr.f32.mxu0 0.0
  %862 = vmatmul.mubr.f32.gmra.mxu0 %v316
  %v863 = vpop.f32.mrf.mxu0
  %v864 = vadd.f32 %v165, %v863
  %v865 = vpop.f32.mrf.mxu0
  %866 = vmatprep.mubr.f32.mxu0 0.0
  %867 = vmatmul.mubr.f32.gmra.mxu0 %v319
  %v868 = vpop.f32.mrf.mxu0
  %v869 = vadd.f32 %v165, %v868
  %v870 = vpop.f32.mrf.mxu0
  %871 = vmatprep.mubr.f32.mxu0 0.0
  %872 = vmatmul.mubr.f32.gmra.mxu0 %v322
  %v873 = vpop.f32.mrf.mxu0
  %v874 = vadd.f32 %v165, %v873
  %v875 = vpop.f32.mrf.mxu0
  %876 = vmatprep.mubr.f32.mxu0 0.0
  %877 = vmatmul.mubr.f32.gmra.mxu0 %v325
  %v878 = vpop.f32.mrf.mxu0
  %v879 = vadd.f32 %v165, %v878
  %v880 = vpop.f32.mrf.mxu0
  %881 = vmatprep.mubr.f32.mxu0 0.0
  %882 = vmatmul.mubr.f32.gmra.mxu0 %v328
  %v883 = vpop.f32.mrf.mxu0
  %v884 = vadd.f32 %v165, %v883
  %v885 = vpop.f32.mrf.mxu0
  %886 = vmatprep.mubr.f32.mxu0 0.0
  %887 = vmatmul.mubr.f32.gmra.mxu0 %v331
  %v888 = vpop.f32.mrf.mxu0
  %v889 = vadd.f32 %v165, %v888
  %v890 = vpop.f32.mrf.mxu0
  %891 = vmatprep.mubr.f32.mxu0 0.0
  %892 = vmatmul.mubr.f32.gmra.mxu0 %v334
  %v893 = vpop.f32.mrf.mxu0
  %v894 = vadd.f32 %v165, %v893
  %v895 = vpop.f32.mrf.mxu0
  %896 = vmatprep.mubr.f32.mxu0 0.0
  %897 = vmatmul.mubr.f32.gmra.mxu0 %v337
  %v898 = vpop.f32.mrf.mxu0
  %v899 = vadd.f32 %v165, %v898
  %v900 = vpop.f32.mrf.mxu0
  %901 = vmatprep.mubr.f32.mxu0 0.0
  %902 = vmatmul.mubr.f32.gmra.mxu0 %v340
  %v903 = vpop.f32.mrf.mxu0
  %v904 = vadd.f32 %v165, %v903
  %v905 = vpop.f32.mrf.mxu0
  %906 = vmatprep.mubr.f32.mxu0 0.0
  %907 = vmatmul.mubr.f32.gmra.mxu0 %v343
  %v908 = vpop.f32.mrf.mxu0
  %v909 = vadd.f32 %v165, %v908
  %v910 = vpop.f32.mrf.mxu0
  %911 = vmatprep.mubr.f32.mxu0 0.0
  %912 = vmatmul.mubr.f32.gmra.mxu0 %v346
  %v913 = vpop.f32.mrf.mxu0
  %v914 = vadd.f32 %v165, %v913
  %v915 = vpop.f32.mrf.mxu0
  %916 = vmatprep.mubr.f32.mxu0 0.0
  %917 = vmatmul.mubr.f32.gmra.mxu0 %v349
  %v918 = vpop.f32.mrf.mxu0
  %v919 = vadd.f32 %v165, %v918
  %v920 = vpop.f32.mrf.mxu0
  %921 = vmatprep.mubr.f32.mxu0 0.0
  %922 = vmatmul.mubr.f32.gmra.mxu0 %v352
  %v923 = vpop.f32.mrf.mxu0
  %v924 = vadd.f32 %v165, %v923
  %v925 = vpop.f32.mrf.mxu0
  %926 = vmatprep.mubr.f32.mxu0 0.0
  %927 = vmatmul.mubr.f32.gmra.mxu0 %v355
  %v928 = vpop.f32.mrf.mxu0
  %v929 = vadd.f32 %v165, %v928
  %v930 = vpop.f32.mrf.mxu0
  %931 = vmatprep.mubr.f32.mxu0 0.0
  %932 = vmatmul.mubr.f32.gmra.mxu0 %v358
  %v933 = vpop.f32.mrf.mxu0
  %v934 = vadd.f32 %v165, %v933
  %v935 = vpop.f32.mrf.mxu0
  %936 = vmatprep.mubr.f32.mxu0 0.0
  %937 = vmatmul.mubr.f32.gmra.mxu0 %v361
  %v938 = vpop.f32.mrf.mxu0
  %v939 = vadd.f32 %v165, %v938
  %v940 = vpop.f32.mrf.mxu0
  %941 = vmatprep.mubr.f32.mxu0 0.0
  %942 = vmatmul.mubr.f32.gmra.mxu0 %v364
  %v943 = vpop.f32.mrf.mxu0
  %v944 = vadd.f32 %v165, %v943
  %v945 = vpop.f32.mrf.mxu0
  %946 = vmatprep.mubr.f32.mxu0 0.0
  %947 = vmatmul.mubr.f32.gmra.mxu0 %v367
  %v948 = vpop.f32.mrf.mxu0
  %v949 = vadd.f32 %v165, %v948
  %v950 = vpop.f32.mrf.mxu0
  %951 = vmatprep.mubr.f32.mxu0 0.0
  %952 = vmatmul.mubr.f32.gmra.mxu0 %v370
  %v953 = vpop.f32.mrf.mxu0
  %v954 = vadd.f32 %v165, %v953
  %v955 = vpop.f32.mrf.mxu0
  %956 = vmatprep.mubr.f32.mxu0 0.0
  %957 = vmatmul.mubr.f32.gmra.mxu0 %v373
  %v958 = vpop.f32.mrf.mxu0
  %v959 = vadd.f32 %v165, %v958
  %v960 = vpop.f32.mrf.mxu0
  %961 = vmatprep.mubr.f32.mxu0 0.0
  %962 = vmatmul.mubr.f32.gmra.mxu0 %v376
  %v963 = vpop.f32.mrf.mxu0
  %v964 = vadd.f32 %v165, %v963
  %v965 = vpop.f32.mrf.mxu0
  %966 = vmatprep.mubr.f32.mxu0 0.0
  %967 = vmatmul.mubr.f32.gmra.mxu0 %v379
  %v968 = vpop.f32.mrf.mxu0
  %v969 = vadd.f32 %v165, %v968
  %v970 = vpop.f32.mrf.mxu0
  %971 = vmatprep.mubr.f32.mxu0 0.0
  %972 = vmatmul.mubr.f32.gmra.mxu0 %v382
  %v973 = vpop.f32.mrf.mxu0
  %v974 = vadd.f32 %v165, %v973
  %v975 = vpop.f32.mrf.mxu0
  %976 = vmatprep.mubr.f32.mxu0 0.0
  %977 = vmatmul.mubr.f32.gmra.mxu0 %v385
  %v978 = vpop.f32.mrf.mxu0
  %v979 = vadd.f32 %v165, %v978
  %v980 = vpop.f32.mrf.mxu0
  %981 = vmatprep.mubr.f32.mxu0 0.0
  %982 = vmatmul.mubr.f32.gmra.mxu0 %v388
  %v983 = vpop.f32.mrf.mxu0
  %v984 = vadd.f32 %v165, %v983
  %v985 = vpop.f32.mrf.mxu0
  %986 = vmatprep.mubr.f32.mxu0 0.0
  %987 = vmatmul.mubr.f32.gmra.mxu0 %v391
  %v988 = vpop.f32.mrf.mxu0
  %v989 = vadd.f32 %v165, %v988
  %v990 = vpop.f32.mrf.mxu0
  %991 = vmatprep.mubr.f32.mxu0 0.0
  %992 = vmatmul.mubr.f32.gmra.mxu0 %v394
  %v993 = vpop.f32.mrf.mxu0
  %v994 = vadd.f32 %v165, %v993
  %v995 = vpop.f32.mrf.mxu0
  %996 = vmatprep.mubr.f32.mxu0 0.0
  %997 = vmatmul.mubr.f32.gmra.mxu0 %v397
  %v998 = vpop.f32.mrf.mxu0
  %v999 = vadd.f32 %v165, %v998
  %v1000 = vpop.f32.mrf.mxu0
  %1001 = vmatprep.mubr.f32.mxu0 0.0
  %1002 = vmatmul.mubr.f32.gmra.mxu0 %v400
  %v1003 = vpop.f32.mrf.mxu0
  %v1004 = vadd.f32 %v165, %v1003
  %v1005 = vpop.f32.mrf.mxu0
  %1006 = vmatprep.mubr.f32.mxu0 0.0
  %1007 = vmatmul.mubr.f32.gmra.mxu0 %v403
  %v1008 = vpop.f32.mrf.mxu0
  %v1009 = vadd.f32 %v165, %v1008
  %v1010 = vpop.f32.mrf.mxu0
  %1011 = vmatprep.mubr.f32.mxu0 0.0
  %1012 = vmatmul.mubr.f32.gmra.mxu0 %v406
  %v1013 = vpop.f32.mrf.mxu0
  %v1014 = vadd.f32 %v165, %v1013
  %v1015 = vpop.f32.mrf.mxu0
  %1016 = vmatprep.mubr.f32.mxu0 0.0
  %1017 = vmatmul.mubr.f32.gmra.mxu0 %v409
  %v1018 = vpop.f32.mrf.mxu0
  %v1019 = vadd.f32 %v165, %v1018
  %v1020 = vpop.f32.mrf.mxu0
  %1021 = vmatprep.mubr.f32.mxu0 0.0
  %1022 = vmatmul.mubr.f32.gmra.mxu0 %v412
  %v1023 = vpop.f32.mrf.mxu0
  %v1024 = vadd.f32 %v165, %v1023
  %v1025 = vpop.f32.mrf.mxu0
  %1026 = vmatprep.mubr.f32.mxu0 0.0
  %1027 = vmatmul.mubr.f32.gmra.mxu0 %v415
  %v1028 = vpop.f32.mrf.mxu0
  %v1029 = vadd.f32 %v165, %v1028
  %v1030 = vpop.f32.mrf.mxu0
  %1031 = vmatprep.mubr.f32.mxu0 0.0
  %1032 = vmatmul.mubr.f32.gmra.mxu0 %v418
  %v1033 = vpop.f32.mrf.mxu0
  %v1034 = vadd.f32 %v165, %v1033
  %v1035 = vpop.f32.mrf.mxu0
  %1036 = vmatprep.mubr.f32.mxu0 0.0
  %1037 = vmatmul.mubr.f32.gmra.mxu0 %v421
  %v1038 = vpop.f32.mrf.mxu0
  %v1039 = vadd.f32 %v165, %v1038
  %v1040 = vpop.f32.mrf.mxu0
  %1041 = vmatprep.mubr.f32.mxu0 0.0
  %1042 = vmatmul.mubr.f32.gmra.mxu0 %v424
  %v1043 = vpop.f32.mrf.mxu0
  %v1044 = vadd.f32 %v165, %v1043
  %v1045 = vpop.f32.mrf.mxu0
  %1046 = vmatprep.mubr.f32.mxu0 0.0
  %1047 = vmatmul.mubr.f32.gmra.mxu0 %v427
  %v1048 = vpop.f32.mrf.mxu0
  %v1049 = vadd.f32 %v165, %v1048
  %v1050 = vpop.f32.mrf.mxu0
  %1051 = vmatprep.mubr.f32.mxu0 0.0
  %1052 = vmatmul.mubr.f32.gmra.mxu0 %v430
  %v1053 = vpop.f32.mrf.mxu0
  %v1054 = vadd.f32 %v165, %v1053
  %v1055 = vpop.f32.mrf.mxu0
  %1056 = vmatprep.mubr.f32.mxu0 0.0
  %1057 = vmatmul.mubr.f32.gmra.mxu0 %v433
  %v1058 = vpop.f32.mrf.mxu0
  %v1059 = vadd.f32 %v165, %v1058
  %v1060 = vpop.f32.mrf.mxu0
  %1061 = vmatprep.mubr.f32.mxu0 0.0
  %1062 = vmatmul.mubr.f32.gmra.mxu0 %v436
  %v1063 = vpop.f32.mrf.mxu0
  %v1064 = vadd.f32 %v165, %v1063
  %v1065 = vpop.f32.mrf.mxu0
  %1066 = vmatprep.mubr.f32.mxu0 0.0
  %1067 = vmatmul.mubr.f32.gmra.mxu0 %v439
  %v1068 = vpop.f32.mrf.mxu0
  %v1069 = vadd.f32 %v165, %v1068
  %v1070 = vpop.f32.mrf.mxu0
  %1071 = vmatprep.mubr.f32.mxu0 0.0
  %1072 = vmatmul.mubr.f32.gmra.mxu0 %v442
  %v1073 = vpop.f32.mrf.mxu0
  %v1074 = vadd.f32 %v165, %v1073
  %v1075 = vpop.f32.mrf.mxu0
  %1076 = vmatprep.mubr.f32.mxu0 0.0
  %1077 = vmatmul.mubr.f32.gmra.mxu0 %v445
  %v1078 = vpop.f32.mrf.mxu0
  %v1079 = vadd.f32 %v165, %v1078
  %v1080 = vpop.f32.mrf.mxu0
  %1081 = vmatprep.mubr.f32.mxu0 0.0
  %1082 = vmatmul.mubr.f32.gmra.mxu0 %v448
  %v1083 = vpop.f32.mrf.mxu0
  %v1084 = vadd.f32 %v165, %v1083
  %v1085 = vpop.f32.mrf.mxu0
  %1086 = vmatprep.mubr.f32.mxu0 0.0
  %1087 = vmatmul.mubr.f32.gmra.mxu0 %v451
  %v1088 = vpop.f32.mrf.mxu0
  %v1089 = vadd.f32 %v165, %v1088
  %v1090 = vpop.f32.mrf.mxu0
  %1091 = vmatprep.mubr.f32.mxu0 0.0
  %1092 = vmatmul.mubr.f32.gmra.mxu0 %v454
  %v1093 = vpop.f32.mrf.mxu0
  %v1094 = vadd.f32 %v165, %v1093
  %v1095 = vpop.f32.mrf.mxu0
  %1096 = vmatprep.mubr.f32.mxu0 0.0
  %1097 = vmatmul.mubr.f32.gmra.mxu0 %v457
  %v1098 = vpop.f32.mrf.mxu0
  %v1099 = vadd.f32 %v165, %v1098
  %v1100 = vpop.f32.mrf.mxu0
  %1101 = vmatprep.mubr.f32.mxu0 0.0
  %1102 = vmatmul.mubr.f32.gmra.mxu0 %v460
  %v1103 = vpop.f32.mrf.mxu0
  %v1104 = vadd.f32 %v165, %v1103
  %v1105 = vpop.f32.mrf.mxu0
  %1106 = vmatprep.mubr.f32.mxu0 0.0
  %1107 = vmatmul.mubr.f32.gmra.mxu0 %v463
  %v1108 = vpop.f32.mrf.mxu0
  %v1109 = vadd.f32 %v165, %v1108
  %v1110 = vpop.f32.mrf.mxu0
  %1111 = vmatprep.mubr.f32.mxu0 0.0
  %1112 = vmatmul.mubr.f32.gmra.mxu0 %v466
  %v1113 = vpop.f32.mrf.mxu0
  %v1114 = vadd.f32 %v165, %v1113
  %v1115 = vpop.f32.mrf.mxu0
  %1116 = vmatprep.mubr.f32.mxu0 0.0
  %1117 = vmatmul.mubr.f32.gmra.mxu0 %v469
  %v1118 = vpop.f32.mrf.mxu0
  %v1119 = vadd.f32 %v165, %v1118
  %v1120 = vpop.f32.mrf.mxu0
  %1121 = vmatprep.mubr.f32.mxu0 0.0
  %1122 = vmatmul.mubr.f32.gmra.mxu0 %v472
  %v1123 = vpop.f32.mrf.mxu0
  %v1124 = vadd.f32 %v165, %v1123
  %v1125 = vpop.f32.mrf.mxu0
  %1126 = vmatprep.mubr.f32.mxu0 0.0
  %1127 = vmatmul.mubr.f32.gmra.mxu0 %v475
  %v1128 = vpop.f32.mrf.mxu0
  %v1129 = vadd.f32 %v165, %v1128
  %v1130 = vpop.f32.mrf.mxu0
  %1131 = vmatprep.mubr.f32.mxu0 0.0
  %1132 = vmatmul.mubr.f32.gmra.mxu0 %v478
  %v1133 = vpop.f32.mrf.mxu0
  %v1134 = vadd.f32 %v165, %v1133
  %v1135 = vpop.f32.mrf.mxu0
  %1136 = vmatprep.mubr.f32.mxu0 0.0
  %1137 = vmatmul.mubr.f32.gmra.mxu0 %v481
  %v1138 = vpop.f32.mrf.mxu0
  %v1139 = vadd.f32 %v165, %v1138
  %v1140 = vpop.f32.mrf.mxu0
  %1141 = vmatprep.mubr.f32.mxu0 0.0
  %1142 = vmatmul.mubr.f32.gmra.mxu0 %v484
  %v1143 = vpop.f32.mrf.mxu0
  %v1144 = vadd.f32 %v165, %v1143
  %v1145 = vpop.f32.mrf.mxu0
  %1146 = vmatprep.mubr.f32.mxu0 0.0
  %1147 = vmatmul.mubr.f32.gmra.mxu0 %v487
  %v1148 = vpop.f32.mrf.mxu0
  %v1149 = vadd.f32 %v165, %v1148
  %v1150 = vpop.f32.mrf.mxu0
  %1151 = vmatprep.mubr.f32.mxu0 0.0
  %1152 = vmatmul.mubr.f32.gmra.mxu0 %v490
  %v1153 = vpop.f32.mrf.mxu0
  %v1154 = vadd.f32 %v165, %v1153
  %v1155 = vpop.f32.mrf.mxu0
  %1156 = vmatprep.mubr.f32.mxu0 0.0
  %1157 = vmatmul.mubr.f32.gmra.mxu0 %v493
  %v1158 = vpop.f32.mrf.mxu0
  %v1159 = vadd.f32 %v165, %v1158
  %v1160 = vpop.f32.mrf.mxu0
  %1161 = vmatprep.mubr.f32.mxu0 0.0
  %1162 = vmatmul.mubr.f32.gmra.mxu0 %v496
  %v1163 = vpop.f32.mrf.mxu0
  %v1164 = vadd.f32 %v165, %v1163
  %v1165 = vpop.f32.mrf.mxu0
  %1166 = vmatprep.mubr.f32.mxu0 0.0
  %1167 = vmatmul.mubr.f32.gmra.mxu0 %v499
  %v1168 = vpop.f32.mrf.mxu0
  %v1169 = vadd.f32 %v165, %v1168
  %v1170 = vpop.f32.mrf.mxu0
  %1171 = vmatprep.mubr.f32.mxu0 0.0
  %1172 = vmatmul.mubr.f32.gmra.mxu0 %v502
  %v1173 = vpop.f32.mrf.mxu0
  %v1174 = vadd.f32 %v165, %v1173
  %v1175 = vpop.f32.mrf.mxu0
  %1176 = vmatprep.mubr.f32.mxu0 0.0
  %1177 = vmatmul.mubr.f32.gmra.mxu0 %v505
  %v1178 = vpop.f32.mrf.mxu0
  %v1179 = vadd.f32 %v165, %v1178
  %v1180 = vpop.f32.mrf.mxu0
  %1181 = vmatprep.mubr.f32.mxu0 0.0
  %1182 = vmatmul.mubr.f32.gmra.mxu0 %v508
  %v1183 = vpop.f32.mrf.mxu0
  %v1184 = vadd.f32 %v165, %v1183
  %v1185 = vpop.f32.mrf.mxu0
  %1186 = vmatprep.mubr.f32.mxu0 0.0
  %1187 = vmatmul.mubr.f32.gmra.mxu0 %v511
  %v1188 = vpop.f32.mrf.mxu0
  %v1189 = vadd.f32 %v165, %v1188
  %v1190 = vpop.f32.mrf.mxu0
  %1191 = vmatprep.mubr.f32.mxu0 0.0
  %1192 = vmatmul.mubr.f32.gmra.mxu0 %v514
  %v1193 = vpop.f32.mrf.mxu0
  %v1194 = vadd.f32 %v165, %v1193
  %v1195 = vpop.f32.mrf.mxu0
  %1196 = vmatprep.mubr.f32.mxu0 0.0
  %1197 = vmatmul.mubr.f32.gmra.mxu0 %v517
  %v1198 = vpop.f32.mrf.mxu0
  %v1199 = vadd.f32 %v165, %v1198
  %v1200 = vpop.f32.mrf.mxu0
  %1201 = vmatprep.mubr.f32.mxu0 0.0
  %1202 = vmatmul.mubr.f32.gmra.mxu0 %v520
  %v1203 = vpop.f32.mrf.mxu0
  %v1204 = vadd.f32 %v165, %v1203
  %v1205 = vpop.f32.mrf.mxu0
  %1206 = vmatprep.mubr.f32.mxu0 0.0
  %1207 = vmatmul.mubr.f32.gmra.mxu0 %v523
  %v1208 = vpop.f32.mrf.mxu0
  %v1209 = vadd.f32 %v165, %v1208
  %v1210 = vpop.f32.mrf.mxu0
  %1211 = vmatprep.mubr.f32.mxu0 0.0
  %1212 = vmatmul.mubr.f32.gmra.mxu0 %v526
  %v1213 = vpop.f32.mrf.mxu0
  %v1214 = vadd.f32 %v165, %v1213
  %v1215 = vpop.f32.mrf.mxu0
  %1216 = vmatprep.mubr.f32.mxu0 0.0
  %1217 = vmatmul.mubr.f32.gmra.mxu0 %v529
  %v1218 = vpop.f32.mrf.mxu0
  %v1219 = vadd.f32 %v165, %v1218
  %v1220 = vpop.f32.mrf.mxu0
  %1221 = vmatprep.mubr.f32.mxu0 0.0
  %1222 = vmatmul.mubr.f32.gmra.mxu0 %v532
  %v1223 = vpop.f32.mrf.mxu0
  %v1224 = vadd.f32 %v165, %v1223
  %v1225 = vpop.f32.mrf.mxu0
  %1226 = vmatprep.mubr.f32.mxu0 0.0
  %1227 = vmatmul.mubr.f32.gmra.mxu0 %v535
  %v1228 = vpop.f32.mrf.mxu0
  %v1229 = vadd.f32 %v165, %v1228
  %v1230 = vpop.f32.mrf.mxu0
  %1231 = vmatprep.mubr.f32.mxu0 0.0
  %1232 = vmatmul.mubr.f32.gmra.mxu0 %v538
  %v1233 = vpop.f32.mrf.mxu0
  %v1234 = vadd.f32 %v165, %v1233
  %v1235 = vpop.f32.mrf.mxu0
  %1236 = vmatprep.mubr.f32.mxu0 0.0
  %1237 = vmatmul.mubr.f32.gmra.mxu0 %v541
  %v1238 = vpop.f32.mrf.mxu0
  %v1239 = vadd.f32 %v165, %v1238
  %v1240 = vpop.f32.mrf.mxu0
  %1241 = vmatprep.mubr.f32.mxu0 0.0
  %1242 = vmatmul.mubr.f32.gmra.mxu0 %v544
  %v1243 = vpop.f32.mrf.mxu0
  %v1244 = vadd.f32 %v165, %v1243
  %v1245 = vpop.f32.mrf.mxu0
  %1246 = vmatprep.mubr.f32.mxu0 0.0
  %1247 = vmatmul.mubr.f32.gmra.mxu0 %v547
  %v1248 = vpop.f32.mrf.mxu0
  %v1249 = vadd.f32 %v165, %v1248
  %v1250 = vpop.f32.mrf.mxu0
  %1251 = vmatprep.mubr.f32.mxu0 0.0
  %1252 = vmatmul.mubr.f32.gmra.mxu0 %v550
  %v1253 = vpop.f32.mrf.mxu0
  %v1254 = vadd.f32 %v165, %v1253
  %v1255 = vpop.f32.mrf.mxu0
  %1256 = vdwg.mxu0
  %v1257 = vmax.f32 %v619, 0.0
  %v1258 = vmax.f32 %v624, 0.0
  %v1259 = vmax.f32 %v629, 0.0
  %v1260 = vmax.f32 %v634, 0.0
  %v1261 = vmax.f32 %v639, 0.0
  %v1262 = vmax.f32 %v644, 0.0
  %v1263 = vmax.f32 %v649, 0.0
  %v1264 = vmax.f32 %v654, 0.0
  %v1265 = vmax.f32 %v659, 0.0
  %v1266 = vmax.f32 %v664, 0.0
  %v1267 = vmax.f32 %v669, 0.0
  %v1268 = vmax.f32 %v674, 0.0
  %v1269 = vmax.f32 %v679, 0.0
  %v1270 = vmax.f32 %v684, 0.0
  %v1271 = vmax.f32 %v689, 0.0
  %v1272 = vmax.f32 %v694, 0.0
  %v1273 = vmax.f32 %v699, 0.0
  %v1274 = vmax.f32 %v704, 0.0
  %v1275 = vmax.f32 %v709, 0.0
  %v1276 = vmax.f32 %v714, 0.0
  %v1277 = vmax.f32 %v719, 0.0
  %v1278 = vmax.f32 %v724, 0.0
  %v1279 = vmax.f32 %v729, 0.0
  %v1280 = vmax.f32 %v734, 0.0
  %v1281 = vmax.f32 %v739, 0.0
  %v1282 = vmax.f32 %v744, 0.0
  %v1283 = vmax.f32 %v749, 0.0
  %v1284 = vmax.f32 %v754, 0.0
  %v1285 = vmax.f32 %v759, 0.0
  %v1286 = vmax.f32 %v764, 0.0
  %v1287 = vmax.f32 %v769, 0.0
  %v1288 = vmax.f32 %v774, 0.0
  %v1289 = vmax.f32 %v779, 0.0
  %v1290 = vmax.f32 %v784, 0.0
  %v1291 = vmax.f32 %v789, 0.0
  %v1292 = vmax.f32 %v794, 0.0
  %v1293 = vmax.f32 %v799, 0.0
  %v1294 = vmax.f32 %v804, 0.0
  %v1295 = vmax.f32 %v809, 0.0
  %v1296 = vmax.f32 %v814, 0.0
  %v1297 = vmax.f32 %v819, 0.0
  %v1298 = vmax.f32 %v824, 0.0
  %v1299 = vmax.f32 %v829, 0.0
  %v1300 = vmax.f32 %v834, 0.0
  %v1301 = vmax.f32 %v839, 0.0
  %v1302 = vmax.f32 %v844, 0.0
  %v1303 = vmax.f32 %v849, 0.0
  %v1304 = vmax.f32 %v854, 0.0
  %v1305 = vmax.f32 %v859, 0.0
  %v1306 = vmax.f32 %v864, 0.0
  %v1307 = vmax.f32 %v869, 0.0
  %v1308 = vmax.f32 %v874, 0.0
  %v1309 = vmax.f32 %v879, 0.0
  %v1310 = vmax.f32 %v884, 0.0
  %v1311 = vmax.f32 %v889, 0.0
  %v1312 = vmax.f32 %v894, 0.0
  %v1313 = vmax.f32 %v899, 0.0
  %v1314 = vmax.f32 %v904, 0.0
  %v1315 = vmax.f32 %v909, 0.0
  %v1316 = vmax.f32 %v914, 0.0
  %v1317 = vmax.f32 %v919, 0.0
  %v1318 = vmax.f32 %v924, 0.0
  %v1319 = vmax.f32 %v929, 0.0
  %v1320 = vmax.f32 %v934, 0.0
  %v1321 = vmax.f32 %v939, 0.0
  %v1322 = vmax.f32 %v944, 0.0
  %v1323 = vmax.f32 %v949, 0.0
  %v1324 = vmax.f32 %v954, 0.0
  %v1325 = vmax.f32 %v959, 0.0
  %v1326 = vmax.f32 %v964, 0.0
  %v1327 = vmax.f32 %v969, 0.0
  %v1328 = vmax.f32 %v974, 0.0
  %v1329 = vmax.f32 %v979, 0.0
  %v1330 = vmax.f32 %v984, 0.0
  %v1331 = vmax.f32 %v989, 0.0
  %v1332 = vmax.f32 %v994, 0.0
  %v1333 = vmax.f32 %v999, 0.0
  %v1334 = vmax.f32 %v1004, 0.0
  %v1335 = vmax.f32 %v1009, 0.0
  %v1336 = vmax.f32 %v1014, 0.0
  %v1337 = vmax.f32 %v1019, 0.0
  %v1338 = vmax.f32 %v1024, 0.0
  %v1339 = vmax.f32 %v1029, 0.0
  %v1340 = vmax.f32 %v1034, 0.0
  %v1341 = vmax.f32 %v1039, 0.0
  %v1342 = vmax.f32 %v1044, 0.0
  %v1343 = vmax.f32 %v1049, 0.0
  %v1344 = vmax.f32 %v1054, 0.0
  %v1345 = vmax.f32 %v1059, 0.0
  %v1346 = vmax.f32 %v1064, 0.0
  %v1347 = vmax.f32 %v1069, 0.0
  %v1348 = vmax.f32 %v1074, 0.0
  %v1349 = vmax.f32 %v1079, 0.0
  %v1350 = vmax.f32 %v1084, 0.0
  %v1351 = vmax.f32 %v1089, 0.0
  %v1352 = vmax.f32 %v1094, 0.0
  %v1353 = vmax.f32 %v1099, 0.0
  %v1354 = vmax.f32 %v1104, 0.0
  %v1355 = vmax.f32 %v1109, 0.0
  %v1356 = vmax.f32 %v1114, 0.0
  %v1357 = vmax.f32 %v1119, 0.0
  %v1358 = vmax.f32 %v1124, 0.0
  %v1359 = vmax.f32 %v1129, 0.0
  %v1360 = vmax.f32 %v1134, 0.0
  %v1361 = vmax.f32 %v1139, 0.0
  %v1362 = vmax.f32 %v1144, 0.0
  %v1363 = vmax.f32 %v1149, 0.0
  %v1364 = vmax.f32 %v1154, 0.0
  %v1365 = vmax.f32 %v1159, 0.0
  %v1366 = vmax.f32 %v1164, 0.0
  %v1367 = vmax.f32 %v1169, 0.0
  %v1368 = vmax.f32 %v1174, 0.0
  %v1369 = vmax.f32 %v1179, 0.0
  %v1370 = vmax.f32 %v1184, 0.0
  %v1371 = vmax.f32 %v1189, 0.0
  %v1372 = vmax.f32 %v1194, 0.0
  %v1373 = vmax.f32 %v1199, 0.0
  %v1374 = vmax.f32 %v1204, 0.0
  %v1375 = vmax.f32 %v1209, 0.0
  %v1376 = vmax.f32 %v1214, 0.0
  %v1377 = vmax.f32 %v1219, 0.0
  %v1378 = vmax.f32 %v1224, 0.0
  %v1379 = vmax.f32 %v1229, 0.0
  %v1380 = vmax.f32 %v1234, 0.0
  %v1381 = vmax.f32 %v1239, 0.0
  %v1382 = vmax.f32 %v1244, 0.0
  %v1383 = vmax.f32 %v1249, 0.0
  %v1384 = vmax.f32 %v1254, 0.0
  %v1385 = vld [vmem:[%s3] sm:$0xff]
  %v1386 = vld [vmem:[%s3 + $0x8] sm:$0xff]
  %v1387 = vld [vmem:[%s3 + $0x10] sm:$0xff]
  %v1388 = vld [vmem:[%s4] sm:$0x1]
  %v1390 = vlaneseq
  %v1391 = vshrl.u32 %v1390, 7
  %v1392 = vsub.s32 0, %v1391
  %v1393 = vrot.slane %v1388, %v1392
  %vm1395 = vcmask 195584
  %v1397 = vsel %vm1395, %v1257, 0
  %v1400 = vsel %vm1395, %v1258, 0
  %v1403 = vsel %vm1395, %v1259, 0
  %v1406 = vsel %vm1395, %v1260, 0
  %v1409 = vsel %vm1395, %v1261, 0
  %v1412 = vsel %vm1395, %v1262, 0
  %v1415 = vsel %vm1395, %v1263, 0
  %v1418 = vsel %vm1395, %v1264, 0
  %v1421 = vsel %vm1395, %v1265, 0
  %v1424 = vsel %vm1395, %v1266, 0
  %v1427 = vsel %vm1395, %v1267, 0
  %v1430 = vsel %vm1395, %v1268, 0
  %v1433 = vsel %vm1395, %v1269, 0
  %v1436 = vsel %vm1395, %v1270, 0
  %v1439 = vsel %vm1395, %v1271, 0
  %v1442 = vsel %vm1395, %v1272, 0
  %v1445 = vsel %vm1395, %v1273, 0
  %v1448 = vsel %vm1395, %v1274, 0
  %v1451 = vsel %vm1395, %v1275, 0
  %v1454 = vsel %vm1395, %v1276, 0
  %v1457 = vsel %vm1395, %v1277, 0
  %v1460 = vsel %vm1395, %v1278, 0
  %v1463 = vsel %vm1395, %v1279, 0
  %v1466 = vsel %vm1395, %v1280, 0
  %v1469 = vsel %vm1395, %v1281, 0
  %v1472 = vsel %vm1395, %v1282, 0
  %v1475 = vsel %vm1395, %v1283, 0
  %v1478 = vsel %vm1395, %v1284, 0
  %v1481 = vsel %vm1395, %v1285, 0
  %v1484 = vsel %vm1395, %v1286, 0
  %v1487 = vsel %vm1395, %v1287, 0
  %v1490 = vsel %vm1395, %v1288, 0
  %v1493 = vsel %vm1395, %v1289, 0
  %v1496 = vsel %vm1395, %v1290, 0
  %v1499 = vsel %vm1395, %v1291, 0
  %v1502 = vsel %vm1395, %v1292, 0
  %v1505 = vsel %vm1395, %v1293, 0
  %v1508 = vsel %vm1395, %v1294, 0
  %v1511 = vsel %vm1395, %v1295, 0
  %v1514 = vsel %vm1395, %v1296, 0
  %v1517 = vsel %vm1395, %v1297, 0
  %v1520 = vsel %vm1395, %v1298, 0
  %v1523 = vsel %vm1395, %v1299, 0
  %v1526 = vsel %vm1395, %v1300, 0
  %v1529 = vsel %vm1395, %v1301, 0
  %v1532 = vsel %vm1395, %v1302, 0
  %v1535 = vsel %vm1395, %v1303, 0
  %v1538 = vsel %vm1395, %v1304, 0
  %v1541 = vsel %vm1395, %v1305, 0
  %v1544 = vsel %vm1395, %v1306, 0
  %v1547 = vsel %vm1395, %v1307, 0
  %v1550 = vsel %vm1395, %v1308, 0
  %v1553 = vsel %vm1395, %v1309, 0
  %v1556 = vsel %vm1395, %v1310, 0
  %v1559 = vsel %vm1395, %v1311, 0
  %v1562 = vsel %vm1395, %v1312, 0
  %v1565 = vsel %vm1395, %v1313, 0
  %v1568 = vsel %vm1395, %v1314, 0
  %v1571 = vsel %vm1395, %v1315, 0
  %v1574 = vsel %vm1395, %v1316, 0
  %v1577 = vsel %vm1395, %v1317, 0
  %v1580 = vsel %vm1395, %v1318, 0
  %v1583 = vsel %vm1395, %v1319, 0
  %v1586 = vsel %vm1395, %v1320, 0
  %v1589 = vsel %vm1395, %v1321, 0
  %v1592 = vsel %vm1395, %v1322, 0
  %v1595 = vsel %vm1395, %v1323, 0
  %v1598 = vsel %vm1395, %v1324, 0
  %v1601 = vsel %vm1395, %v1325, 0
  %v1604 = vsel %vm1395, %v1326, 0
  %v1607 = vsel %vm1395, %v1327, 0
  %v1610 = vsel %vm1395, %v1328, 0
  %v1613 = vsel %vm1395, %v1329, 0
  %v1616 = vsel %vm1395, %v1330, 0
  %v1619 = vsel %vm1395, %v1331, 0
  %v1622 = vsel %vm1395, %v1332, 0
  %v1625 = vsel %vm1395, %v1333, 0
  %v1628 = vsel %vm1395, %v1334, 0
  %v1631 = vsel %vm1395, %v1335, 0
  %v1634 = vsel %vm1395, %v1336, 0
  %v1637 = vsel %vm1395, %v1337, 0
  %v1640 = vsel %vm1395, %v1338, 0
  %v1643 = vsel %vm1395, %v1339, 0
  %v1646 = vsel %vm1395, %v1340, 0
  %v1649 = vsel %vm1395, %v1341, 0
  %v1652 = vsel %vm1395, %v1342, 0
  %v1655 = vsel %vm1395, %v1343, 0
  %v1658 = vsel %vm1395, %v1344, 0
  %v1661 = vsel %vm1395, %v1345, 0
  %v1664 = vsel %vm1395, %v1346, 0
  %v1667 = vsel %vm1395, %v1347, 0
  %v1670 = vsel %vm1395, %v1348, 0
  %v1673 = vsel %vm1395, %v1349, 0
  %v1676 = vsel %vm1395, %v1350, 0
  %v1679 = vsel %vm1395, %v1351, 0
  %v1682 = vsel %vm1395, %v1352, 0
  %v1685 = vsel %vm1395, %v1353, 0
  %v1688 = vsel %vm1395, %v1354, 0
  %v1691 = vsel %vm1395, %v1355, 0
  %v1694 = vsel %vm1395, %v1356, 0
  %v1697 = vsel %vm1395, %v1357, 0
  %v1700 = vsel %vm1395, %v1358, 0
  %v1703 = vsel %vm1395, %v1359, 0
  %v1706 = vsel %vm1395, %v1360, 0
  %v1709 = vsel %vm1395, %v1361, 0
  %v1712 = vsel %vm1395, %v1362, 0
  %v1715 = vsel %vm1395, %v1363, 0
  %v1718 = vsel %vm1395, %v1364, 0
  %v1721 = vsel %vm1395, %v1365, 0
  %v1724 = vsel %vm1395, %v1366, 0
  %v1727 = vsel %vm1395, %v1367, 0
  %v1730 = vsel %vm1395, %v1368, 0
  %v1733 = vsel %vm1395, %v1369, 0
  %v1736 = vsel %vm1395, %v1370, 0
  %v1739 = vsel %vm1395, %v1371, 0
  %v1742 = vsel %vm1395, %v1372, 0
  %v1745 = vsel %vm1395, %v1373, 0
  %v1748 = vsel %vm1395, %v1374, 0
  %v1751 = vsel %vm1395, %v1375, 0
  %v1754 = vsel %vm1395, %v1376, 0
  %v1757 = vsel %vm1395, %v1377, 0
  %v1760 = vsel %vm1395, %v1378, 0
  %v1763 = vsel %vm1395, %v1379, 0
  %v1766 = vsel %vm1395, %v1380, 0
  %v1769 = vsel %vm1395, %v1381, 0
  %v1772 = vsel %vm1395, %v1382, 0
  %v1775 = vsel %vm1395, %v1383, 0
  %v1778 = vsel %vm1395, %v1384, 0
  %1780 = vmatprep.subr.mxu0 0.0
  %1781 = vmatpush1.msra.mxu0 0.0
  %1782 = vmatprep.subr.mxu0 0.0
  %1783 = vmatpush1.msra.mxu0 0.0
  %1784 = vmatprep.subr.mxu0 0.0
  %1785 = vmatpush1.msra.mxu0 0.0
  %1786 = vmatprep.subr.mxu0 0.0
  %1787 = vmatpush1.msra.mxu0 0.0
  %1788 = vmatprep.subr.mxu0 0.0
  %1789 = vmatpush1.msra.mxu0 0.0
  %1790 = vmatprep.subr.mxu0 0.0
  %1791 = vmatpush1.msra.mxu0 0.0
  %1792 = vmatprep.subr.mxu0 0.0
  %1793 = vmatpush1.msra.mxu0 0.0
  %1794 = vmatprep.subr.mxu0 0.0
  %1795 = vmatpush1.msra.mxu0 0.0
  %1796 = vmatprep.subr.mxu0 0.0
  %1797 = vmatpush1.msra.mxu0 0.0
  %1798 = vmatprep.subr.mxu0 0.0
  %1799 = vmatpush1.msra.mxu0 0.0
  %1800 = vmatprep.subr.mxu0 0.0
  %1801 = vmatpush1.msra.mxu0 0.0
  %1802 = vmatprep.subr.mxu0 0.0
  %1803 = vmatpush1.msra.mxu0 0.0
  %1804 = vmatprep.subr.mxu0 0.0
  %1805 = vmatpush1.msra.mxu0 0.0
  %1806 = vmatprep.subr.mxu0 0.0
  %1807 = vmatpush1.msra.mxu0 %v1387
  %1808 = vmatprep.subr.mxu0 0.0
  %1809 = vmatpush1.msra.mxu0 %v1386
  %1810 = vmatprep.subr.mxu0 0.0
  %1811 = vmatpush1.msra.mxu0 %v1385
  %1812 = vmatprep.subr.mxu0 0.0
  %1813 = vmatpush2.msra.mxu0 0.0
  %1814 = vmatprep.subr.mxu0 0.0
  %1815 = vmatpush2.msra.mxu0 0.0
  %1816 = vmatprep.subr.mxu0 0.0
  %1817 = vmatpush2.msra.mxu0 0.0
  %1818 = vmatprep.subr.mxu0 0.0
  %1819 = vmatpush2.msra.mxu0 0.0
  %1820 = vmatprep.subr.mxu0 0.0
  %1821 = vmatpush2.msra.mxu0 0.0
  %1822 = vmatprep.subr.mxu0 0.0
  %1823 = vmatpush2.msra.mxu0 0.0
  %1824 = vmatprep.subr.mxu0 0.0
  %1825 = vmatpush2.msra.mxu0 0.0
  %1826 = vmatprep.subr.mxu0 0.0
  %1827 = vmatpush2.msra.mxu0 0.0
  %1828 = vmatprep.subr.mxu0 0.0
  %1829 = vmatpush2.msra.mxu0 0.0
  %1830 = vmatprep.subr.mxu0 0.0
  %1831 = vmatpush2.msra.mxu0 0.0
  %1832 = vmatprep.subr.mxu0 0.0
  %1833 = vmatpush2.msra.mxu0 0.0
  %1834 = vmatprep.subr.mxu0 0.0
  %1835 = vmatpush2.msra.mxu0 0.0
  %1836 = vmatprep.subr.mxu0 0.0
  %1837 = vmatpush2.msra.mxu0 0.0
  %1838 = vmatprep.subr.mxu0 0.0
  %1839 = vmatpush2.msra.mxu0 0.0
  %1840 = vmatprep.subr.mxu0 0.0
  %1841 = vmatpush2.msra.mxu0 0.0
  %1842 = vmatprep.subr.mxu0 0.0
  %1843 = vmatpush2.msra.mxu0 0.0
  %1844 = vmatprep.mubr.f32.mxu0 0.0
  %1845 = vmatmul.mubr.f32.gmra.mxu0 %v1397
  %v1846 = vpop.f32.mrf.mxu0
  %v1847 = vadd.f32 %v1393, %v1846
  %v1848 = vpop.f32.mrf.mxu0
  %1849 = vmatprep.mubr.f32.mxu0 0.0
  %1850 = vmatmul.mubr.f32.gmra.mxu0 %v1400
  %v1851 = vpop.f32.mrf.mxu0
  %v1852 = vadd.f32 %v1393, %v1851
  %v1853 = vpop.f32.mrf.mxu0
  %1854 = vmatprep.mubr.f32.mxu0 0.0
  %1855 = vmatmul.mubr.f32.gmra.mxu0 %v1403
  %v1856 = vpop.f32.mrf.mxu0
  %v1857 = vadd.f32 %v1393, %v1856
  %v1858 = vpop.f32.mrf.mxu0
  %1859 = vmatprep.mubr.f32.mxu0 0.0
  %1860 = vmatmul.mubr.f32.gmra.mxu0 %v1406
  %v1861 = vpop.f32.mrf.mxu0
  %v1862 = vadd.f32 %v1393, %v1861
  %v1863 = vpop.f32.mrf.mxu0
  %1864 = vmatprep.mubr.f32.mxu0 0.0
  %1865 = vmatmul.mubr.f32.gmra.mxu0 %v1409
  %v1866 = vpop.f32.mrf.mxu0
  %v1867 = vadd.f32 %v1393, %v1866
  %v1868 = vpop.f32.mrf.mxu0
  %1869 = vmatprep.mubr.f32.mxu0 0.0
  %1870 = vmatmul.mubr.f32.gmra.mxu0 %v1412
  %v1871 = vpop.f32.mrf.mxu0
  %v1872 = vadd.f32 %v1393, %v1871
  %v1873 = vpop.f32.mrf.mxu0
  %1874 = vmatprep.mubr.f32.mxu0 0.0
  %1875 = vmatmul.mubr.f32.gmra.mxu0 %v1415
  %v1876 = vpop.f32.mrf.mxu0
  %v1877 = vadd.f32 %v1393, %v1876
  %v1878 = vpop.f32.mrf.mxu0
  %1879 = vmatprep.mubr.f32.mxu0 0.0
  %1880 = vmatmul.mubr.f32.gmra.mxu0 %v1418
  %v1881 = vpop.f32.mrf.mxu0
  %v1882 = vadd.f32 %v1393, %v1881
  %v1883 = vpop.f32.mrf.mxu0
  %1884 = vmatprep.mubr.f32.mxu0 0.0
  %1885 = vmatmul.mubr.f32.gmra.mxu0 %v1421
  %v1886 = vpop.f32.mrf.mxu0
  %v1887 = vadd.f32 %v1393, %v1886
  %v1888 = vpop.f32.mrf.mxu0
  %1889 = vmatprep.mubr.f32.mxu0 0.0
  %1890 = vmatmul.mubr.f32.gmra.mxu0 %v1424
  %v1891 = vpop.f32.mrf.mxu0
  %v1892 = vadd.f32 %v1393, %v1891
  %v1893 = vpop.f32.mrf.mxu0
  %1894 = vmatprep.mubr.f32.mxu0 0.0
  %1895 = vmatmul.mubr.f32.gmra.mxu0 %v1427
  %v1896 = vpop.f32.mrf.mxu0
  %v1897 = vadd.f32 %v1393, %v1896
  %v1898 = vpop.f32.mrf.mxu0
  %1899 = vmatprep.mubr.f32.mxu0 0.0
  %1900 = vmatmul.mubr.f32.gmra.mxu0 %v1430
  %v1901 = vpop.f32.mrf.mxu0
  %v1902 = vadd.f32 %v1393, %v1901
  %v1903 = vpop.f32.mrf.mxu0
  %1904 = vmatprep.mubr.f32.mxu0 0.0
  %1905 = vmatmul.mubr.f32.gmra.mxu0 %v1433
  %v1906 = vpop.f32.mrf.mxu0
  %v1907 = vadd.f32 %v1393, %v1906
  %v1908 = vpop.f32.mrf.mxu0
  %1909 = vmatprep.mubr.f32.mxu0 0.0
  %1910 = vmatmul.mubr.f32.gmra.mxu0 %v1436
  %v1911 = vpop.f32.mrf.mxu0
  %v1912 = vadd.f32 %v1393, %v1911
  %v1913 = vpop.f32.mrf.mxu0
  %1914 = vmatprep.mubr.f32.mxu0 0.0
  %1915 = vmatmul.mubr.f32.gmra.mxu0 %v1439
  %v1916 = vpop.f32.mrf.mxu0
  %v1917 = vadd.f32 %v1393, %v1916
  %v1918 = vpop.f32.mrf.mxu0
  %1919 = vmatprep.mubr.f32.mxu0 0.0
  %1920 = vmatmul.mubr.f32.gmra.mxu0 %v1442
  %v1921 = vpop.f32.mrf.mxu0
  %v1922 = vadd.f32 %v1393, %v1921
  %v1923 = vpop.f32.mrf.mxu0
  %1924 = vmatprep.mubr.f32.mxu0 0.0
  %1925 = vmatmul.mubr.f32.gmra.mxu0 %v1445
  %v1926 = vpop.f32.mrf.mxu0
  %v1927 = vadd.f32 %v1393, %v1926
  %v1928 = vpop.f32.mrf.mxu0
  %1929 = vmatprep.mubr.f32.mxu0 0.0
  %1930 = vmatmul.mubr.f32.gmra.mxu0 %v1448
  %v1931 = vpop.f32.mrf.mxu0
  %v1932 = vadd.f32 %v1393, %v1931
  %v1933 = vpop.f32.mrf.mxu0
  %1934 = vmatprep.mubr.f32.mxu0 0.0
  %1935 = vmatmul.mubr.f32.gmra.mxu0 %v1451
  %v1936 = vpop.f32.mrf.mxu0
  %v1937 = vadd.f32 %v1393, %v1936
  %v1938 = vpop.f32.mrf.mxu0
  %1939 = vmatprep.mubr.f32.mxu0 0.0
  %1940 = vmatmul.mubr.f32.gmra.mxu0 %v1454
  %v1941 = vpop.f32.mrf.mxu0
  %v1942 = vadd.f32 %v1393, %v1941
  %v1943 = vpop.f32.mrf.mxu0
  %1944 = vmatprep.mubr.f32.mxu0 0.0
  %1945 = vmatmul.mubr.f32.gmra.mxu0 %v1457
  %v1946 = vpop.f32.mrf.mxu0
  %v1947 = vadd.f32 %v1393, %v1946
  %v1948 = vpop.f32.mrf.mxu0
  %1949 = vmatprep.mubr.f32.mxu0 0.0
  %1950 = vmatmul.mubr.f32.gmra.mxu0 %v1460
  %v1951 = vpop.f32.mrf.mxu0
  %v1952 = vadd.f32 %v1393, %v1951
  %v1953 = vpop.f32.mrf.mxu0
  %1954 = vmatprep.mubr.f32.mxu0 0.0
  %1955 = vmatmul.mubr.f32.gmra.mxu0 %v1463
  %v1956 = vpop.f32.mrf.mxu0
  %v1957 = vadd.f32 %v1393, %v1956
  %v1958 = vpop.f32.mrf.mxu0
  %1959 = vmatprep.mubr.f32.mxu0 0.0
  %1960 = vmatmul.mubr.f32.gmra.mxu0 %v1466
  %v1961 = vpop.f32.mrf.mxu0
  %v1962 = vadd.f32 %v1393, %v1961
  %v1963 = vpop.f32.mrf.mxu0
  %1964 = vmatprep.mubr.f32.mxu0 0.0
  %1965 = vmatmul.mubr.f32.gmra.mxu0 %v1469
  %v1966 = vpop.f32.mrf.mxu0
  %v1967 = vadd.f32 %v1393, %v1966
  %v1968 = vpop.f32.mrf.mxu0
  %1969 = vmatprep.mubr.f32.mxu0 0.0
  %1970 = vmatmul.mubr.f32.gmra.mxu0 %v1472
  %v1971 = vpop.f32.mrf.mxu0
  %v1972 = vadd.f32 %v1393, %v1971
  %v1973 = vpop.f32.mrf.mxu0
  %1974 = vmatprep.mubr.f32.mxu0 0.0
  %1975 = vmatmul.mubr.f32.gmra.mxu0 %v1475
  %v1976 = vpop.f32.mrf.mxu0
  %v1977 = vadd.f32 %v1393, %v1976
  %v1978 = vpop.f32.mrf.mxu0
  %1979 = vmatprep.mubr.f32.mxu0 0.0
  %1980 = vmatmul.mubr.f32.gmra.mxu0 %v1478
  %v1981 = vpop.f32.mrf.mxu0
  %v1982 = vadd.f32 %v1393, %v1981
  %v1983 = vpop.f32.mrf.mxu0
  %1984 = vmatprep.mubr.f32.mxu0 0.0
  %1985 = vmatmul.mubr.f32.gmra.mxu0 %v1481
  %v1986 = vpop.f32.mrf.mxu0
  %v1987 = vadd.f32 %v1393, %v1986
  %v1988 = vpop.f32.mrf.mxu0
  %1989 = vmatprep.mubr.f32.mxu0 0.0
  %1990 = vmatmul.mubr.f32.gmra.mxu0 %v1484
  %v1991 = vpop.f32.mrf.mxu0
  %v1992 = vadd.f32 %v1393, %v1991
  %v1993 = vpop.f32.mrf.mxu0
  %1994 = vmatprep.mubr.f32.mxu0 0.0
  %1995 = vmatmul.mubr.f32.gmra.mxu0 %v1487
  %v1996 = vpop.f32.mrf.mxu0
  %v1997 = vadd.f32 %v1393, %v1996
  %v1998 = vpop.f32.mrf.mxu0
  %1999 = vmatprep.mubr.f32.mxu0 0.0
  %2000 = vmatmul.mubr.f32.gmra.mxu0 %v1490
  %v2001 = vpop.f32.mrf.mxu0
  %v2002 = vadd.f32 %v1393, %v2001
  %v2003 = vpop.f32.mrf.mxu0
  %2004 = vmatprep.mubr.f32.mxu0 0.0
  %2005 = vmatmul.mubr.f32.gmra.mxu0 %v1493
  %v2006 = vpop.f32.mrf.mxu0
  %v2007 = vadd.f32 %v1393, %v2006
  %v2008 = vpop.f32.mrf.mxu0
  %2009 = vmatprep.mubr.f32.mxu0 0.0
  %2010 = vmatmul.mubr.f32.gmra.mxu0 %v1496
  %v2011 = vpop.f32.mrf.mxu0
  %v2012 = vadd.f32 %v1393, %v2011
  %v2013 = vpop.f32.mrf.mxu0
  %2014 = vmatprep.mubr.f32.mxu0 0.0
  %2015 = vmatmul.mubr.f32.gmra.mxu0 %v1499
  %v2016 = vpop.f32.mrf.mxu0
  %v2017 = vadd.f32 %v1393, %v2016
  %v2018 = vpop.f32.mrf.mxu0
  %2019 = vmatprep.mubr.f32.mxu0 0.0
  %2020 = vmatmul.mubr.f32.gmra.mxu0 %v1502
  %v2021 = vpop.f32.mrf.mxu0
  %v2022 = vadd.f32 %v1393, %v2021
  %v2023 = vpop.f32.mrf.mxu0
  %2024 = vmatprep.mubr.f32.mxu0 0.0
  %2025 = vmatmul.mubr.f32.gmra.mxu0 %v1505
  %v2026 = vpop.f32.mrf.mxu0
  %v2027 = vadd.f32 %v1393, %v2026
  %v2028 = vpop.f32.mrf.mxu0
  %2029 = vmatprep.mubr.f32.mxu0 0.0
  %2030 = vmatmul.mubr.f32.gmra.mxu0 %v1508
  %v2031 = vpop.f32.mrf.mxu0
  %v2032 = vadd.f32 %v1393, %v2031
  %v2033 = vpop.f32.mrf.mxu0
  %2034 = vmatprep.mubr.f32.mxu0 0.0
  %2035 = vmatmul.mubr.f32.gmra.mxu0 %v1511
  %v2036 = vpop.f32.mrf.mxu0
  %v2037 = vadd.f32 %v1393, %v2036
  %v2038 = vpop.f32.mrf.mxu0
  %2039 = vmatprep.mubr.f32.mxu0 0.0
  %2040 = vmatmul.mubr.f32.gmra.mxu0 %v1514
  %v2041 = vpop.f32.mrf.mxu0
  %v2042 = vadd.f32 %v1393, %v2041
  %v2043 = vpop.f32.mrf.mxu0
  %2044 = vmatprep.mubr.f32.mxu0 0.0
  %2045 = vmatmul.mubr.f32.gmra.mxu0 %v1517
  %v2046 = vpop.f32.mrf.mxu0
  %v2047 = vadd.f32 %v1393, %v2046
  %v2048 = vpop.f32.mrf.mxu0
  %2049 = vmatprep.mubr.f32.mxu0 0.0
  %2050 = vmatmul.mubr.f32.gmra.mxu0 %v1520
  %v2051 = vpop.f32.mrf.mxu0
  %v2052 = vadd.f32 %v1393, %v2051
  %v2053 = vpop.f32.mrf.mxu0
  %2054 = vmatprep.mubr.f32.mxu0 0.0
  %2055 = vmatmul.mubr.f32.gmra.mxu0 %v1523
  %v2056 = vpop.f32.mrf.mxu0
  %v2057 = vadd.f32 %v1393, %v2056
  %v2058 = vpop.f32.mrf.mxu0
  %2059 = vmatprep.mubr.f32.mxu0 0.0
  %2060 = vmatmul.mubr.f32.gmra.mxu0 %v1526
  %v2061 = vpop.f32.mrf.mxu0
  %v2062 = vadd.f32 %v1393, %v2061
  %v2063 = vpop.f32.mrf.mxu0
  %2064 = vmatprep.mubr.f32.mxu0 0.0
  %2065 = vmatmul.mubr.f32.gmra.mxu0 %v1529
  %v2066 = vpop.f32.mrf.mxu0
  %v2067 = vadd.f32 %v1393, %v2066
  %v2068 = vpop.f32.mrf.mxu0
  %2069 = vmatprep.mubr.f32.mxu0 0.0
  %2070 = vmatmul.mubr.f32.gmra.mxu0 %v1532
  %v2071 = vpop.f32.mrf.mxu0
  %v2072 = vadd.f32 %v1393, %v2071
  %v2073 = vpop.f32.mrf.mxu0
  %2074 = vmatprep.mubr.f32.mxu0 0.0
  %2075 = vmatmul.mubr.f32.gmra.mxu0 %v1535
  %v2076 = vpop.f32.mrf.mxu0
  %v2077 = vadd.f32 %v1393, %v2076
  %v2078 = vpop.f32.mrf.mxu0
  %2079 = vmatprep.mubr.f32.mxu0 0.0
  %2080 = vmatmul.mubr.f32.gmra.mxu0 %v1538
  %v2081 = vpop.f32.mrf.mxu0
  %v2082 = vadd.f32 %v1393, %v2081
  %v2083 = vpop.f32.mrf.mxu0
  %2084 = vmatprep.mubr.f32.mxu0 0.0
  %2085 = vmatmul.mubr.f32.gmra.mxu0 %v1541
  %v2086 = vpop.f32.mrf.mxu0
  %v2087 = vadd.f32 %v1393, %v2086
  %v2088 = vpop.f32.mrf.mxu0
  %2089 = vmatprep.mubr.f32.mxu0 0.0
  %2090 = vmatmul.mubr.f32.gmra.mxu0 %v1544
  %v2091 = vpop.f32.mrf.mxu0
  %v2092 = vadd.f32 %v1393, %v2091
  %v2093 = vpop.f32.mrf.mxu0
  %2094 = vmatprep.mubr.f32.mxu0 0.0
  %2095 = vmatmul.mubr.f32.gmra.mxu0 %v1547
  %v2096 = vpop.f32.mrf.mxu0
  %v2097 = vadd.f32 %v1393, %v2096
  %v2098 = vpop.f32.mrf.mxu0
  %2099 = vmatprep.mubr.f32.mxu0 0.0
  %2100 = vmatmul.mubr.f32.gmra.mxu0 %v1550
  %v2101 = vpop.f32.mrf.mxu0
  %v2102 = vadd.f32 %v1393, %v2101
  %v2103 = vpop.f32.mrf.mxu0
  %2104 = vmatprep.mubr.f32.mxu0 0.0
  %2105 = vmatmul.mubr.f32.gmra.mxu0 %v1553
  %v2106 = vpop.f32.mrf.mxu0
  %v2107 = vadd.f32 %v1393, %v2106
  %v2108 = vpop.f32.mrf.mxu0
  %2109 = vmatprep.mubr.f32.mxu0 0.0
  %2110 = vmatmul.mubr.f32.gmra.mxu0 %v1556
  %v2111 = vpop.f32.mrf.mxu0
  %v2112 = vadd.f32 %v1393, %v2111
  %v2113 = vpop.f32.mrf.mxu0
  %2114 = vmatprep.mubr.f32.mxu0 0.0
  %2115 = vmatmul.mubr.f32.gmra.mxu0 %v1559
  %v2116 = vpop.f32.mrf.mxu0
  %v2117 = vadd.f32 %v1393, %v2116
  %v2118 = vpop.f32.mrf.mxu0
  %2119 = vmatprep.mubr.f32.mxu0 0.0
  %2120 = vmatmul.mubr.f32.gmra.mxu0 %v1562
  %v2121 = vpop.f32.mrf.mxu0
  %v2122 = vadd.f32 %v1393, %v2121
  %v2123 = vpop.f32.mrf.mxu0
  %2124 = vmatprep.mubr.f32.mxu0 0.0
  %2125 = vmatmul.mubr.f32.gmra.mxu0 %v1565
  %v2126 = vpop.f32.mrf.mxu0
  %v2127 = vadd.f32 %v1393, %v2126
  %v2128 = vpop.f32.mrf.mxu0
  %2129 = vmatprep.mubr.f32.mxu0 0.0
  %2130 = vmatmul.mubr.f32.gmra.mxu0 %v1568
  %v2131 = vpop.f32.mrf.mxu0
  %v2132 = vadd.f32 %v1393, %v2131
  %v2133 = vpop.f32.mrf.mxu0
  %2134 = vmatprep.mubr.f32.mxu0 0.0
  %2135 = vmatmul.mubr.f32.gmra.mxu0 %v1571
  %v2136 = vpop.f32.mrf.mxu0
  %v2137 = vadd.f32 %v1393, %v2136
  %v2138 = vpop.f32.mrf.mxu0
  %2139 = vmatprep.mubr.f32.mxu0 0.0
  %2140 = vmatmul.mubr.f32.gmra.mxu0 %v1574
  %v2141 = vpop.f32.mrf.mxu0
  %v2142 = vadd.f32 %v1393, %v2141
  %v2143 = vpop.f32.mrf.mxu0
  %2144 = vmatprep.mubr.f32.mxu0 0.0
  %2145 = vmatmul.mubr.f32.gmra.mxu0 %v1577
  %v2146 = vpop.f32.mrf.mxu0
  %v2147 = vadd.f32 %v1393, %v2146
  %v2148 = vpop.f32.mrf.mxu0
  %2149 = vmatprep.mubr.f32.mxu0 0.0
  %2150 = vmatmul.mubr.f32.gmra.mxu0 %v1580
  %v2151 = vpop.f32.mrf.mxu0
  %v2152 = vadd.f32 %v1393, %v2151
  %v2153 = vpop.f32.mrf.mxu0
  %2154 = vmatprep.mubr.f32.mxu0 0.0
  %2155 = vmatmul.mubr.f32.gmra.mxu0 %v1583
  %v2156 = vpop.f32.mrf.mxu0
  %v2157 = vadd.f32 %v1393, %v2156
  %v2158 = vpop.f32.mrf.mxu0
  %2159 = vmatprep.mubr.f32.mxu0 0.0
  %2160 = vmatmul.mubr.f32.gmra.mxu0 %v1586
  %v2161 = vpop.f32.mrf.mxu0
  %v2162 = vadd.f32 %v1393, %v2161
  %v2163 = vpop.f32.mrf.mxu0
  %2164 = vmatprep.mubr.f32.mxu0 0.0
  %2165 = vmatmul.mubr.f32.gmra.mxu0 %v1589
  %v2166 = vpop.f32.mrf.mxu0
  %v2167 = vadd.f32 %v1393, %v2166
  %v2168 = vpop.f32.mrf.mxu0
  %2169 = vmatprep.mubr.f32.mxu0 0.0
  %2170 = vmatmul.mubr.f32.gmra.mxu0 %v1592
  %v2171 = vpop.f32.mrf.mxu0
  %v2172 = vadd.f32 %v1393, %v2171
  %v2173 = vpop.f32.mrf.mxu0
  %2174 = vmatprep.mubr.f32.mxu0 0.0
  %2175 = vmatmul.mubr.f32.gmra.mxu0 %v1595
  %v2176 = vpop.f32.mrf.mxu0
  %v2177 = vadd.f32 %v1393, %v2176
  %v2178 = vpop.f32.mrf.mxu0
  %2179 = vmatprep.mubr.f32.mxu0 0.0
  %2180 = vmatmul.mubr.f32.gmra.mxu0 %v1598
  %v2181 = vpop.f32.mrf.mxu0
  %v2182 = vadd.f32 %v1393, %v2181
  %v2183 = vpop.f32.mrf.mxu0
  %2184 = vmatprep.mubr.f32.mxu0 0.0
  %2185 = vmatmul.mubr.f32.gmra.mxu0 %v1601
  %v2186 = vpop.f32.mrf.mxu0
  %v2187 = vadd.f32 %v1393, %v2186
  %v2188 = vpop.f32.mrf.mxu0
  %2189 = vmatprep.mubr.f32.mxu0 0.0
  %2190 = vmatmul.mubr.f32.gmra.mxu0 %v1604
  %v2191 = vpop.f32.mrf.mxu0
  %v2192 = vadd.f32 %v1393, %v2191
  %v2193 = vpop.f32.mrf.mxu0
  %2194 = vmatprep.mubr.f32.mxu0 0.0
  %2195 = vmatmul.mubr.f32.gmra.mxu0 %v1607
  %v2196 = vpop.f32.mrf.mxu0
  %v2197 = vadd.f32 %v1393, %v2196
  %v2198 = vpop.f32.mrf.mxu0
  %2199 = vmatprep.mubr.f32.mxu0 0.0
  %2200 = vmatmul.mubr.f32.gmra.mxu0 %v1610
  %v2201 = vpop.f32.mrf.mxu0
  %v2202 = vadd.f32 %v1393, %v2201
  %v2203 = vpop.f32.mrf.mxu0
  %2204 = vmatprep.mubr.f32.mxu0 0.0
  %2205 = vmatmul.mubr.f32.gmra.mxu0 %v1613
  %v2206 = vpop.f32.mrf.mxu0
  %v2207 = vadd.f32 %v1393, %v2206
  %v2208 = vpop.f32.mrf.mxu0
  %2209 = vmatprep.mubr.f32.mxu0 0.0
  %2210 = vmatmul.mubr.f32.gmra.mxu0 %v1616
  %v2211 = vpop.f32.mrf.mxu0
  %v2212 = vadd.f32 %v1393, %v2211
  %v2213 = vpop.f32.mrf.mxu0
  %2214 = vmatprep.mubr.f32.mxu0 0.0
  %2215 = vmatmul.mubr.f32.gmra.mxu0 %v1619
  %v2216 = vpop.f32.mrf.mxu0
  %v2217 = vadd.f32 %v1393, %v2216
  %v2218 = vpop.f32.mrf.mxu0
  %2219 = vmatprep.mubr.f32.mxu0 0.0
  %2220 = vmatmul.mubr.f32.gmra.mxu0 %v1622
  %v2221 = vpop.f32.mrf.mxu0
  %v2222 = vadd.f32 %v1393, %v2221
  %v2223 = vpop.f32.mrf.mxu0
  %2224 = vmatprep.mubr.f32.mxu0 0.0
  %2225 = vmatmul.mubr.f32.gmra.mxu0 %v1625
  %v2226 = vpop.f32.mrf.mxu0
  %v2227 = vadd.f32 %v1393, %v2226
  %v2228 = vpop.f32.mrf.mxu0
  %2229 = vmatprep.mubr.f32.mxu0 0.0
  %2230 = vmatmul.mubr.f32.gmra.mxu0 %v1628
  %v2231 = vpop.f32.mrf.mxu0
  %v2232 = vadd.f32 %v1393, %v2231
  %v2233 = vpop.f32.mrf.mxu0
  %2234 = vmatprep.mubr.f32.mxu0 0.0
  %2235 = vmatmul.mubr.f32.gmra.mxu0 %v1631
  %v2236 = vpop.f32.mrf.mxu0
  %v2237 = vadd.f32 %v1393, %v2236
  %v2238 = vpop.f32.mrf.mxu0
  %2239 = vmatprep.mubr.f32.mxu0 0.0
  %2240 = vmatmul.mubr.f32.gmra.mxu0 %v1634
  %v2241 = vpop.f32.mrf.mxu0
  %v2242 = vadd.f32 %v1393, %v2241
  %v2243 = vpop.f32.mrf.mxu0
  %2244 = vmatprep.mubr.f32.mxu0 0.0
  %2245 = vmatmul.mubr.f32.gmra.mxu0 %v1637
  %v2246 = vpop.f32.mrf.mxu0
  %v2247 = vadd.f32 %v1393, %v2246
  %v2248 = vpop.f32.mrf.mxu0
  %2249 = vmatprep.mubr.f32.mxu0 0.0
  %2250 = vmatmul.mubr.f32.gmra.mxu0 %v1640
  %v2251 = vpop.f32.mrf.mxu0
  %v2252 = vadd.f32 %v1393, %v2251
  %v2253 = vpop.f32.mrf.mxu0
  %2254 = vmatprep.mubr.f32.mxu0 0.0
  %2255 = vmatmul.mubr.f32.gmra.mxu0 %v1643
  %v2256 = vpop.f32.mrf.mxu0
  %v2257 = vadd.f32 %v1393, %v2256
  %v2258 = vpop.f32.mrf.mxu0
  %2259 = vmatprep.mubr.f32.mxu0 0.0
  %2260 = vmatmul.mubr.f32.gmra.mxu0 %v1646
  %v2261 = vpop.f32.mrf.mxu0
  %v2262 = vadd.f32 %v1393, %v2261
  %v2263 = vpop.f32.mrf.mxu0
  %2264 = vmatprep.mubr.f32.mxu0 0.0
  %2265 = vmatmul.mubr.f32.gmra.mxu0 %v1649
  %v2266 = vpop.f32.mrf.mxu0
  %v2267 = vadd.f32 %v1393, %v2266
  %v2268 = vpop.f32.mrf.mxu0
  %2269 = vmatprep.mubr.f32.mxu0 0.0
  %2270 = vmatmul.mubr.f32.gmra.mxu0 %v1652
  %v2271 = vpop.f32.mrf.mxu0
  %v2272 = vadd.f32 %v1393, %v2271
  %v2273 = vpop.f32.mrf.mxu0
  %2274 = vmatprep.mubr.f32.mxu0 0.0
  %2275 = vmatmul.mubr.f32.gmra.mxu0 %v1655
  %v2276 = vpop.f32.mrf.mxu0
  %v2277 = vadd.f32 %v1393, %v2276
  %v2278 = vpop.f32.mrf.mxu0
  %2279 = vmatprep.mubr.f32.mxu0 0.0
  %2280 = vmatmul.mubr.f32.gmra.mxu0 %v1658
  %v2281 = vpop.f32.mrf.mxu0
  %v2282 = vadd.f32 %v1393, %v2281
  %v2283 = vpop.f32.mrf.mxu0
  %2284 = vmatprep.mubr.f32.mxu0 0.0
  %2285 = vmatmul.mubr.f32.gmra.mxu0 %v1661
  %v2286 = vpop.f32.mrf.mxu0
  %v2287 = vadd.f32 %v1393, %v2286
  %v2288 = vpop.f32.mrf.mxu0
  %2289 = vmatprep.mubr.f32.mxu0 0.0
  %2290 = vmatmul.mubr.f32.gmra.mxu0 %v1664
  %v2291 = vpop.f32.mrf.mxu0
  %v2292 = vadd.f32 %v1393, %v2291
  %v2293 = vpop.f32.mrf.mxu0
  %2294 = vmatprep.mubr.f32.mxu0 0.0
  %2295 = vmatmul.mubr.f32.gmra.mxu0 %v1667
  %v2296 = vpop.f32.mrf.mxu0
  %v2297 = vadd.f32 %v1393, %v2296
  %v2298 = vpop.f32.mrf.mxu0
  %2299 = vmatprep.mubr.f32.mxu0 0.0
  %2300 = vmatmul.mubr.f32.gmra.mxu0 %v1670
  %v2301 = vpop.f32.mrf.mxu0
  %v2302 = vadd.f32 %v1393, %v2301
  %v2303 = vpop.f32.mrf.mxu0
  %2304 = vmatprep.mubr.f32.mxu0 0.0
  %2305 = vmatmul.mubr.f32.gmra.mxu0 %v1673
  %v2306 = vpop.f32.mrf.mxu0
  %v2307 = vadd.f32 %v1393, %v2306
  %v2308 = vpop.f32.mrf.mxu0
  %2309 = vmatprep.mubr.f32.mxu0 0.0
  %2310 = vmatmul.mubr.f32.gmra.mxu0 %v1676
  %v2311 = vpop.f32.mrf.mxu0
  %v2312 = vadd.f32 %v1393, %v2311
  %v2313 = vpop.f32.mrf.mxu0
  %2314 = vmatprep.mubr.f32.mxu0 0.0
  %2315 = vmatmul.mubr.f32.gmra.mxu0 %v1679
  %v2316 = vpop.f32.mrf.mxu0
  %v2317 = vadd.f32 %v1393, %v2316
  %v2318 = vpop.f32.mrf.mxu0
  %2319 = vmatprep.mubr.f32.mxu0 0.0
  %2320 = vmatmul.mubr.f32.gmra.mxu0 %v1682
  %v2321 = vpop.f32.mrf.mxu0
  %v2322 = vadd.f32 %v1393, %v2321
  %v2323 = vpop.f32.mrf.mxu0
  %2324 = vmatprep.mubr.f32.mxu0 0.0
  %2325 = vmatmul.mubr.f32.gmra.mxu0 %v1685
  %v2326 = vpop.f32.mrf.mxu0
  %v2327 = vadd.f32 %v1393, %v2326
  %v2328 = vpop.f32.mrf.mxu0
  %2329 = vmatprep.mubr.f32.mxu0 0.0
  %2330 = vmatmul.mubr.f32.gmra.mxu0 %v1688
  %v2331 = vpop.f32.mrf.mxu0
  %v2332 = vadd.f32 %v1393, %v2331
  %v2333 = vpop.f32.mrf.mxu0
  %2334 = vmatprep.mubr.f32.mxu0 0.0
  %2335 = vmatmul.mubr.f32.gmra.mxu0 %v1691
  %v2336 = vpop.f32.mrf.mxu0
  %v2337 = vadd.f32 %v1393, %v2336
  %v2338 = vpop.f32.mrf.mxu0
  %2339 = vmatprep.mubr.f32.mxu0 0.0
  %2340 = vmatmul.mubr.f32.gmra.mxu0 %v1694
  %v2341 = vpop.f32.mrf.mxu0
  %v2342 = vadd.f32 %v1393, %v2341
  %v2343 = vpop.f32.mrf.mxu0
  %2344 = vmatprep.mubr.f32.mxu0 0.0
  %2345 = vmatmul.mubr.f32.gmra.mxu0 %v1697
  %v2346 = vpop.f32.mrf.mxu0
  %v2347 = vadd.f32 %v1393, %v2346
  %v2348 = vpop.f32.mrf.mxu0
  %2349 = vmatprep.mubr.f32.mxu0 0.0
  %2350 = vmatmul.mubr.f32.gmra.mxu0 %v1700
  %v2351 = vpop.f32.mrf.mxu0
  %v2352 = vadd.f32 %v1393, %v2351
  %v2353 = vpop.f32.mrf.mxu0
  %2354 = vmatprep.mubr.f32.mxu0 0.0
  %2355 = vmatmul.mubr.f32.gmra.mxu0 %v1703
  %v2356 = vpop.f32.mrf.mxu0
  %v2357 = vadd.f32 %v1393, %v2356
  %v2358 = vpop.f32.mrf.mxu0
  %2359 = vmatprep.mubr.f32.mxu0 0.0
  %2360 = vmatmul.mubr.f32.gmra.mxu0 %v1706
  %v2361 = vpop.f32.mrf.mxu0
  %v2362 = vadd.f32 %v1393, %v2361
  %v2363 = vpop.f32.mrf.mxu0
  %2364 = vmatprep.mubr.f32.mxu0 0.0
  %2365 = vmatmul.mubr.f32.gmra.mxu0 %v1709
  %v2366 = vpop.f32.mrf.mxu0
  %v2367 = vadd.f32 %v1393, %v2366
  %v2368 = vpop.f32.mrf.mxu0
  %2369 = vmatprep.mubr.f32.mxu0 0.0
  %2370 = vmatmul.mubr.f32.gmra.mxu0 %v1712
  %v2371 = vpop.f32.mrf.mxu0
  %v2372 = vadd.f32 %v1393, %v2371
  %v2373 = vpop.f32.mrf.mxu0
  %2374 = vmatprep.mubr.f32.mxu0 0.0
  %2375 = vmatmul.mubr.f32.gmra.mxu0 %v1715
  %v2376 = vpop.f32.mrf.mxu0
  %v2377 = vadd.f32 %v1393, %v2376
  %v2378 = vpop.f32.mrf.mxu0
  %2379 = vmatprep.mubr.f32.mxu0 0.0
  %2380 = vmatmul.mubr.f32.gmra.mxu0 %v1718
  %v2381 = vpop.f32.mrf.mxu0
  %v2382 = vadd.f32 %v1393, %v2381
  %v2383 = vpop.f32.mrf.mxu0
  %2384 = vmatprep.mubr.f32.mxu0 0.0
  %2385 = vmatmul.mubr.f32.gmra.mxu0 %v1721
  %v2386 = vpop.f32.mrf.mxu0
  %v2387 = vadd.f32 %v1393, %v2386
  %v2388 = vpop.f32.mrf.mxu0
  %2389 = vmatprep.mubr.f32.mxu0 0.0
  %2390 = vmatmul.mubr.f32.gmra.mxu0 %v1724
  %v2391 = vpop.f32.mrf.mxu0
  %v2392 = vadd.f32 %v1393, %v2391
  %v2393 = vpop.f32.mrf.mxu0
  %2394 = vmatprep.mubr.f32.mxu0 0.0
  %2395 = vmatmul.mubr.f32.gmra.mxu0 %v1727
  %v2396 = vpop.f32.mrf.mxu0
  %v2397 = vadd.f32 %v1393, %v2396
  %v2398 = vpop.f32.mrf.mxu0
  %2399 = vmatprep.mubr.f32.mxu0 0.0
  %2400 = vmatmul.mubr.f32.gmra.mxu0 %v1730
  %v2401 = vpop.f32.mrf.mxu0
  %v2402 = vadd.f32 %v1393, %v2401
  %v2403 = vpop.f32.mrf.mxu0
  %2404 = vmatprep.mubr.f32.mxu0 0.0
  %2405 = vmatmul.mubr.f32.gmra.mxu0 %v1733
  %v2406 = vpop.f32.mrf.mxu0
  %v2407 = vadd.f32 %v1393, %v2406
  %v2408 = vpop.f32.mrf.mxu0
  %2409 = vmatprep.mubr.f32.mxu0 0.0
  %2410 = vmatmul.mubr.f32.gmra.mxu0 %v1736
  %v2411 = vpop.f32.mrf.mxu0
  %v2412 = vadd.f32 %v1393, %v2411
  %v2413 = vpop.f32.mrf.mxu0
  %2414 = vmatprep.mubr.f32.mxu0 0.0
  %2415 = vmatmul.mubr.f32.gmra.mxu0 %v1739
  %v2416 = vpop.f32.mrf.mxu0
  %v2417 = vadd.f32 %v1393, %v2416
  %v2418 = vpop.f32.mrf.mxu0
  %2419 = vmatprep.mubr.f32.mxu0 0.0
  %2420 = vmatmul.mubr.f32.gmra.mxu0 %v1742
  %v2421 = vpop.f32.mrf.mxu0
  %v2422 = vadd.f32 %v1393, %v2421
  %v2423 = vpop.f32.mrf.mxu0
  %2424 = vmatprep.mubr.f32.mxu0 0.0
  %2425 = vmatmul.mubr.f32.gmra.mxu0 %v1745
  %v2426 = vpop.f32.mrf.mxu0
  %v2427 = vadd.f32 %v1393, %v2426
  %v2428 = vpop.f32.mrf.mxu0
  %2429 = vmatprep.mubr.f32.mxu0 0.0
  %2430 = vmatmul.mubr.f32.gmra.mxu0 %v1748
  %v2431 = vpop.f32.mrf.mxu0
  %v2432 = vadd.f32 %v1393, %v2431
  %v2433 = vpop.f32.mrf.mxu0
  %2434 = vmatprep.mubr.f32.mxu0 0.0
  %2435 = vmatmul.mubr.f32.gmra.mxu0 %v1751
  %v2436 = vpop.f32.mrf.mxu0
  %v2437 = vadd.f32 %v1393, %v2436
  %v2438 = vpop.f32.mrf.mxu0
  %2439 = vmatprep.mubr.f32.mxu0 0.0
  %2440 = vmatmul.mubr.f32.gmra.mxu0 %v1754
  %v2441 = vpop.f32.mrf.mxu0
  %v2442 = vadd.f32 %v1393, %v2441
  %v2443 = vpop.f32.mrf.mxu0
  %2444 = vmatprep.mubr.f32.mxu0 0.0
  %2445 = vmatmul.mubr.f32.gmra.mxu0 %v1757
  %v2446 = vpop.f32.mrf.mxu0
  %v2447 = vadd.f32 %v1393, %v2446
  %v2448 = vpop.f32.mrf.mxu0
  %2449 = vmatprep.mubr.f32.mxu0 0.0
  %2450 = vmatmul.mubr.f32.gmra.mxu0 %v1760
  %v2451 = vpop.f32.mrf.mxu0
  %v2452 = vadd.f32 %v1393, %v2451
  %v2453 = vpop.f32.mrf.mxu0
  %2454 = vmatprep.mubr.f32.mxu0 0.0
  %2455 = vmatmul.mubr.f32.gmra.mxu0 %v1763
  %v2456 = vpop.f32.mrf.mxu0
  %v2457 = vadd.f32 %v1393, %v2456
  %v2458 = vpop.f32.mrf.mxu0
  %2459 = vmatprep.mubr.f32.mxu0 0.0
  %2460 = vmatmul.mubr.f32.gmra.mxu0 %v1766
  %v2461 = vpop.f32.mrf.mxu0
  %v2462 = vadd.f32 %v1393, %v2461
  %v2463 = vpop.f32.mrf.mxu0
  %2464 = vmatprep.mubr.f32.mxu0 0.0
  %2465 = vmatmul.mubr.f32.gmra.mxu0 %v1769
  %v2466 = vpop.f32.mrf.mxu0
  %v2467 = vadd.f32 %v1393, %v2466
  %v2468 = vpop.f32.mrf.mxu0
  %2469 = vmatprep.mubr.f32.mxu0 0.0
  %2470 = vmatmul.mubr.f32.gmra.mxu0 %v1772
  %v2471 = vpop.f32.mrf.mxu0
  %v2472 = vadd.f32 %v1393, %v2471
  %v2473 = vpop.f32.mrf.mxu0
  %2474 = vmatprep.mubr.f32.mxu0 0.0
  %2475 = vmatmul.mubr.f32.gmra.mxu0 %v1775
  %v2476 = vpop.f32.mrf.mxu0
  %v2477 = vadd.f32 %v1393, %v2476
  %v2478 = vpop.f32.mrf.mxu0
  %2479 = vmatprep.mubr.f32.mxu0 0.0
  %2480 = vmatmul.mubr.f32.gmra.mxu0 %v1778
  %v2481 = vpop.f32.mrf.mxu0
  %v2482 = vadd.f32 %v1393, %v2481
  %v2483 = vpop.f32.mrf.mxu0
  %2484 = vdwg.mxu0
  %v2485 = vmax.f32 %v1847, 0.0
  %v2486 = vmax.f32 %v1852, 0.0
  %v2487 = vmax.f32 %v1857, 0.0
  %v2488 = vmax.f32 %v1862, 0.0
  %v2489 = vmax.f32 %v1867, 0.0
  %v2490 = vmax.f32 %v1872, 0.0
  %v2491 = vmax.f32 %v1877, 0.0
  %v2492 = vmax.f32 %v1882, 0.0
  %v2493 = vmax.f32 %v1887, 0.0
  %v2494 = vmax.f32 %v1892, 0.0
  %v2495 = vmax.f32 %v1897, 0.0
  %v2496 = vmax.f32 %v1902, 0.0
  %v2497 = vmax.f32 %v1907, 0.0
  %v2498 = vmax.f32 %v1912, 0.0
  %v2499 = vmax.f32 %v1917, 0.0
  %v2500 = vmax.f32 %v1922, 0.0
  %v2501 = vmax.f32 %v1927, 0.0
  %v2502 = vmax.f32 %v1932, 0.0
  %v2503 = vmax.f32 %v1937, 0.0
  %v2504 = vmax.f32 %v1942, 0.0
  %v2505 = vmax.f32 %v1947, 0.0
  %v2506 = vmax.f32 %v1952, 0.0
  %v2507 = vmax.f32 %v1957, 0.0
  %v2508 = vmax.f32 %v1962, 0.0
  %v2509 = vmax.f32 %v1967, 0.0
  %v2510 = vmax.f32 %v1972, 0.0
  %v2511 = vmax.f32 %v1977, 0.0
  %v2512 = vmax.f32 %v1982, 0.0
  %v2513 = vmax.f32 %v1987, 0.0
  %v2514 = vmax.f32 %v1992, 0.0
  %v2515 = vmax.f32 %v1997, 0.0
  %v2516 = vmax.f32 %v2002, 0.0
  %v2517 = vmax.f32 %v2007, 0.0
  %v2518 = vmax.f32 %v2012, 0.0
  %v2519 = vmax.f32 %v2017, 0.0
  %v2520 = vmax.f32 %v2022, 0.0
  %v2521 = vmax.f32 %v2027, 0.0
  %v2522 = vmax.f32 %v2032, 0.0
  %v2523 = vmax.f32 %v2037, 0.0
  %v2524 = vmax.f32 %v2042, 0.0
  %v2525 = vmax.f32 %v2047, 0.0
  %v2526 = vmax.f32 %v2052, 0.0
  %v2527 = vmax.f32 %v2057, 0.0
  %v2528 = vmax.f32 %v2062, 0.0
  %v2529 = vmax.f32 %v2067, 0.0
  %v2530 = vmax.f32 %v2072, 0.0
  %v2531 = vmax.f32 %v2077, 0.0
  %v2532 = vmax.f32 %v2082, 0.0
  %v2533 = vmax.f32 %v2087, 0.0
  %v2534 = vmax.f32 %v2092, 0.0
  %v2535 = vmax.f32 %v2097, 0.0
  %v2536 = vmax.f32 %v2102, 0.0
  %v2537 = vmax.f32 %v2107, 0.0
  %v2538 = vmax.f32 %v2112, 0.0
  %v2539 = vmax.f32 %v2117, 0.0
  %v2540 = vmax.f32 %v2122, 0.0
  %v2541 = vmax.f32 %v2127, 0.0
  %v2542 = vmax.f32 %v2132, 0.0
  %v2543 = vmax.f32 %v2137, 0.0
  %v2544 = vmax.f32 %v2142, 0.0
  %v2545 = vmax.f32 %v2147, 0.0
  %v2546 = vmax.f32 %v2152, 0.0
  %v2547 = vmax.f32 %v2157, 0.0
  %v2548 = vmax.f32 %v2162, 0.0
  %v2549 = vmax.f32 %v2167, 0.0
  %v2550 = vmax.f32 %v2172, 0.0
  %v2551 = vmax.f32 %v2177, 0.0
  %v2552 = vmax.f32 %v2182, 0.0
  %v2553 = vmax.f32 %v2187, 0.0
  %v2554 = vmax.f32 %v2192, 0.0
  %v2555 = vmax.f32 %v2197, 0.0
  %v2556 = vmax.f32 %v2202, 0.0
  %v2557 = vmax.f32 %v2207, 0.0
  %v2558 = vmax.f32 %v2212, 0.0
  %v2559 = vmax.f32 %v2217, 0.0
  %v2560 = vmax.f32 %v2222, 0.0
  %v2561 = vmax.f32 %v2227, 0.0
  %v2562 = vmax.f32 %v2232, 0.0
  %v2563 = vmax.f32 %v2237, 0.0
  %v2564 = vmax.f32 %v2242, 0.0
  %v2565 = vmax.f32 %v2247, 0.0
  %v2566 = vmax.f32 %v2252, 0.0
  %v2567 = vmax.f32 %v2257, 0.0
  %v2568 = vmax.f32 %v2262, 0.0
  %v2569 = vmax.f32 %v2267, 0.0
  %v2570 = vmax.f32 %v2272, 0.0
  %v2571 = vmax.f32 %v2277, 0.0
  %v2572 = vmax.f32 %v2282, 0.0
  %v2573 = vmax.f32 %v2287, 0.0
  %v2574 = vmax.f32 %v2292, 0.0
  %v2575 = vmax.f32 %v2297, 0.0
  %v2576 = vmax.f32 %v2302, 0.0
  %v2577 = vmax.f32 %v2307, 0.0
  %v2578 = vmax.f32 %v2312, 0.0
  %v2579 = vmax.f32 %v2317, 0.0
  %v2580 = vmax.f32 %v2322, 0.0
  %v2581 = vmax.f32 %v2327, 0.0
  %v2582 = vmax.f32 %v2332, 0.0
  %v2583 = vmax.f32 %v2337, 0.0
  %v2584 = vmax.f32 %v2342, 0.0
  %v2585 = vmax.f32 %v2347, 0.0
  %v2586 = vmax.f32 %v2352, 0.0
  %v2587 = vmax.f32 %v2357, 0.0
  %v2588 = vmax.f32 %v2362, 0.0
  %v2589 = vmax.f32 %v2367, 0.0
  %v2590 = vmax.f32 %v2372, 0.0
  %v2591 = vmax.f32 %v2377, 0.0
  %v2592 = vmax.f32 %v2382, 0.0
  %v2593 = vmax.f32 %v2387, 0.0
  %v2594 = vmax.f32 %v2392, 0.0
  %v2595 = vmax.f32 %v2397, 0.0
  %v2596 = vmax.f32 %v2402, 0.0
  %v2597 = vmax.f32 %v2407, 0.0
  %v2598 = vmax.f32 %v2412, 0.0
  %v2599 = vmax.f32 %v2417, 0.0
  %v2600 = vmax.f32 %v2422, 0.0
  %v2601 = vmax.f32 %v2427, 0.0
  %v2602 = vmax.f32 %v2432, 0.0
  %v2603 = vmax.f32 %v2437, 0.0
  %v2604 = vmax.f32 %v2442, 0.0
  %v2605 = vmax.f32 %v2447, 0.0
  %v2606 = vmax.f32 %v2452, 0.0
  %v2607 = vmax.f32 %v2457, 0.0
  %v2608 = vmax.f32 %v2462, 0.0
  %v2609 = vmax.f32 %v2467, 0.0
  %v2610 = vmax.f32 %v2472, 0.0
  %v2611 = vmax.f32 %v2477, 0.0
  %v2612 = vmax.f32 %v2482, 0.0
  %v2613 = vld [vmem:[%s5] sm:$0xff]
  %v2614 = vld [vmem:[%s5 + $0x8] sm:$0xff]
  %v2615 = vld [vmem:[%s5 + $0x10] sm:$0xff]
  %v2616 = vld [vmem:[%s6] sm:$0x1]
  %v2618 = vlaneseq
  %v2619 = vshrl.u32 %v2618, 7
  %v2620 = vsub.s32 0, %v2619
  %v2621 = vrot.slane %v2616, %v2620
  %v2624 = vsel %vm1395, %v2485, 0
  %v2627 = vsel %vm1395, %v2486, 0
  %v2630 = vsel %vm1395, %v2487, 0
  %v2633 = vsel %vm1395, %v2488, 0
  %v2636 = vsel %vm1395, %v2489, 0
  %v2639 = vsel %vm1395, %v2490, 0
  %v2642 = vsel %vm1395, %v2491, 0
  %v2645 = vsel %vm1395, %v2492, 0
  %v2648 = vsel %vm1395, %v2493, 0
  %v2651 = vsel %vm1395, %v2494, 0
  %v2654 = vsel %vm1395, %v2495, 0
  %v2657 = vsel %vm1395, %v2496, 0
  %v2660 = vsel %vm1395, %v2497, 0
  %v2663 = vsel %vm1395, %v2498, 0
  %v2666 = vsel %vm1395, %v2499, 0
  %v2669 = vsel %vm1395, %v2500, 0
  %v2672 = vsel %vm1395, %v2501, 0
  %v2675 = vsel %vm1395, %v2502, 0
  %v2678 = vsel %vm1395, %v2503, 0
  %v2681 = vsel %vm1395, %v2504, 0
  %v2684 = vsel %vm1395, %v2505, 0
  %v2687 = vsel %vm1395, %v2506, 0
  %v2690 = vsel %vm1395, %v2507, 0
  %v2693 = vsel %vm1395, %v2508, 0
  %v2696 = vsel %vm1395, %v2509, 0
  %v2699 = vsel %vm1395, %v2510, 0
  %v2702 = vsel %vm1395, %v2511, 0
  %v2705 = vsel %vm1395, %v2512, 0
  %v2708 = vsel %vm1395, %v2513, 0
  %v2711 = vsel %vm1395, %v2514, 0
  %v2714 = vsel %vm1395, %v2515, 0
  %v2717 = vsel %vm1395, %v2516, 0
  %v2720 = vsel %vm1395, %v2517, 0
  %v2723 = vsel %vm1395, %v2518, 0
  %v2726 = vsel %vm1395, %v2519, 0
  %v2729 = vsel %vm1395, %v2520, 0
  %v2732 = vsel %vm1395, %v2521, 0
  %v2735 = vsel %vm1395, %v2522, 0
  %v2738 = vsel %vm1395, %v2523, 0
  %v2741 = vsel %vm1395, %v2524, 0
  %v2744 = vsel %vm1395, %v2525, 0
  %v2747 = vsel %vm1395, %v2526, 0
  %v2750 = vsel %vm1395, %v2527, 0
  %v2753 = vsel %vm1395, %v2528, 0
  %v2756 = vsel %vm1395, %v2529, 0
  %v2759 = vsel %vm1395, %v2530, 0
  %v2762 = vsel %vm1395, %v2531, 0
  %v2765 = vsel %vm1395, %v2532, 0
  %v2768 = vsel %vm1395, %v2533, 0
  %v2771 = vsel %vm1395, %v2534, 0
  %v2774 = vsel %vm1395, %v2535, 0
  %v2777 = vsel %vm1395, %v2536, 0
  %v2780 = vsel %vm1395, %v2537, 0
  %v2783 = vsel %vm1395, %v2538, 0
  %v2786 = vsel %vm1395, %v2539, 0
  %v2789 = vsel %vm1395, %v2540, 0
  %v2792 = vsel %vm1395, %v2541, 0
  %v2795 = vsel %vm1395, %v2542, 0
  %v2798 = vsel %vm1395, %v2543, 0
  %v2801 = vsel %vm1395, %v2544, 0
  %v2804 = vsel %vm1395, %v2545, 0
  %v2807 = vsel %vm1395, %v2546, 0
  %v2810 = vsel %vm1395, %v2547, 0
  %v2813 = vsel %vm1395, %v2548, 0
  %v2816 = vsel %vm1395, %v2549, 0
  %v2819 = vsel %vm1395, %v2550, 0
  %v2822 = vsel %vm1395, %v2551, 0
  %v2825 = vsel %vm1395, %v2552, 0
  %v2828 = vsel %vm1395, %v2553, 0
  %v2831 = vsel %vm1395, %v2554, 0
  %v2834 = vsel %vm1395, %v2555, 0
  %v2837 = vsel %vm1395, %v2556, 0
  %v2840 = vsel %vm1395, %v2557, 0
  %v2843 = vsel %vm1395, %v2558, 0
  %v2846 = vsel %vm1395, %v2559, 0
  %v2849 = vsel %vm1395, %v2560, 0
  %v2852 = vsel %vm1395, %v2561, 0
  %v2855 = vsel %vm1395, %v2562, 0
  %v2858 = vsel %vm1395, %v2563, 0
  %v2861 = vsel %vm1395, %v2564, 0
  %v2864 = vsel %vm1395, %v2565, 0
  %v2867 = vsel %vm1395, %v2566, 0
  %v2870 = vsel %vm1395, %v2567, 0
  %v2873 = vsel %vm1395, %v2568, 0
  %v2876 = vsel %vm1395, %v2569, 0
  %v2879 = vsel %vm1395, %v2570, 0
  %v2882 = vsel %vm1395, %v2571, 0
  %v2885 = vsel %vm1395, %v2572, 0
  %v2888 = vsel %vm1395, %v2573, 0
  %v2891 = vsel %vm1395, %v2574, 0
  %v2894 = vsel %vm1395, %v2575, 0
  %v2897 = vsel %vm1395, %v2576, 0
  %v2900 = vsel %vm1395, %v2577, 0
  %v2903 = vsel %vm1395, %v2578, 0
  %v2906 = vsel %vm1395, %v2579, 0
  %v2909 = vsel %vm1395, %v2580, 0
  %v2912 = vsel %vm1395, %v2581, 0
  %v2915 = vsel %vm1395, %v2582, 0
  %v2918 = vsel %vm1395, %v2583, 0
  %v2921 = vsel %vm1395, %v2584, 0
  %v2924 = vsel %vm1395, %v2585, 0
  %v2927 = vsel %vm1395, %v2586, 0
  %v2930 = vsel %vm1395, %v2587, 0
  %v2933 = vsel %vm1395, %v2588, 0
  %v2936 = vsel %vm1395, %v2589, 0
  %v2939 = vsel %vm1395, %v2590, 0
  %v2942 = vsel %vm1395, %v2591, 0
  %v2945 = vsel %vm1395, %v2592, 0
  %v2948 = vsel %vm1395, %v2593, 0
  %v2951 = vsel %vm1395, %v2594, 0
  %v2954 = vsel %vm1395, %v2595, 0
  %v2957 = vsel %vm1395, %v2596, 0
  %v2960 = vsel %vm1395, %v2597, 0
  %v2963 = vsel %vm1395, %v2598, 0
  %v2966 = vsel %vm1395, %v2599, 0
  %v2969 = vsel %vm1395, %v2600, 0
  %v2972 = vsel %vm1395, %v2601, 0
  %v2975 = vsel %vm1395, %v2602, 0
  %v2978 = vsel %vm1395, %v2603, 0
  %v2981 = vsel %vm1395, %v2604, 0
  %v2984 = vsel %vm1395, %v2605, 0
  %v2987 = vsel %vm1395, %v2606, 0
  %v2990 = vsel %vm1395, %v2607, 0
  %v2993 = vsel %vm1395, %v2608, 0
  %v2996 = vsel %vm1395, %v2609, 0
  %v2999 = vsel %vm1395, %v2610, 0
  %v3002 = vsel %vm1395, %v2611, 0
  %v3005 = vsel %vm1395, %v2612, 0
  %3007 = vmatprep.subr.mxu0 0.0
  %3008 = vmatpush1.msra.mxu0 0.0
  %3009 = vmatprep.subr.mxu0 0.0
  %3010 = vmatpush1.msra.mxu0 0.0
  %3011 = vmatprep.subr.mxu0 0.0
  %3012 = vmatpush1.msra.mxu0 0.0
  %3013 = vmatprep.subr.mxu0 0.0
  %3014 = vmatpush1.msra.mxu0 0.0
  %3015 = vmatprep.subr.mxu0 0.0
  %3016 = vmatpush1.msra.mxu0 0.0
  %3017 = vmatprep.subr.mxu0 0.0
  %3018 = vmatpush1.msra.mxu0 0.0
  %3019 = vmatprep.subr.mxu0 0.0
  %3020 = vmatpush1.msra.mxu0 0.0
  %3021 = vmatprep.subr.mxu0 0.0
  %3022 = vmatpush1.msra.mxu0 0.0
  %3023 = vmatprep.subr.mxu0 0.0
  %3024 = vmatpush1.msra.mxu0 0.0
  %3025 = vmatprep.subr.mxu0 0.0
  %3026 = vmatpush1.msra.mxu0 0.0
  %3027 = vmatprep.subr.mxu0 0.0
  %3028 = vmatpush1.msra.mxu0 0.0
  %3029 = vmatprep.subr.mxu0 0.0
  %3030 = vmatpush1.msra.mxu0 0.0
  %3031 = vmatprep.subr.mxu0 0.0
  %3032 = vmatpush1.msra.mxu0 0.0
  %3033 = vmatprep.subr.mxu0 0.0
  %3034 = vmatpush1.msra.mxu0 %v2615
  %3035 = vmatprep.subr.mxu0 0.0
  %3036 = vmatpush1.msra.mxu0 %v2614
  %3037 = vmatprep.subr.mxu0 0.0
  %3038 = vmatpush1.msra.mxu0 %v2613
  %3039 = vmatprep.subr.mxu0 0.0
  %3040 = vmatpush2.msra.mxu0 0.0
  %3041 = vmatprep.subr.mxu0 0.0
  %3042 = vmatpush2.msra.mxu0 0.0
  %3043 = vmatprep.subr.mxu0 0.0
  %3044 = vmatpush2.msra.mxu0 0.0
  %3045 = vmatprep.subr.mxu0 0.0
  %3046 = vmatpush2.msra.mxu0 0.0
  %3047 = vmatprep.subr.mxu0 0.0
  %3048 = vmatpush2.msra.mxu0 0.0
  %3049 = vmatprep.subr.mxu0 0.0
  %3050 = vmatpush2.msra.mxu0 0.0
  %3051 = vmatprep.subr.mxu0 0.0
  %3052 = vmatpush2.msra.mxu0 0.0
  %3053 = vmatprep.subr.mxu0 0.0
  %3054 = vmatpush2.msra.mxu0 0.0
  %3055 = vmatprep.subr.mxu0 0.0
  %3056 = vmatpush2.msra.mxu0 0.0
  %3057 = vmatprep.subr.mxu0 0.0
  %3058 = vmatpush2.msra.mxu0 0.0
  %3059 = vmatprep.subr.mxu0 0.0
  %3060 = vmatpush2.msra.mxu0 0.0
  %3061 = vmatprep.subr.mxu0 0.0
  %3062 = vmatpush2.msra.mxu0 0.0
  %3063 = vmatprep.subr.mxu0 0.0
  %3064 = vmatpush2.msra.mxu0 0.0
  %3065 = vmatprep.subr.mxu0 0.0
  %3066 = vmatpush2.msra.mxu0 0.0
  %3067 = vmatprep.subr.mxu0 0.0
  %3068 = vmatpush2.msra.mxu0 0.0
  %3069 = vmatprep.subr.mxu0 0.0
  %3070 = vmatpush2.msra.mxu0 0.0
  %3071 = vmatprep.mubr.f32.mxu0 0.0
  %3072 = vmatmul.mubr.f32.gmra.mxu0 %v2624
  %v3073 = vpop.f32.mrf.mxu0
  %v3074 = vadd.f32 %v2621, %v3073
  %v3075 = vpop.f32.mrf.mxu0
  %3076 = vmatprep.mubr.f32.mxu0 0.0
  %3077 = vmatmul.mubr.f32.gmra.mxu0 %v2627
  %v3078 = vpop.f32.mrf.mxu0
  %v3079 = vadd.f32 %v2621, %v3078
  %v3080 = vpop.f32.mrf.mxu0
  %3081 = vmatprep.mubr.f32.mxu0 0.0
  %3082 = vmatmul.mubr.f32.gmra.mxu0 %v2630
  %v3083 = vpop.f32.mrf.mxu0
  %v3084 = vadd.f32 %v2621, %v3083
  %v3085 = vpop.f32.mrf.mxu0
  %3086 = vmatprep.mubr.f32.mxu0 0.0
  %3087 = vmatmul.mubr.f32.gmra.mxu0 %v2633
  %v3088 = vpop.f32.mrf.mxu0
  %v3089 = vadd.f32 %v2621, %v3088
  %v3090 = vpop.f32.mrf.mxu0
  %3091 = vmatprep.mubr.f32.mxu0 0.0
  %3092 = vmatmul.mubr.f32.gmra.mxu0 %v2636
  %v3093 = vpop.f32.mrf.mxu0
  %v3094 = vadd.f32 %v2621, %v3093
  %v3095 = vpop.f32.mrf.mxu0
  %3096 = vmatprep.mubr.f32.mxu0 0.0
  %3097 = vmatmul.mubr.f32.gmra.mxu0 %v2639
  %v3098 = vpop.f32.mrf.mxu0
  %v3099 = vadd.f32 %v2621, %v3098
  %v3100 = vpop.f32.mrf.mxu0
  %3101 = vmatprep.mubr.f32.mxu0 0.0
  %3102 = vmatmul.mubr.f32.gmra.mxu0 %v2642
  %v3103 = vpop.f32.mrf.mxu0
  %v3104 = vadd.f32 %v2621, %v3103
  %v3105 = vpop.f32.mrf.mxu0
  %3106 = vmatprep.mubr.f32.mxu0 0.0
  %3107 = vmatmul.mubr.f32.gmra.mxu0 %v2645
  %v3108 = vpop.f32.mrf.mxu0
  %v3109 = vadd.f32 %v2621, %v3108
  %v3110 = vpop.f32.mrf.mxu0
  %3111 = vmatprep.mubr.f32.mxu0 0.0
  %3112 = vmatmul.mubr.f32.gmra.mxu0 %v2648
  %v3113 = vpop.f32.mrf.mxu0
  %v3114 = vadd.f32 %v2621, %v3113
  %v3115 = vpop.f32.mrf.mxu0
  %3116 = vmatprep.mubr.f32.mxu0 0.0
  %3117 = vmatmul.mubr.f32.gmra.mxu0 %v2651
  %v3118 = vpop.f32.mrf.mxu0
  %v3119 = vadd.f32 %v2621, %v3118
  %v3120 = vpop.f32.mrf.mxu0
  %3121 = vmatprep.mubr.f32.mxu0 0.0
  %3122 = vmatmul.mubr.f32.gmra.mxu0 %v2654
  %v3123 = vpop.f32.mrf.mxu0
  %v3124 = vadd.f32 %v2621, %v3123
  %v3125 = vpop.f32.mrf.mxu0
  %3126 = vmatprep.mubr.f32.mxu0 0.0
  %3127 = vmatmul.mubr.f32.gmra.mxu0 %v2657
  %v3128 = vpop.f32.mrf.mxu0
  %v3129 = vadd.f32 %v2621, %v3128
  %v3130 = vpop.f32.mrf.mxu0
  %3131 = vmatprep.mubr.f32.mxu0 0.0
  %3132 = vmatmul.mubr.f32.gmra.mxu0 %v2660
  %v3133 = vpop.f32.mrf.mxu0
  %v3134 = vadd.f32 %v2621, %v3133
  %v3135 = vpop.f32.mrf.mxu0
  %3136 = vmatprep.mubr.f32.mxu0 0.0
  %3137 = vmatmul.mubr.f32.gmra.mxu0 %v2663
  %v3138 = vpop.f32.mrf.mxu0
  %v3139 = vadd.f32 %v2621, %v3138
  %v3140 = vpop.f32.mrf.mxu0
  %3141 = vmatprep.mubr.f32.mxu0 0.0
  %3142 = vmatmul.mubr.f32.gmra.mxu0 %v2666
  %v3143 = vpop.f32.mrf.mxu0
  %v3144 = vadd.f32 %v2621, %v3143
  %v3145 = vpop.f32.mrf.mxu0
  %3146 = vmatprep.mubr.f32.mxu0 0.0
  %3147 = vmatmul.mubr.f32.gmra.mxu0 %v2669
  %v3148 = vpop.f32.mrf.mxu0
  %v3149 = vadd.f32 %v2621, %v3148
  %v3150 = vpop.f32.mrf.mxu0
  %3151 = vmatprep.mubr.f32.mxu0 0.0
  %3152 = vmatmul.mubr.f32.gmra.mxu0 %v2672
  %v3153 = vpop.f32.mrf.mxu0
  %v3154 = vadd.f32 %v2621, %v3153
  %v3155 = vpop.f32.mrf.mxu0
  %3156 = vmatprep.mubr.f32.mxu0 0.0
  %3157 = vmatmul.mubr.f32.gmra.mxu0 %v2675
  %v3158 = vpop.f32.mrf.mxu0
  %v3159 = vadd.f32 %v2621, %v3158
  %v3160 = vpop.f32.mrf.mxu0
  %3161 = vmatprep.mubr.f32.mxu0 0.0
  %3162 = vmatmul.mubr.f32.gmra.mxu0 %v2678
  %v3163 = vpop.f32.mrf.mxu0
  %v3164 = vadd.f32 %v2621, %v3163
  %v3165 = vpop.f32.mrf.mxu0
  %3166 = vmatprep.mubr.f32.mxu0 0.0
  %3167 = vmatmul.mubr.f32.gmra.mxu0 %v2681
  %v3168 = vpop.f32.mrf.mxu0
  %v3169 = vadd.f32 %v2621, %v3168
  %v3170 = vpop.f32.mrf.mxu0
  %3171 = vmatprep.mubr.f32.mxu0 0.0
  %3172 = vmatmul.mubr.f32.gmra.mxu0 %v2684
  %v3173 = vpop.f32.mrf.mxu0
  %v3174 = vadd.f32 %v2621, %v3173
  %v3175 = vpop.f32.mrf.mxu0
  %3176 = vmatprep.mubr.f32.mxu0 0.0
  %3177 = vmatmul.mubr.f32.gmra.mxu0 %v2687
  %v3178 = vpop.f32.mrf.mxu0
  %v3179 = vadd.f32 %v2621, %v3178
  %v3180 = vpop.f32.mrf.mxu0
  %3181 = vmatprep.mubr.f32.mxu0 0.0
  %3182 = vmatmul.mubr.f32.gmra.mxu0 %v2690
  %v3183 = vpop.f32.mrf.mxu0
  %v3184 = vadd.f32 %v2621, %v3183
  %v3185 = vpop.f32.mrf.mxu0
  %3186 = vmatprep.mubr.f32.mxu0 0.0
  %3187 = vmatmul.mubr.f32.gmra.mxu0 %v2693
  %v3188 = vpop.f32.mrf.mxu0
  %v3189 = vadd.f32 %v2621, %v3188
  %v3190 = vpop.f32.mrf.mxu0
  %3191 = vmatprep.mubr.f32.mxu0 0.0
  %3192 = vmatmul.mubr.f32.gmra.mxu0 %v2696
  %v3193 = vpop.f32.mrf.mxu0
  %v3194 = vadd.f32 %v2621, %v3193
  %v3195 = vpop.f32.mrf.mxu0
  %3196 = vmatprep.mubr.f32.mxu0 0.0
  %3197 = vmatmul.mubr.f32.gmra.mxu0 %v2699
  %v3198 = vpop.f32.mrf.mxu0
  %v3199 = vadd.f32 %v2621, %v3198
  %v3200 = vpop.f32.mrf.mxu0
  %3201 = vmatprep.mubr.f32.mxu0 0.0
  %3202 = vmatmul.mubr.f32.gmra.mxu0 %v2702
  %v3203 = vpop.f32.mrf.mxu0
  %v3204 = vadd.f32 %v2621, %v3203
  %v3205 = vpop.f32.mrf.mxu0
  %3206 = vmatprep.mubr.f32.mxu0 0.0
  %3207 = vmatmul.mubr.f32.gmra.mxu0 %v2705
  %v3208 = vpop.f32.mrf.mxu0
  %v3209 = vadd.f32 %v2621, %v3208
  %v3210 = vpop.f32.mrf.mxu0
  %3211 = vmatprep.mubr.f32.mxu0 0.0
  %3212 = vmatmul.mubr.f32.gmra.mxu0 %v2708
  %v3213 = vpop.f32.mrf.mxu0
  %v3214 = vadd.f32 %v2621, %v3213
  %v3215 = vpop.f32.mrf.mxu0
  %3216 = vmatprep.mubr.f32.mxu0 0.0
  %3217 = vmatmul.mubr.f32.gmra.mxu0 %v2711
  %v3218 = vpop.f32.mrf.mxu0
  %v3219 = vadd.f32 %v2621, %v3218
  %v3220 = vpop.f32.mrf.mxu0
  %3221 = vmatprep.mubr.f32.mxu0 0.0
  %3222 = vmatmul.mubr.f32.gmra.mxu0 %v2714
  %v3223 = vpop.f32.mrf.mxu0
  %v3224 = vadd.f32 %v2621, %v3223
  %v3225 = vpop.f32.mrf.mxu0
  %3226 = vmatprep.mubr.f32.mxu0 0.0
  %3227 = vmatmul.mubr.f32.gmra.mxu0 %v2717
  %v3228 = vpop.f32.mrf.mxu0
  %v3229 = vadd.f32 %v2621, %v3228
  %v3230 = vpop.f32.mrf.mxu0
  %3231 = vmatprep.mubr.f32.mxu0 0.0
  %3232 = vmatmul.mubr.f32.gmra.mxu0 %v2720
  %v3233 = vpop.f32.mrf.mxu0
  %v3234 = vadd.f32 %v2621, %v3233
  %v3235 = vpop.f32.mrf.mxu0
  %3236 = vmatprep.mubr.f32.mxu0 0.0
  %3237 = vmatmul.mubr.f32.gmra.mxu0 %v2723
  %v3238 = vpop.f32.mrf.mxu0
  %v3239 = vadd.f32 %v2621, %v3238
  %v3240 = vpop.f32.mrf.mxu0
  %3241 = vmatprep.mubr.f32.mxu0 0.0
  %3242 = vmatmul.mubr.f32.gmra.mxu0 %v2726
  %v3243 = vpop.f32.mrf.mxu0
  %v3244 = vadd.f32 %v2621, %v3243
  %v3245 = vpop.f32.mrf.mxu0
  %3246 = vmatprep.mubr.f32.mxu0 0.0
  %3247 = vmatmul.mubr.f32.gmra.mxu0 %v2729
  %v3248 = vpop.f32.mrf.mxu0
  %v3249 = vadd.f32 %v2621, %v3248
  %v3250 = vpop.f32.mrf.mxu0
  %3251 = vmatprep.mubr.f32.mxu0 0.0
  %3252 = vmatmul.mubr.f32.gmra.mxu0 %v2732
  %v3253 = vpop.f32.mrf.mxu0
  %v3254 = vadd.f32 %v2621, %v3253
  %v3255 = vpop.f32.mrf.mxu0
  %3256 = vmatprep.mubr.f32.mxu0 0.0
  %3257 = vmatmul.mubr.f32.gmra.mxu0 %v2735
  %v3258 = vpop.f32.mrf.mxu0
  %v3259 = vadd.f32 %v2621, %v3258
  %v3260 = vpop.f32.mrf.mxu0
  %3261 = vmatprep.mubr.f32.mxu0 0.0
  %3262 = vmatmul.mubr.f32.gmra.mxu0 %v2738
  %v3263 = vpop.f32.mrf.mxu0
  %v3264 = vadd.f32 %v2621, %v3263
  %v3265 = vpop.f32.mrf.mxu0
  %3266 = vmatprep.mubr.f32.mxu0 0.0
  %3267 = vmatmul.mubr.f32.gmra.mxu0 %v2741
  %v3268 = vpop.f32.mrf.mxu0
  %v3269 = vadd.f32 %v2621, %v3268
  %v3270 = vpop.f32.mrf.mxu0
  %3271 = vmatprep.mubr.f32.mxu0 0.0
  %3272 = vmatmul.mubr.f32.gmra.mxu0 %v2744
  %v3273 = vpop.f32.mrf.mxu0
  %v3274 = vadd.f32 %v2621, %v3273
  %v3275 = vpop.f32.mrf.mxu0
  %3276 = vmatprep.mubr.f32.mxu0 0.0
  %3277 = vmatmul.mubr.f32.gmra.mxu0 %v2747
  %v3278 = vpop.f32.mrf.mxu0
  %v3279 = vadd.f32 %v2621, %v3278
  %v3280 = vpop.f32.mrf.mxu0
  %3281 = vmatprep.mubr.f32.mxu0 0.0
  %3282 = vmatmul.mubr.f32.gmra.mxu0 %v2750
  %v3283 = vpop.f32.mrf.mxu0
  %v3284 = vadd.f32 %v2621, %v3283
  %v3285 = vpop.f32.mrf.mxu0
  %3286 = vmatprep.mubr.f32.mxu0 0.0
  %3287 = vmatmul.mubr.f32.gmra.mxu0 %v2753
  %v3288 = vpop.f32.mrf.mxu0
  %v3289 = vadd.f32 %v2621, %v3288
  %v3290 = vpop.f32.mrf.mxu0
  %3291 = vmatprep.mubr.f32.mxu0 0.0
  %3292 = vmatmul.mubr.f32.gmra.mxu0 %v2756
  %v3293 = vpop.f32.mrf.mxu0
  %v3294 = vadd.f32 %v2621, %v3293
  %v3295 = vpop.f32.mrf.mxu0
  %3296 = vmatprep.mubr.f32.mxu0 0.0
  %3297 = vmatmul.mubr.f32.gmra.mxu0 %v2759
  %v3298 = vpop.f32.mrf.mxu0
  %v3299 = vadd.f32 %v2621, %v3298
  %v3300 = vpop.f32.mrf.mxu0
  %3301 = vmatprep.mubr.f32.mxu0 0.0
  %3302 = vmatmul.mubr.f32.gmra.mxu0 %v2762
  %v3303 = vpop.f32.mrf.mxu0
  %v3304 = vadd.f32 %v2621, %v3303
  %v3305 = vpop.f32.mrf.mxu0
  %3306 = vmatprep.mubr.f32.mxu0 0.0
  %3307 = vmatmul.mubr.f32.gmra.mxu0 %v2765
  %v3308 = vpop.f32.mrf.mxu0
  %v3309 = vadd.f32 %v2621, %v3308
  %v3310 = vpop.f32.mrf.mxu0
  %3311 = vmatprep.mubr.f32.mxu0 0.0
  %3312 = vmatmul.mubr.f32.gmra.mxu0 %v2768
  %v3313 = vpop.f32.mrf.mxu0
  %v3314 = vadd.f32 %v2621, %v3313
  %v3315 = vpop.f32.mrf.mxu0
  %3316 = vmatprep.mubr.f32.mxu0 0.0
  %3317 = vmatmul.mubr.f32.gmra.mxu0 %v2771
  %v3318 = vpop.f32.mrf.mxu0
  %v3319 = vadd.f32 %v2621, %v3318
  %v3320 = vpop.f32.mrf.mxu0
  %3321 = vmatprep.mubr.f32.mxu0 0.0
  %3322 = vmatmul.mubr.f32.gmra.mxu0 %v2774
  %v3323 = vpop.f32.mrf.mxu0
  %v3324 = vadd.f32 %v2621, %v3323
  %v3325 = vpop.f32.mrf.mxu0
  %3326 = vmatprep.mubr.f32.mxu0 0.0
  %3327 = vmatmul.mubr.f32.gmra.mxu0 %v2777
  %v3328 = vpop.f32.mrf.mxu0
  %v3329 = vadd.f32 %v2621, %v3328
  %v3330 = vpop.f32.mrf.mxu0
  %3331 = vmatprep.mubr.f32.mxu0 0.0
  %3332 = vmatmul.mubr.f32.gmra.mxu0 %v2780
  %v3333 = vpop.f32.mrf.mxu0
  %v3334 = vadd.f32 %v2621, %v3333
  %v3335 = vpop.f32.mrf.mxu0
  %3336 = vmatprep.mubr.f32.mxu0 0.0
  %3337 = vmatmul.mubr.f32.gmra.mxu0 %v2783
  %v3338 = vpop.f32.mrf.mxu0
  %v3339 = vadd.f32 %v2621, %v3338
  %v3340 = vpop.f32.mrf.mxu0
  %3341 = vmatprep.mubr.f32.mxu0 0.0
  %3342 = vmatmul.mubr.f32.gmra.mxu0 %v2786
  %v3343 = vpop.f32.mrf.mxu0
  %v3344 = vadd.f32 %v2621, %v3343
  %v3345 = vpop.f32.mrf.mxu0
  %3346 = vmatprep.mubr.f32.mxu0 0.0
  %3347 = vmatmul.mubr.f32.gmra.mxu0 %v2789
  %v3348 = vpop.f32.mrf.mxu0
  %v3349 = vadd.f32 %v2621, %v3348
  %v3350 = vpop.f32.mrf.mxu0
  %3351 = vmatprep.mubr.f32.mxu0 0.0
  %3352 = vmatmul.mubr.f32.gmra.mxu0 %v2792
  %v3353 = vpop.f32.mrf.mxu0
  %v3354 = vadd.f32 %v2621, %v3353
  %v3355 = vpop.f32.mrf.mxu0
  %3356 = vmatprep.mubr.f32.mxu0 0.0
  %3357 = vmatmul.mubr.f32.gmra.mxu0 %v2795
  %v3358 = vpop.f32.mrf.mxu0
  %v3359 = vadd.f32 %v2621, %v3358
  %v3360 = vpop.f32.mrf.mxu0
  %3361 = vmatprep.mubr.f32.mxu0 0.0
  %3362 = vmatmul.mubr.f32.gmra.mxu0 %v2798
  %v3363 = vpop.f32.mrf.mxu0
  %v3364 = vadd.f32 %v2621, %v3363
  %v3365 = vpop.f32.mrf.mxu0
  %3366 = vmatprep.mubr.f32.mxu0 0.0
  %3367 = vmatmul.mubr.f32.gmra.mxu0 %v2801
  %v3368 = vpop.f32.mrf.mxu0
  %v3369 = vadd.f32 %v2621, %v3368
  %v3370 = vpop.f32.mrf.mxu0
  %3371 = vmatprep.mubr.f32.mxu0 0.0
  %3372 = vmatmul.mubr.f32.gmra.mxu0 %v2804
  %v3373 = vpop.f32.mrf.mxu0
  %v3374 = vadd.f32 %v2621, %v3373
  %v3375 = vpop.f32.mrf.mxu0
  %3376 = vmatprep.mubr.f32.mxu0 0.0
  %3377 = vmatmul.mubr.f32.gmra.mxu0 %v2807
  %v3378 = vpop.f32.mrf.mxu0
  %v3379 = vadd.f32 %v2621, %v3378
  %v3380 = vpop.f32.mrf.mxu0
  %3381 = vmatprep.mubr.f32.mxu0 0.0
  %3382 = vmatmul.mubr.f32.gmra.mxu0 %v2810
  %v3383 = vpop.f32.mrf.mxu0
  %v3384 = vadd.f32 %v2621, %v3383
  %v3385 = vpop.f32.mrf.mxu0
  %3386 = vmatprep.mubr.f32.mxu0 0.0
  %3387 = vmatmul.mubr.f32.gmra.mxu0 %v2813
  %v3388 = vpop.f32.mrf.mxu0
  %v3389 = vadd.f32 %v2621, %v3388
  %v3390 = vpop.f32.mrf.mxu0
  %3391 = vmatprep.mubr.f32.mxu0 0.0
  %3392 = vmatmul.mubr.f32.gmra.mxu0 %v2816
  %v3393 = vpop.f32.mrf.mxu0
  %v3394 = vadd.f32 %v2621, %v3393
  %v3395 = vpop.f32.mrf.mxu0
  %3396 = vmatprep.mubr.f32.mxu0 0.0
  %3397 = vmatmul.mubr.f32.gmra.mxu0 %v2819
  %v3398 = vpop.f32.mrf.mxu0
  %v3399 = vadd.f32 %v2621, %v3398
  %v3400 = vpop.f32.mrf.mxu0
  %3401 = vmatprep.mubr.f32.mxu0 0.0
  %3402 = vmatmul.mubr.f32.gmra.mxu0 %v2822
  %v3403 = vpop.f32.mrf.mxu0
  %v3404 = vadd.f32 %v2621, %v3403
  %v3405 = vpop.f32.mrf.mxu0
  %3406 = vmatprep.mubr.f32.mxu0 0.0
  %3407 = vmatmul.mubr.f32.gmra.mxu0 %v2825
  %v3408 = vpop.f32.mrf.mxu0
  %v3409 = vadd.f32 %v2621, %v3408
  %v3410 = vpop.f32.mrf.mxu0
  %3411 = vmatprep.mubr.f32.mxu0 0.0
  %3412 = vmatmul.mubr.f32.gmra.mxu0 %v2828
  %v3413 = vpop.f32.mrf.mxu0
  %v3414 = vadd.f32 %v2621, %v3413
  %v3415 = vpop.f32.mrf.mxu0
  %3416 = vmatprep.mubr.f32.mxu0 0.0
  %3417 = vmatmul.mubr.f32.gmra.mxu0 %v2831
  %v3418 = vpop.f32.mrf.mxu0
  %v3419 = vadd.f32 %v2621, %v3418
  %v3420 = vpop.f32.mrf.mxu0
  %3421 = vmatprep.mubr.f32.mxu0 0.0
  %3422 = vmatmul.mubr.f32.gmra.mxu0 %v2834
  %v3423 = vpop.f32.mrf.mxu0
  %v3424 = vadd.f32 %v2621, %v3423
  %v3425 = vpop.f32.mrf.mxu0
  %3426 = vmatprep.mubr.f32.mxu0 0.0
  %3427 = vmatmul.mubr.f32.gmra.mxu0 %v2837
  %v3428 = vpop.f32.mrf.mxu0
  %v3429 = vadd.f32 %v2621, %v3428
  %v3430 = vpop.f32.mrf.mxu0
  %3431 = vmatprep.mubr.f32.mxu0 0.0
  %3432 = vmatmul.mubr.f32.gmra.mxu0 %v2840
  %v3433 = vpop.f32.mrf.mxu0
  %v3434 = vadd.f32 %v2621, %v3433
  %v3435 = vpop.f32.mrf.mxu0
  %3436 = vmatprep.mubr.f32.mxu0 0.0
  %3437 = vmatmul.mubr.f32.gmra.mxu0 %v2843
  %v3438 = vpop.f32.mrf.mxu0
  %v3439 = vadd.f32 %v2621, %v3438
  %v3440 = vpop.f32.mrf.mxu0
  %3441 = vmatprep.mubr.f32.mxu0 0.0
  %3442 = vmatmul.mubr.f32.gmra.mxu0 %v2846
  %v3443 = vpop.f32.mrf.mxu0
  %v3444 = vadd.f32 %v2621, %v3443
  %v3445 = vpop.f32.mrf.mxu0
  %3446 = vmatprep.mubr.f32.mxu0 0.0
  %3447 = vmatmul.mubr.f32.gmra.mxu0 %v2849
  %v3448 = vpop.f32.mrf.mxu0
  %v3449 = vadd.f32 %v2621, %v3448
  %v3450 = vpop.f32.mrf.mxu0
  %3451 = vmatprep.mubr.f32.mxu0 0.0
  %3452 = vmatmul.mubr.f32.gmra.mxu0 %v2852
  %v3453 = vpop.f32.mrf.mxu0
  %v3454 = vadd.f32 %v2621, %v3453
  %v3455 = vpop.f32.mrf.mxu0
  %3456 = vmatprep.mubr.f32.mxu0 0.0
  %3457 = vmatmul.mubr.f32.gmra.mxu0 %v2855
  %v3458 = vpop.f32.mrf.mxu0
  %v3459 = vadd.f32 %v2621, %v3458
  %v3460 = vpop.f32.mrf.mxu0
  %3461 = vmatprep.mubr.f32.mxu0 0.0
  %3462 = vmatmul.mubr.f32.gmra.mxu0 %v2858
  %v3463 = vpop.f32.mrf.mxu0
  %v3464 = vadd.f32 %v2621, %v3463
  %v3465 = vpop.f32.mrf.mxu0
  %3466 = vmatprep.mubr.f32.mxu0 0.0
  %3467 = vmatmul.mubr.f32.gmra.mxu0 %v2861
  %v3468 = vpop.f32.mrf.mxu0
  %v3469 = vadd.f32 %v2621, %v3468
  %v3470 = vpop.f32.mrf.mxu0
  %3471 = vmatprep.mubr.f32.mxu0 0.0
  %3472 = vmatmul.mubr.f32.gmra.mxu0 %v2864
  %v3473 = vpop.f32.mrf.mxu0
  %v3474 = vadd.f32 %v2621, %v3473
  %v3475 = vpop.f32.mrf.mxu0
  %3476 = vmatprep.mubr.f32.mxu0 0.0
  %3477 = vmatmul.mubr.f32.gmra.mxu0 %v2867
  %v3478 = vpop.f32.mrf.mxu0
  %v3479 = vadd.f32 %v2621, %v3478
  %v3480 = vpop.f32.mrf.mxu0
  %3481 = vmatprep.mubr.f32.mxu0 0.0
  %3482 = vmatmul.mubr.f32.gmra.mxu0 %v2870
  %v3483 = vpop.f32.mrf.mxu0
  %v3484 = vadd.f32 %v2621, %v3483
  %v3485 = vpop.f32.mrf.mxu0
  %3486 = vmatprep.mubr.f32.mxu0 0.0
  %3487 = vmatmul.mubr.f32.gmra.mxu0 %v2873
  %v3488 = vpop.f32.mrf.mxu0
  %v3489 = vadd.f32 %v2621, %v3488
  %v3490 = vpop.f32.mrf.mxu0
  %3491 = vmatprep.mubr.f32.mxu0 0.0
  %3492 = vmatmul.mubr.f32.gmra.mxu0 %v2876
  %v3493 = vpop.f32.mrf.mxu0
  %v3494 = vadd.f32 %v2621, %v3493
  %v3495 = vpop.f32.mrf.mxu0
  %3496 = vmatprep.mubr.f32.mxu0 0.0
  %3497 = vmatmul.mubr.f32.gmra.mxu0 %v2879
  %v3498 = vpop.f32.mrf.mxu0
  %v3499 = vadd.f32 %v2621, %v3498
  %v3500 = vpop.f32.mrf.mxu0
  %3501 = vmatprep.mubr.f32.mxu0 0.0
  %3502 = vmatmul.mubr.f32.gmra.mxu0 %v2882
  %v3503 = vpop.f32.mrf.mxu0
  %v3504 = vadd.f32 %v2621, %v3503
  %v3505 = vpop.f32.mrf.mxu0
  %3506 = vmatprep.mubr.f32.mxu0 0.0
  %3507 = vmatmul.mubr.f32.gmra.mxu0 %v2885
  %v3508 = vpop.f32.mrf.mxu0
  %v3509 = vadd.f32 %v2621, %v3508
  %v3510 = vpop.f32.mrf.mxu0
  %3511 = vmatprep.mubr.f32.mxu0 0.0
  %3512 = vmatmul.mubr.f32.gmra.mxu0 %v2888
  %v3513 = vpop.f32.mrf.mxu0
  %v3514 = vadd.f32 %v2621, %v3513
  %v3515 = vpop.f32.mrf.mxu0
  %3516 = vmatprep.mubr.f32.mxu0 0.0
  %3517 = vmatmul.mubr.f32.gmra.mxu0 %v2891
  %v3518 = vpop.f32.mrf.mxu0
  %v3519 = vadd.f32 %v2621, %v3518
  %v3520 = vpop.f32.mrf.mxu0
  %3521 = vmatprep.mubr.f32.mxu0 0.0
  %3522 = vmatmul.mubr.f32.gmra.mxu0 %v2894
  %v3523 = vpop.f32.mrf.mxu0
  %v3524 = vadd.f32 %v2621, %v3523
  %v3525 = vpop.f32.mrf.mxu0
  %3526 = vmatprep.mubr.f32.mxu0 0.0
  %3527 = vmatmul.mubr.f32.gmra.mxu0 %v2897
  %v3528 = vpop.f32.mrf.mxu0
  %v3529 = vadd.f32 %v2621, %v3528
  %v3530 = vpop.f32.mrf.mxu0
  %3531 = vmatprep.mubr.f32.mxu0 0.0
  %3532 = vmatmul.mubr.f32.gmra.mxu0 %v2900
  %v3533 = vpop.f32.mrf.mxu0
  %v3534 = vadd.f32 %v2621, %v3533
  %v3535 = vpop.f32.mrf.mxu0
  %3536 = vmatprep.mubr.f32.mxu0 0.0
  %3537 = vmatmul.mubr.f32.gmra.mxu0 %v2903
  %v3538 = vpop.f32.mrf.mxu0
  %v3539 = vadd.f32 %v2621, %v3538
  %v3540 = vpop.f32.mrf.mxu0
  %3541 = vmatprep.mubr.f32.mxu0 0.0
  %3542 = vmatmul.mubr.f32.gmra.mxu0 %v2906
  %v3543 = vpop.f32.mrf.mxu0
  %v3544 = vadd.f32 %v2621, %v3543
  %v3545 = vpop.f32.mrf.mxu0
  %3546 = vmatprep.mubr.f32.mxu0 0.0
  %3547 = vmatmul.mubr.f32.gmra.mxu0 %v2909
  %v3548 = vpop.f32.mrf.mxu0
  %v3549 = vadd.f32 %v2621, %v3548
  %v3550 = vpop.f32.mrf.mxu0
  %3551 = vmatprep.mubr.f32.mxu0 0.0
  %3552 = vmatmul.mubr.f32.gmra.mxu0 %v2912
  %v3553 = vpop.f32.mrf.mxu0
  %v3554 = vadd.f32 %v2621, %v3553
  %v3555 = vpop.f32.mrf.mxu0
  %3556 = vmatprep.mubr.f32.mxu0 0.0
  %3557 = vmatmul.mubr.f32.gmra.mxu0 %v2915
  %v3558 = vpop.f32.mrf.mxu0
  %v3559 = vadd.f32 %v2621, %v3558
  %v3560 = vpop.f32.mrf.mxu0
  %3561 = vmatprep.mubr.f32.mxu0 0.0
  %3562 = vmatmul.mubr.f32.gmra.mxu0 %v2918
  %v3563 = vpop.f32.mrf.mxu0
  %v3564 = vadd.f32 %v2621, %v3563
  %v3565 = vpop.f32.mrf.mxu0
  %3566 = vmatprep.mubr.f32.mxu0 0.0
  %3567 = vmatmul.mubr.f32.gmra.mxu0 %v2921
  %v3568 = vpop.f32.mrf.mxu0
  %v3569 = vadd.f32 %v2621, %v3568
  %v3570 = vpop.f32.mrf.mxu0
  %3571 = vmatprep.mubr.f32.mxu0 0.0
  %3572 = vmatmul.mubr.f32.gmra.mxu0 %v2924
  %v3573 = vpop.f32.mrf.mxu0
  %v3574 = vadd.f32 %v2621, %v3573
  %v3575 = vpop.f32.mrf.mxu0
  %3576 = vmatprep.mubr.f32.mxu0 0.0
  %3577 = vmatmul.mubr.f32.gmra.mxu0 %v2927
  %v3578 = vpop.f32.mrf.mxu0
  %v3579 = vadd.f32 %v2621, %v3578
  %v3580 = vpop.f32.mrf.mxu0
  %3581 = vmatprep.mubr.f32.mxu0 0.0
  %3582 = vmatmul.mubr.f32.gmra.mxu0 %v2930
  %v3583 = vpop.f32.mrf.mxu0
  %v3584 = vadd.f32 %v2621, %v3583
  %v3585 = vpop.f32.mrf.mxu0
  %3586 = vmatprep.mubr.f32.mxu0 0.0
  %3587 = vmatmul.mubr.f32.gmra.mxu0 %v2933
  %v3588 = vpop.f32.mrf.mxu0
  %v3589 = vadd.f32 %v2621, %v3588
  %v3590 = vpop.f32.mrf.mxu0
  %3591 = vmatprep.mubr.f32.mxu0 0.0
  %3592 = vmatmul.mubr.f32.gmra.mxu0 %v2936
  %v3593 = vpop.f32.mrf.mxu0
  %v3594 = vadd.f32 %v2621, %v3593
  %v3595 = vpop.f32.mrf.mxu0
  %3596 = vmatprep.mubr.f32.mxu0 0.0
  %3597 = vmatmul.mubr.f32.gmra.mxu0 %v2939
  %v3598 = vpop.f32.mrf.mxu0
  %v3599 = vadd.f32 %v2621, %v3598
  %v3600 = vpop.f32.mrf.mxu0
  %3601 = vmatprep.mubr.f32.mxu0 0.0
  %3602 = vmatmul.mubr.f32.gmra.mxu0 %v2942
  %v3603 = vpop.f32.mrf.mxu0
  %v3604 = vadd.f32 %v2621, %v3603
  %v3605 = vpop.f32.mrf.mxu0
  %3606 = vmatprep.mubr.f32.mxu0 0.0
  %3607 = vmatmul.mubr.f32.gmra.mxu0 %v2945
  %v3608 = vpop.f32.mrf.mxu0
  %v3609 = vadd.f32 %v2621, %v3608
  %v3610 = vpop.f32.mrf.mxu0
  %3611 = vmatprep.mubr.f32.mxu0 0.0
  %3612 = vmatmul.mubr.f32.gmra.mxu0 %v2948
  %v3613 = vpop.f32.mrf.mxu0
  %v3614 = vadd.f32 %v2621, %v3613
  %v3615 = vpop.f32.mrf.mxu0
  %3616 = vmatprep.mubr.f32.mxu0 0.0
  %3617 = vmatmul.mubr.f32.gmra.mxu0 %v2951
  %v3618 = vpop.f32.mrf.mxu0
  %v3619 = vadd.f32 %v2621, %v3618
  %v3620 = vpop.f32.mrf.mxu0
  %3621 = vmatprep.mubr.f32.mxu0 0.0
  %3622 = vmatmul.mubr.f32.gmra.mxu0 %v2954
  %v3623 = vpop.f32.mrf.mxu0
  %v3624 = vadd.f32 %v2621, %v3623
  %v3625 = vpop.f32.mrf.mxu0
  %3626 = vmatprep.mubr.f32.mxu0 0.0
  %3627 = vmatmul.mubr.f32.gmra.mxu0 %v2957
  %v3628 = vpop.f32.mrf.mxu0
  %v3629 = vadd.f32 %v2621, %v3628
  %v3630 = vpop.f32.mrf.mxu0
  %3631 = vmatprep.mubr.f32.mxu0 0.0
  %3632 = vmatmul.mubr.f32.gmra.mxu0 %v2960
  %v3633 = vpop.f32.mrf.mxu0
  %v3634 = vadd.f32 %v2621, %v3633
  %v3635 = vpop.f32.mrf.mxu0
  %3636 = vmatprep.mubr.f32.mxu0 0.0
  %3637 = vmatmul.mubr.f32.gmra.mxu0 %v2963
  %v3638 = vpop.f32.mrf.mxu0
  %v3639 = vadd.f32 %v2621, %v3638
  %v3640 = vpop.f32.mrf.mxu0
  %3641 = vmatprep.mubr.f32.mxu0 0.0
  %3642 = vmatmul.mubr.f32.gmra.mxu0 %v2966
  %v3643 = vpop.f32.mrf.mxu0
  %v3644 = vadd.f32 %v2621, %v3643
  %v3645 = vpop.f32.mrf.mxu0
  %3646 = vmatprep.mubr.f32.mxu0 0.0
  %3647 = vmatmul.mubr.f32.gmra.mxu0 %v2969
  %v3648 = vpop.f32.mrf.mxu0
  %v3649 = vadd.f32 %v2621, %v3648
  %v3650 = vpop.f32.mrf.mxu0
  %3651 = vmatprep.mubr.f32.mxu0 0.0
  %3652 = vmatmul.mubr.f32.gmra.mxu0 %v2972
  %v3653 = vpop.f32.mrf.mxu0
  %v3654 = vadd.f32 %v2621, %v3653
  %v3655 = vpop.f32.mrf.mxu0
  %3656 = vmatprep.mubr.f32.mxu0 0.0
  %3657 = vmatmul.mubr.f32.gmra.mxu0 %v2975
  %v3658 = vpop.f32.mrf.mxu0
  %v3659 = vadd.f32 %v2621, %v3658
  %v3660 = vpop.f32.mrf.mxu0
  %3661 = vmatprep.mubr.f32.mxu0 0.0
  %3662 = vmatmul.mubr.f32.gmra.mxu0 %v2978
  %v3663 = vpop.f32.mrf.mxu0
  %v3664 = vadd.f32 %v2621, %v3663
  %v3665 = vpop.f32.mrf.mxu0
  %3666 = vmatprep.mubr.f32.mxu0 0.0
  %3667 = vmatmul.mubr.f32.gmra.mxu0 %v2981
  %v3668 = vpop.f32.mrf.mxu0
  %v3669 = vadd.f32 %v2621, %v3668
  %v3670 = vpop.f32.mrf.mxu0
  %3671 = vmatprep.mubr.f32.mxu0 0.0
  %3672 = vmatmul.mubr.f32.gmra.mxu0 %v2984
  %v3673 = vpop.f32.mrf.mxu0
  %v3674 = vadd.f32 %v2621, %v3673
  %v3675 = vpop.f32.mrf.mxu0
  %3676 = vmatprep.mubr.f32.mxu0 0.0
  %3677 = vmatmul.mubr.f32.gmra.mxu0 %v2987
  %v3678 = vpop.f32.mrf.mxu0
  %v3679 = vadd.f32 %v2621, %v3678
  %v3680 = vpop.f32.mrf.mxu0
  %3681 = vmatprep.mubr.f32.mxu0 0.0
  %3682 = vmatmul.mubr.f32.gmra.mxu0 %v2990
  %v3683 = vpop.f32.mrf.mxu0
  %v3684 = vadd.f32 %v2621, %v3683
  %v3685 = vpop.f32.mrf.mxu0
  %3686 = vmatprep.mubr.f32.mxu0 0.0
  %3687 = vmatmul.mubr.f32.gmra.mxu0 %v2993
  %v3688 = vpop.f32.mrf.mxu0
  %v3689 = vadd.f32 %v2621, %v3688
  %v3690 = vpop.f32.mrf.mxu0
  %3691 = vmatprep.mubr.f32.mxu0 0.0
  %3692 = vmatmul.mubr.f32.gmra.mxu0 %v2996
  %v3693 = vpop.f32.mrf.mxu0
  %v3694 = vadd.f32 %v2621, %v3693
  %v3695 = vpop.f32.mrf.mxu0
  %3696 = vmatprep.mubr.f32.mxu0 0.0
  %3697 = vmatmul.mubr.f32.gmra.mxu0 %v2999
  %v3698 = vpop.f32.mrf.mxu0
  %v3699 = vadd.f32 %v2621, %v3698
  %v3700 = vpop.f32.mrf.mxu0
  %3701 = vmatprep.mubr.f32.mxu0 0.0
  %3702 = vmatmul.mubr.f32.gmra.mxu0 %v3002
  %v3703 = vpop.f32.mrf.mxu0
  %v3704 = vadd.f32 %v2621, %v3703
  %v3705 = vpop.f32.mrf.mxu0
  %3706 = vmatprep.mubr.f32.mxu0 0.0
  %3707 = vmatmul.mubr.f32.gmra.mxu0 %v3005
  %v3708 = vpop.f32.mrf.mxu0
  %v3709 = vadd.f32 %v2621, %v3708
  %v3710 = vpop.f32.mrf.mxu0
  %3711 = vdwg.mxu0
  %3712 = vst.msk [vmem:[%s7] sm:$0xff] %vm167, %v3074
  %3713 = vst.msk [vmem:[%s7 + $0x8] sm:$0xff] %vm167, %v3079
  %3714 = vst.msk [vmem:[%s7 + $0x10] sm:$0xff] %vm167, %v3084
  %3715 = vst.msk [vmem:[%s7 + $0x18] sm:$0xff] %vm167, %v3089
  %3716 = vst.msk [vmem:[%s7 + $0x20] sm:$0xff] %vm167, %v3094
  %3717 = vst.msk [vmem:[%s7 + $0x28] sm:$0xff] %vm167, %v3099
  %3718 = vst.msk [vmem:[%s7 + $0x30] sm:$0xff] %vm167, %v3104
  %3719 = vst.msk [vmem:[%s7 + $0x38] sm:$0xff] %vm167, %v3109
  %3720 = vst.msk [vmem:[%s7 + $0x40] sm:$0xff] %vm167, %v3114
  %3721 = vst.msk [vmem:[%s7 + $0x48] sm:$0xff] %vm167, %v3119
  %3722 = vst.msk [vmem:[%s7 + $0x50] sm:$0xff] %vm167, %v3124
  %3723 = vst.msk [vmem:[%s7 + $0x58] sm:$0xff] %vm167, %v3129
  %3724 = vst.msk [vmem:[%s7 + $0x60] sm:$0xff] %vm167, %v3134
  %3725 = vst.msk [vmem:[%s7 + $0x68] sm:$0xff] %vm167, %v3139
  %3726 = vst.msk [vmem:[%s7 + $0x70] sm:$0xff] %vm167, %v3144
  %3727 = vst.msk [vmem:[%s7 + $0x78] sm:$0xff] %vm167, %v3149
  %3728 = vst.msk [vmem:[%s7 + $0x80] sm:$0xff] %vm167, %v3154
  %3729 = vst.msk [vmem:[%s7 + $0x88] sm:$0xff] %vm167, %v3159
  %3730 = vst.msk [vmem:[%s7 + $0x90] sm:$0xff] %vm167, %v3164
  %3731 = vst.msk [vmem:[%s7 + $0x98] sm:$0xff] %vm167, %v3169
  %3732 = vst.msk [vmem:[%s7 + $0xa0] sm:$0xff] %vm167, %v3174
  %3733 = vst.msk [vmem:[%s7 + $0xa8] sm:$0xff] %vm167, %v3179
  %3734 = vst.msk [vmem:[%s7 + $0xb0] sm:$0xff] %vm167, %v3184
  %3735 = vst.msk [vmem:[%s7 + $0xb8] sm:$0xff] %vm167, %v3189
  %3736 = vst.msk [vmem:[%s7 + $0xc0] sm:$0xff] %vm167, %v3194
  %3737 = vst.msk [vmem:[%s7 + $0xc8] sm:$0xff] %vm167, %v3199
  %3738 = vst.msk [vmem:[%s7 + $0xd0] sm:$0xff] %vm167, %v3204
  %3739 = vst.msk [vmem:[%s7 + $0xd8] sm:$0xff] %vm167, %v3209
  %3740 = vst.msk [vmem:[%s7 + $0xe0] sm:$0xff] %vm167, %v3214
  %3741 = vst.msk [vmem:[%s7 + $0xe8] sm:$0xff] %vm167, %v3219
  %3742 = vst.msk [vmem:[%s7 + $0xf0] sm:$0xff] %vm167, %v3224
  %3743 = vst.msk [vmem:[%s7 + $0xf8] sm:$0xff] %vm167, %v3229
  %3744 = vst.msk [vmem:[%s7 + $0x100] sm:$0xff] %vm167, %v3234
  %3745 = vst.msk [vmem:[%s7 + $0x108] sm:$0xff] %vm167, %v3239
  %3746 = vst.msk [vmem:[%s7 + $0x110] sm:$0xff] %vm167, %v3244
  %3747 = vst.msk [vmem:[%s7 + $0x118] sm:$0xff] %vm167, %v3249
  %3748 = vst.msk [vmem:[%s7 + $0x120] sm:$0xff] %vm167, %v3254
  %3749 = vst.msk [vmem:[%s7 + $0x128] sm:$0xff] %vm167, %v3259
  %3750 = vst.msk [vmem:[%s7 + $0x130] sm:$0xff] %vm167, %v3264
  %3751 = vst.msk [vmem:[%s7 + $0x138] sm:$0xff] %vm167, %v3269
  %3752 = vst.msk [vmem:[%s7 + $0x140] sm:$0xff] %vm167, %v3274
  %3753 = vst.msk [vmem:[%s7 + $0x148] sm:$0xff] %vm167, %v3279
  %3754 = vst.msk [vmem:[%s7 + $0x150] sm:$0xff] %vm167, %v3284
  %3755 = vst.msk [vmem:[%s7 + $0x158] sm:$0xff] %vm167, %v3289
  %3756 = vst.msk [vmem:[%s7 + $0x160] sm:$0xff] %vm167, %v3294
  %3757 = vst.msk [vmem:[%s7 + $0x168] sm:$0xff] %vm167, %v3299
  %3758 = vst.msk [vmem:[%s7 + $0x170] sm:$0xff] %vm167, %v3304
  %3759 = vst.msk [vmem:[%s7 + $0x178] sm:$0xff] %vm167, %v3309
  %3760 = vst.msk [vmem:[%s7 + $0x180] sm:$0xff] %vm167, %v3314
  %3761 = vst.msk [vmem:[%s7 + $0x188] sm:$0xff] %vm167, %v3319
  %3762 = vst.msk [vmem:[%s7 + $0x190] sm:$0xff] %vm167, %v3324
  %3763 = vst.msk [vmem:[%s7 + $0x198] sm:$0xff] %vm167, %v3329
  %3764 = vst.msk [vmem:[%s7 + $0x1a0] sm:$0xff] %vm167, %v3334
  %3765 = vst.msk [vmem:[%s7 + $0x1a8] sm:$0xff] %vm167, %v3339
  %3766 = vst.msk [vmem:[%s7 + $0x1b0] sm:$0xff] %vm167, %v3344
  %3767 = vst.msk [vmem:[%s7 + $0x1b8] sm:$0xff] %vm167, %v3349
  %3768 = vst.msk [vmem:[%s7 + $0x1c0] sm:$0xff] %vm167, %v3354
  %3769 = vst.msk [vmem:[%s7 + $0x1c8] sm:$0xff] %vm167, %v3359
  %3770 = vst.msk [vmem:[%s7 + $0x1d0] sm:$0xff] %vm167, %v3364
  %3771 = vst.msk [vmem:[%s7 + $0x1d8] sm:$0xff] %vm167, %v3369
  %3772 = vst.msk [vmem:[%s7 + $0x1e0] sm:$0xff] %vm167, %v3374
  %3773 = vst.msk [vmem:[%s7 + $0x1e8] sm:$0xff] %vm167, %v3379
  %3774 = vst.msk [vmem:[%s7 + $0x1f0] sm:$0xff] %vm167, %v3384
  %3775 = vst.msk [vmem:[%s7 + $0x1f8] sm:$0xff] %vm167, %v3389
  %3776 = vst.msk [vmem:[%s7 + $0x200] sm:$0xff] %vm167, %v3394
  %3777 = vst.msk [vmem:[%s7 + $0x208] sm:$0xff] %vm167, %v3399
  %3778 = vst.msk [vmem:[%s7 + $0x210] sm:$0xff] %vm167, %v3404
  %3779 = vst.msk [vmem:[%s7 + $0x218] sm:$0xff] %vm167, %v3409
  %3780 = vst.msk [vmem:[%s7 + $0x220] sm:$0xff] %vm167, %v3414
  %3781 = vst.msk [vmem:[%s7 + $0x228] sm:$0xff] %vm167, %v3419
  %3782 = vst.msk [vmem:[%s7 + $0x230] sm:$0xff] %vm167, %v3424
  %3783 = vst.msk [vmem:[%s7 + $0x238] sm:$0xff] %vm167, %v3429
  %3784 = vst.msk [vmem:[%s7 + $0x240] sm:$0xff] %vm167, %v3434
  %3785 = vst.msk [vmem:[%s7 + $0x248] sm:$0xff] %vm167, %v3439
  %3786 = vst.msk [vmem:[%s7 + $0x250] sm:$0xff] %vm167, %v3444
  %3787 = vst.msk [vmem:[%s7 + $0x258] sm:$0xff] %vm167, %v3449
  %3788 = vst.msk [vmem:[%s7 + $0x260] sm:$0xff] %vm167, %v3454
  %3789 = vst.msk [vmem:[%s7 + $0x268] sm:$0xff] %vm167, %v3459
  %3790 = vst.msk [vmem:[%s7 + $0x270] sm:$0xff] %vm167, %v3464
  %3791 = vst.msk [vmem:[%s7 + $0x278] sm:$0xff] %vm167, %v3469
  %3792 = vst.msk [vmem:[%s7 + $0x280] sm:$0xff] %vm167, %v3474
  %3793 = vst.msk [vmem:[%s7 + $0x288] sm:$0xff] %vm167, %v3479
  %3794 = vst.msk [vmem:[%s7 + $0x290] sm:$0xff] %vm167, %v3484
  %3795 = vst.msk [vmem:[%s7 + $0x298] sm:$0xff] %vm167, %v3489
  %3796 = vst.msk [vmem:[%s7 + $0x2a0] sm:$0xff] %vm167, %v3494
  %3797 = vst.msk [vmem:[%s7 + $0x2a8] sm:$0xff] %vm167, %v3499
  %3798 = vst.msk [vmem:[%s7 + $0x2b0] sm:$0xff] %vm167, %v3504
  %3799 = vst.msk [vmem:[%s7 + $0x2b8] sm:$0xff] %vm167, %v3509
  %3800 = vst.msk [vmem:[%s7 + $0x2c0] sm:$0xff] %vm167, %v3514
  %3801 = vst.msk [vmem:[%s7 + $0x2c8] sm:$0xff] %vm167, %v3519
  %3802 = vst.msk [vmem:[%s7 + $0x2d0] sm:$0xff] %vm167, %v3524
  %3803 = vst.msk [vmem:[%s7 + $0x2d8] sm:$0xff] %vm167, %v3529
  %3804 = vst.msk [vmem:[%s7 + $0x2e0] sm:$0xff] %vm167, %v3534
  %3805 = vst.msk [vmem:[%s7 + $0x2e8] sm:$0xff] %vm167, %v3539
  %3806 = vst.msk [vmem:[%s7 + $0x2f0] sm:$0xff] %vm167, %v3544
  %3807 = vst.msk [vmem:[%s7 + $0x2f8] sm:$0xff] %vm167, %v3549
  %3808 = vst.msk [vmem:[%s7 + $0x300] sm:$0xff] %vm167, %v3554
  %3809 = vst.msk [vmem:[%s7 + $0x308] sm:$0xff] %vm167, %v3559
  %3810 = vst.msk [vmem:[%s7 + $0x310] sm:$0xff] %vm167, %v3564
  %3811 = vst.msk [vmem:[%s7 + $0x318] sm:$0xff] %vm167, %v3569
  %3812 = vst.msk [vmem:[%s7 + $0x320] sm:$0xff] %vm167, %v3574
  %3813 = vst.msk [vmem:[%s7 + $0x328] sm:$0xff] %vm167, %v3579
  %3814 = vst.msk [vmem:[%s7 + $0x330] sm:$0xff] %vm167, %v3584
  %3815 = vst.msk [vmem:[%s7 + $0x338] sm:$0xff] %vm167, %v3589
  %3816 = vst.msk [vmem:[%s7 + $0x340] sm:$0xff] %vm167, %v3594
  %3817 = vst.msk [vmem:[%s7 + $0x348] sm:$0xff] %vm167, %v3599
  %3818 = vst.msk [vmem:[%s7 + $0x350] sm:$0xff] %vm167, %v3604
  %3819 = vst.msk [vmem:[%s7 + $0x358] sm:$0xff] %vm167, %v3609
  %3820 = vst.msk [vmem:[%s7 + $0x360] sm:$0xff] %vm167, %v3614
  %3821 = vst.msk [vmem:[%s7 + $0x368] sm:$0xff] %vm167, %v3619
  %3822 = vst.msk [vmem:[%s7 + $0x370] sm:$0xff] %vm167, %v3624
  %3823 = vst.msk [vmem:[%s7 + $0x378] sm:$0xff] %vm167, %v3629
  %3824 = vst.msk [vmem:[%s7 + $0x380] sm:$0xff] %vm167, %v3634
  %3825 = vst.msk [vmem:[%s7 + $0x388] sm:$0xff] %vm167, %v3639
  %3826 = vst.msk [vmem:[%s7 + $0x390] sm:$0xff] %vm167, %v3644
  %3827 = vst.msk [vmem:[%s7 + $0x398] sm:$0xff] %vm167, %v3649
  %3828 = vst.msk [vmem:[%s7 + $0x3a0] sm:$0xff] %vm167, %v3654
  %3829 = vst.msk [vmem:[%s7 + $0x3a8] sm:$0xff] %vm167, %v3659
  %3830 = vst.msk [vmem:[%s7 + $0x3b0] sm:$0xff] %vm167, %v3664
  %3831 = vst.msk [vmem:[%s7 + $0x3b8] sm:$0xff] %vm167, %v3669
  %3832 = vst.msk [vmem:[%s7 + $0x3c0] sm:$0xff] %vm167, %v3674
  %3833 = vst.msk [vmem:[%s7 + $0x3c8] sm:$0xff] %vm167, %v3679
  %3834 = vst.msk [vmem:[%s7 + $0x3d0] sm:$0xff] %vm167, %v3684
  %3835 = vst.msk [vmem:[%s7 + $0x3d8] sm:$0xff] %vm167, %v3689
  %3836 = vst.msk [vmem:[%s7 + $0x3e0] sm:$0xff] %vm167, %v3694
  %3837 = vst.msk [vmem:[%s7 + $0x3e8] sm:$0xff] %vm167, %v3699
  %3838 = vst.msk [vmem:[%s7 + $0x3f0] sm:$0xff] %vm167, %v3704
  %3839 = vst.msk [vmem:[%s7 + $0x3f8] sm:$0xff] %vm167, %v3709
  // Predicated region
  $region30: #{tpu_custom_call.1} parent=0 // pred_check
    _
  $region31: #{tpu_custom_call.1} parent=0 // pred_check_branch
    %3841 = sbr.rel (0) target = $region33
  $region32: #{tpu_custom_call.1} parent=0 // pred_region
    _
  $region33: #{tpu_custom_call.1} parent=0 // pred_fallthru
    _
  // Predicated region
  $region34: #{tpu_custom_call.1} parent=0 // pred_check
    _
  $region35: #{tpu_custom_call.1} parent=0 // pred_check_branch
    %3843 = sbr.rel (0) target = $region37
  $region36: #{tpu_custom_call.1} parent=0 // pred_region
    _
  $region37: #{tpu_custom_call.1} parent=0 // pred_fallthru
    _

</llo_original>
